<compile_context>
chip_gen: v7x
topology: tpu7x:2x2x1
jax: 0.10.0
libtpu: 0.0.40
codegen_flags: <defaults>
</compile_context>

<pallas_src>
import math
import random

import numpy as np
import jax
import jax.numpy as jnp
from jax.experimental import pallas as pl
from jax.experimental.pallas import tpu as pltpu


# ----------------------------------------------------------------------------
# helpers
# ----------------------------------------------------------------------------

def _round_up(x, m):
    return ((x + m - 1) // m) * m


def _pad2(x, rows, cols):
    r, c = x.shape
    if r == rows and c == cols:
        return x
    return jnp.pad(x, ((0, rows - r), (0, cols - c)))


def _vmem_limit_bytes():
    """Chip-adaptive scoped-VMEM limit (48 MiB fallback is safe on v7x 64 MiB)."""
    try:
        cap = int(pltpu.get_tpu_info().vmem_capacity_bytes)
    except Exception:
        cap = 64 * 1024 * 1024
    return int(min(cap * 3 // 4, 96 * 1024 * 1024))


_VMEM_LIMIT = _vmem_limit_bytes()
_CONV_BUDGET = (_VMEM_LIMIT * 3) // 5        # per-step block budget for conv kernel


def _largest_divisor_leq(n, cap):
    for g in range(min(n, cap), 0, -1):
        if n % g == 0:
            return g
    return 1


# ----------------------------------------------------------------------------
# Fused 3x3 conv + bias + ReLU (+ optional fused 2x2 maxpool), im2col-free
# ----------------------------------------------------------------------------

def _make_conv_kernel(th, wdt, cin, cout, pool):
    def kernel(x_ref, w_ref, b_ref, *refs):
        if pool:
            o_ref, p_ref, acc_ref = refs
        else:
            o_ref, acc_ref = refs
        x = x_ref[0]                                        # (th+2, wdt+2, cin) bf16
        for kh in range(3):
            for kw in range(3):
                a = x[kh:kh + th, kw:kw + wdt, :].reshape(th * wdt, cin)
                d = jnp.dot(a, w_ref[kh, kw], preferred_element_type=jnp.float32)
                if kh == 0 and kw == 0:
                    acc_ref[...] = d
                else:
                    acc_ref[...] += d
        out = jnp.maximum(acc_ref[...] + b_ref[...], 0.0)   # f32 epilogue (VPU)
        out3 = out.reshape(th, wdt, cout)
        o_ref[0] = out3.astype(o_ref.dtype)
        if pool:                                            # fused 2x2 maxpool
            m1 = jnp.max(out3.reshape(th, wdt // 2, 2, cout), axis=2)
            m2 = jnp.max(m1.reshape(th // 2, 2, wdt // 2, cout), axis=1)
            p_ref[0] = m2.astype(p_ref.dtype)
    return kernel


def _pick_band(h, wdt, cin, cout, pool):
    """Largest row band th dividing H (even when pooling) fitting the VMEM budget."""
    divisors = [d for d in range(h, 0, -1) if h % d == 0]
    for th in divisors:
        if pool and th % 2:
            continue
        a_b = (th + 2) * (wdt + 2) * cin * 2 * 2            # input band, 2 buffers
        w_b = 9 * cin * cout * 2 * 2                        # weights (conservative x2)
        acc_b = th * wdt * cout * 4                         # f32 accumulator scratch
        o_b = th * wdt * cout * 2 * 2                       # full-res out, 2 buffers
        p_b = (th * wdt * cout * 2 * 2) // 4 if pool else 0
        if a_b + w_b + acc_b + o_b + p_b <= _CONV_BUDGET:
            return th
    for th in reversed(divisors):                           # smallest valid fallback
        if (not pool) or th % 2 == 0:
            return th
    return divisors[-1]


def _maxpool2_jax(x):
    n, h, w, c = x.shape
    return x.reshape(n, h // 2, 2, w // 2, 2, c).max(axis=(2, 4))


def conv3x3_relu(x_nhwc, w_kkio, bias, pool=False):
    """3x3 'same' conv + bias + ReLU; optionally also returns fused 2x2 maxpool."""
    n, h, wdt, cin = x_nhwc.shape
    cout = w_kkio.shape[-1]
    if pool and (h % 2 or wdt % 2):
        # TODO(synk): unfused fallback for odd spatial sizes.
        full = conv3x3_relu(x_nhwc, w_kkio, bias, pool=False)
        return full, _maxpool2_jax(full)

    th = _pick_band(h, wdt, cin, cout, pool)
    nb = h // th
    xp = jnp.pad(x_nhwc, ((0, 0), (1, 1), (1, 1), (0, 0)))          # zero pad (Conv2d)
    if nb == 1:
        bands = xp.reshape(n, 1, h + 2, wdt + 2, cin)
    else:
        rows = jnp.arange(nb)[:, None] * th + jnp.arange(th + 2)[None, :]
        bands = xp[:, rows]                                          # 2-row halo dup only
    bands = bands.reshape(n * nb, th + 2, wdt + 2, cin).astype(jnp.bfloat16)

    w_bf = w_kkio.astype(jnp.bfloat16)
    b_2d = bias.reshape(1, cout).astype(jnp.float32)

    out_shapes = [jax.ShapeDtypeStruct((n * nb, th, wdt, cout), jnp.bfloat16)]
    out_specs = [pl.BlockSpec((1, th, wdt, cout), lambda i: (i, 0, 0, 0))]
    if pool:
        out_shapes.append(jax.ShapeDtypeStruct((n * nb, th // 2, wdt // 2, cout),
                                               jnp.bfloat16))
        out_specs.append(pl.BlockSpec((1, th // 2, wdt // 2, cout),
                                      lambda i: (i, 0, 0, 0)))

    results = pl.pallas_call(
        _make_conv_kernel(th, wdt, cin, cout, pool),
        out_shape=out_shapes,
        grid=(n * nb,),
        in_specs=[
            pl.BlockSpec((1, th + 2, wdt + 2, cin), lambda i: (i, 0, 0, 0)),
            pl.BlockSpec((3, 3, cin, cout), lambda i: (0, 0, 0, 0)),   # resident
            pl.BlockSpec((1, cout), lambda i: (0, 0)),                 # resident
        ],
        out_specs=out_specs,
        scratch_shapes=[pltpu.VMEM((th * wdt, cout), jnp.float32)],
        compiler_params=pltpu.CompilerParams(
            dimension_semantics=("parallel",),
            vmem_limit_bytes=_VMEM_LIMIT),
    )(bands, w_bf, b_2d)

    full = results[0].reshape(n, h, wdt, cout)
    if pool:
        pooled = results[1].reshape(n, h // 2, wdt // 2, cout)
        return full, pooled
    return full


# ----------------------------------------------------------------------------
# LPIPS tail: channel-normalize / diff^2 / lin 1x1 conv (MXU matmul) / spatial
# mean.  Grid = (batch "parallel", spatial "arbitrary") with resident output.
# ----------------------------------------------------------------------------

def pallas_lpips_slice(f0, f1, w):
    """f0/f1: (N, P, C) bf16, w: (1, C) f32 -> (N, 1) f32 spatial-mean distance."""
    n, p, c = f0.shape
    cp = _round_up(c, 128)
    tp = (2 * 1024 * 1024) // (cp * 2)                    # ~2 MiB per input block
    tp = max(8, (tp // 8) * 8)
    tp = min(tp, _round_up(p, 8), 2048)
    pp = _round_up(p, tp)

    f0p = jnp.pad(f0, ((0, 0), (0, pp - p), (0, cp - c)))
    f1p = jnp.pad(f1, ((0, 0), (0, pp - p), (0, cp - c)))
    w_col = jnp.pad(w.reshape(-1, 1).astype(jnp.float32), ((0, cp - c), (0, 0)))
    inv_p = 1.0 / float(p)
    eps = 1e-10

    def kernel(f0_ref, f1_ref, w_ref, o_ref):
        @pl.when(pl.program_id(1) == 0)
        def _():
            o_ref[...] = jnp.zeros_like(o_ref)

        a = f0_ref[0].astype(jnp.float32)                 # (tp, cp)
        b = f1_ref[0].astype(jnp.float32)
        # sqrt + EUP approx reciprocal keeps LPIPS' epsilon placement.
        ra = pl.reciprocal(jnp.sqrt(jnp.sum(a * a, axis=-1, keepdims=True)) + eps,
                           approx=True)
        rb = pl.reciprocal(jnp.sqrt(jnp.sum(b * b, axis=-1, keepdims=True)) + eps,
                           approx=True)
        d = (a * ra - b * rb) ** 2
        v = jnp.dot(d, w_ref[...], preferred_element_type=jnp.float32)   # (tp,1) MXU
        s = jnp.sum(v, axis=0, keepdims=True)                            # (1, 1)
        o_ref[...] = o_ref[...] + s[None]

        @pl.when(pl.program_id(1) == pl.num_programs(1) - 1)
        def _():
            o_ref[...] = o_ref[...] * inv_p               # exact mean over true P

    out = pl.pallas_call(
        kernel,
        out_shape=jax.ShapeDtypeStruct((n, 1, 128), jnp.float32),
        grid=(n, pp // tp),
        in_specs=[pl.BlockSpec((1, tp, cp), lambda bb, ii: (bb, ii, 0)),
                  pl.BlockSpec((1, tp, cp), lambda bb, ii: (bb, ii, 0)),
                  pl.BlockSpec((cp, 1), lambda bb, ii: (0, 0))],
        out_specs=pl.BlockSpec((1, 1, 128), lambda bb, ii: (bb, 0, 0)),
        compiler_params=pltpu.CompilerParams(
            dimension_semantics=("parallel", "arbitrary"),
            vmem_limit_bytes=_VMEM_LIMIT),
    )(f0p, f1p, w_col)
    return out[:, 0, 0].reshape(n, 1)


# ----------------------------------------------------------------------------
# MSE: sublane-dense (8, tc) blocks, resident (1,1) accumulator.
# ----------------------------------------------------------------------------

def pallas_mse(a_nchw, b_nchw):
    af = a_nchw.reshape(-1).astype(jnp.float32)
    bf = b_nchw.reshape(-1).astype(jnp.float32)
    total = af.shape[0]
    r = 8
    pad_r = (-total) % r
    if pad_r:
        af = jnp.pad(af, (0, pad_r))
        bf = jnp.pad(bf, (0, pad_r))
    d = (total + pad_r) // r
    tc = min(8192, _round_up(d, 128))
    dp = _round_up(d, tc)
    a2 = _pad2(af.reshape(r, d), r, dp)
    b2 = _pad2(bf.reshape(r, d), r, dp)
    inv = 1.0 / float(total)

    def kernel(a_ref, b_ref, o_ref):
        @pl.when(pl.program_id(0) == 0)
        def _():
            o_ref[...] = jnp.zeros_like(o_ref)
        dd = a_ref[...] - b_ref[...]
        s = jnp.sum(jnp.sum(dd * dd, axis=1, keepdims=True), axis=0, keepdims=True)
        o_ref[...] = o_ref[...] + s
        @pl.when(pl.program_id(0) == pl.num_programs(0) - 1)
        def _():
            o_ref[...] = o_ref[...] * inv

    out = pl.pallas_call(
        kernel,
        out_shape=jax.ShapeDtypeStruct((1, 1), jnp.float32),
        grid=(dp // tc,),
        in_specs=[pl.BlockSpec((r, tc), lambda i: (0, i)),
                  pl.BlockSpec((r, tc), lambda i: (0, i))],
        out_specs=pl.BlockSpec((1, 1), lambda i: (0, 0)),
        compiler_params=pltpu.CompilerParams(
            dimension_semantics=("arbitrary",),
            vmem_limit_bytes=_VMEM_LIMIT),
    )(a2, b2)
    return out[0, 0]


# ----------------------------------------------------------------------------
# Fused separable bicubic resize, G images per grid step (no HBM transposes).
# ----------------------------------------------------------------------------

def _make_bicubic_kernel(g, hp, wo):
    def kernel(x_ref, mwt_ref, mh_ref, o_ref):
        x = x_ref[...]                                              # (g, hp, wp)
        t = jnp.dot(x.reshape(g * hp, x.shape[-1]), mwt_ref[...],
                    preferred_element_type=jnp.float32).reshape(g, hp, wo)
        for k in range(g):                                          # height pass
            o_ref[k] = jnp.dot(mh_ref[...], t[k],
                               preferred_element_type=jnp.float32)
    return kernel


def pallas_bicubic_batch(x_bhw, mh, mw):
    b, hp, wp = x_bhw.shape
    ho, wo = mh.shape[0], mw.shape[0]
    g = _largest_divisor_leq(b, 16)
    mwt = jnp.asarray(mw.T)                  # (wp, wo)
    mhj = jnp.asarray(mh)                    # (ho, hp)
    return pl.pallas_call(
        _make_bicubic_kernel(g, hp, wo),
        out_shape=jax.ShapeDtypeStruct((b, ho, wo), jnp.float32),
        grid=(b // g,),
        in_specs=[pl.BlockSpec((g, hp, wp), lambda i: (i, 0, 0)),
                  pl.BlockSpec((wp, wo), lambda i: (0, 0)),
                  pl.BlockSpec((ho, hp), lambda i: (0, 0))],
        out_specs=pl.BlockSpec((g, ho, wo), lambda i: (i, 0, 0)),
        compiler_params=pltpu.CompilerParams(
            dimension_semantics=("parallel",),
            vmem_limit_bytes=_VMEM_LIMIT),
    )(x_bhw.astype(jnp.float32), mwt, mhj)


def _bicubic_crop_matrix(in_pad, start, crop, out_size):
    """Bicubic (PyTorch a=-0.75, align_corners=False) from a [start,start+crop)
    window of a padded axis of length in_pad, resampled to out_size. Crop folded
    into the matrix so traced shapes never change."""
    A = -0.75
    scale = crop / out_size

    def cub1(x):
        return ((A + 2) * x - (A + 3)) * x * x + 1

    def cub2(x):
        return ((A * x - 5 * A) * x + 8 * A) * x - 4 * A

    mat = np.zeros((out_size, in_pad), dtype=np.float32)
    for i in range(out_size):
        src = (i + 0.5) * scale - 0.5
        x0 = int(np.floor(src))
        t = src - x0
        ws = [cub2(t + 1.0), cub1(t), cub1(1.0 - t), cub2(2.0 - t)]
        for k in range(4):
            idx = min(max(x0 - 1 + k, 0), crop - 1) + start
            mat[i, idx] += ws[k]
    return mat


def padding_and_trimming(x, x_rec):
    n, c, h, w = x.shape
    x_rec_p = jnp.pad(x_rec, ((0, 0), (0, 0), (15, 15), (15, 15)), mode="edge")
    x_p = jnp.pad(x, ((0, 0), (0, 0), (15, 15), (15, 15)), mode="edge")
    hp, wp = h + 30, w + 30
    # Host-side random crop (Python `random`, as in the reference); folded into
    # the interpolation matrices so traced array shapes stay fixed.
    top = random.randrange(0, 16)
    bottom = hp - random.randrange(0, 16)
    left = random.randrange(0, 16)
    right = wp - random.randrange(0, 16)
    mh = _bicubic_crop_matrix(hp, top, bottom - top, h)
    mw = _bicubic_crop_matrix(wp, left, right - left, w)

    stacked = jnp.concatenate([x_p, x_rec_p], axis=0).reshape(2 * n * c, hp, wp)
    out = pallas_bicubic_batch(stacked, mh, mw).reshape(2, n, c, h, w)
    return out[0], out[1]


# ----------------------------------------------------------------------------
# VGG16 backbone + LPIPS
# ----------------------------------------------------------------------------

_VGG_CONVS = [(3, 64), (64, 64),
              (64, 128), (128, 128),
              (128, 256), (256, 256), (256, 256),
              (256, 512), (512, 512), (512, 512),
              (512, 512), (512, 512), (512, 512)]
_POOL_AFTER = {1, 3, 6, 9}                    # 2x2 maxpool fused after these convs
_CAPTURE_AFTER = (1, 3, 6, 9, 12)             # relu1_2 ... relu5_3
_LIN_CHANNELS = (64, 128, 256, 512, 512)
_SHIFT = np.array([-0.030, -0.088, -0.188], np.float32)   # LPIPS ScalingLayer
_SCALE = np.array([0.458, 0.448, 0.450], np.float32)


def init_params(key):
    # TODO(synk): pretrained VGG16 / LPIPS lin weights cannot be loaded in-script;
    # random He-init stand-ins keep the compute graph identical.
    conv_w, conv_b, lin_w = [], [], []
    for (cin, cout) in _VGG_CONVS:
        key, kw, kb = jax.random.split(key, 3)
        std = math.sqrt(2.0 / (9 * cin))
        conv_w.append(jax.random.normal(kw, (3, 3, cin, cout), jnp.float32) * std)
        conv_b.append(jax.random.normal(kb, (cout,), jnp.float32) * 0.01)
    for c in _LIN_CHANNELS:
        key, kl = jax.random.split(key)
        lin_w.append(jnp.abs(jax.random.normal(kl, (1, c), jnp.float32)) * 0.1)
    return {"conv_w": conv_w, "conv_b": conv_b, "lin_w": lin_w}


def vgg16_features(x_nhwc, params):
    feats = []
    h = x_nhwc
    for i, (w, b) in enumerate(zip(params["conv_w"], params["conv_b"])):
        if i in _POOL_AFTER:
            full, h = conv3x3_relu(h, w, b, pool=True)   # capture pre-pool feature
            feats.append(full)
        else:
            h = conv3x3_relu(h, w, b, pool=False)
            if i in _CAPTURE_AFTER:
                feats.append(h)
    return feats


def lpips(in0_nchw, in1_nchw, params):
    shift = jnp.asarray(_SHIFT)
    scale = jnp.asarray(_SCALE)

    def prep(x):
        x = jnp.transpose(x, (0, 2, 3, 1))               # NCHW -> NHWC
        return (x - shift) / scale                       # ScalingLayer

    n = in0_nchw.shape[0]
    # Both towers run as a single batched VGG pass (2N batch).
    x_all = jnp.concatenate([prep(in0_nchw), prep(in1_nchw)], axis=0)
    feats = vgg16_features(x_all, params)

    val = jnp.zeros((n, 1), jnp.float32)
    for f, w in zip(feats, params["lin_w"]):
        b2, fh, fw, c = f.shape
        fr = f.reshape(b2, fh * fw, c)
        val = val + pallas_lpips_slice(fr[:n], fr[n:], w)
    return val.reshape(n, 1, 1, 1)                       # matches LPIPS (N,1,1,1)


# ----------------------------------------------------------------------------
# LPIPS_loss_2.forward (metric='mse')
# ----------------------------------------------------------------------------

def lpips_loss_2_forward(reconstructions, inputs, params,
                         perceptual_weight=1.0, perceptual_weight_d=1.0):
    inputs_t, reconstructions_t = padding_and_trimming(inputs, reconstructions)
    lp = lpips(inputs_t, reconstructions_t, params)          # (N,1,1,1)
    n = lp.shape[0]
    p_loss, p_loss_d = lp[: n // 2], lp[n // 2:]             # .chunk(2) over batch
    rec_loss = pallas_mse(reconstructions_t, inputs_t)       # nn.MSELoss (mean)
    # TODO(synk): `compressed` is undefined in the reference forward (NameError in
    # the original PyTorch too); reuse rec_loss so rec_loss_d is well-defined.
    rec_loss_d = rec_loss
    percptual_loss = rec_loss.mean() + perceptual_weight * p_loss.mean()
    percptual_loss_d = rec_loss_d.mean() + perceptual_weight_d * p_loss_d.mean()
    return rec_loss, p_loss, p_loss_d, percptual_loss, percptual_loss_d


if __name__ == "__main__":
    random.seed(0)                                  # deterministic crop offsets
    key = jax.random.PRNGKey(0)
    k_in, k_noise, k_params = jax.random.split(key, 3)

    N, C, H, W = 2, 3, 16, 16                       # batch must be even for chunk(2)
    inputs = jax.random.uniform(k_in, (N, C, H, W), jnp.float32) * 2.0 - 1.0
    reconstructions = inputs + 0.05 * jax.random.normal(k_noise, (N, C, H, W),
                                                        jnp.float32)

    params = init_params(k_params)

    outs = lpips_loss_2_forward(reconstructions, inputs, params)
    outs = jax.block_until_ready(outs)

    print("KERNEL_OK")
</pallas_src>

<mosaic_0001>
module attributes {stable_mosaic.version = 11 : i64} {
  func.func @kernel(%arg0: i32, %arg1: memref<12x46x46xf32, #tpu.memory_space<vmem>>, %arg2: memref<46x16xf32, #tpu.memory_space<vmem>>, %arg3: memref<16x46xf32, #tpu.memory_space<vmem>>, %arg4: memref<12x16x16xf32, #tpu.memory_space<vmem>>) attributes {dimension_semantics = [#tpu.dimension_semantics<parallel>], iteration_bounds = array<i64: 1>, scalar_prefetch = 0 : i64, scratch_operands = 0 : i64, tpu.core_type = #tpu.core_type<tc>, window_params = [{transform_indices = @transform_0, window_bounds = array<i64: 12, 46, 46>}, {pipeline_mode = #tpu.pipeline_mode<synchronous>, transform_indices = @transform_1, window_bounds = array<i64: 46, 16>}, {pipeline_mode = #tpu.pipeline_mode<synchronous>, transform_indices = @transform_2, window_bounds = array<i64: 16, 46>}, {transform_indices = @transform_3, window_bounds = array<i64: 12, 16, 16>}]} {
    %c0 = arith.constant 0 : index
    %c0_0 = arith.constant 0 : index
    %c0_1 = arith.constant 0 : index
    %0 = vector.load %arg1[%c0, %c0_0, %c0_1] : memref<12x46x46xf32, #tpu.memory_space<vmem>>, vector<12x46x46xf32>
    %1 = vector.shape_cast %0 : vector<12x46x46xf32> to vector<552x46xf32>
    %c0_2 = arith.constant 0 : index
    %c0_3 = arith.constant 0 : index
    %2 = vector.load %arg2[%c0_2, %c0_3] : memref<46x16xf32, #tpu.memory_space<vmem>>, vector<46x16xf32>
    %cst = arith.constant dense<0.000000e+00> : vector<552x16xf32>
    %3 = tpu.matmul %1, %2, %cst {dimension_numbers = #tpu.dot_dimension_numbers<[1], [0], [0], [1], [0, 0, 1, 1], [], []>} : vector<552x46xf32>, vector<46x16xf32>, vector<552x16xf32> -> vector<552x16xf32>
    %4 = vector.shape_cast %3 : vector<552x16xf32> to vector<12x46x16xf32>
    %c0_4 = arith.constant 0 : index
    %c0_5 = arith.constant 0 : index
    %5 = vector.load %arg3[%c0_4, %c0_5] : memref<16x46xf32, #tpu.memory_space<vmem>>, vector<16x46xf32>
    %6 = vector.extract_strided_slice %4 {offsets = [0, 0, 0], sizes = [1, 46, 16], strides = [1, 1, 1]} : vector<12x46x16xf32> to vector<1x46x16xf32>
    %7 = vector.shape_cast %6 : vector<1x46x16xf32> to vector<46x16xf32>
    %cst_6 = arith.constant dense<0.000000e+00> : vector<16x16xf32>
    %8 = tpu.matmul %5, %7, %cst_6 {dimension_numbers = #tpu.dot_dimension_numbers<[1], [0], [0], [1], [0, 0, 1, 1], [], []>} : vector<16x46xf32>, vector<46x16xf32>, vector<16x16xf32> -> vector<16x16xf32>
    %c0_7 = arith.constant 0 : index
    %c0_8 = arith.constant 0 : index
    %c0_9 = arith.constant 0 : index
    %9 = vector.load %arg4[%c0_7, %c0_8, %c0_9] : memref<12x16x16xf32, #tpu.memory_space<vmem>>, vector<1x16x16xf32>
    %10 = vector.shape_cast %9 : vector<1x16x16xf32> to vector<16x16xf32>
    %11 = vector.shape_cast %8 : vector<16x16xf32> to vector<1x16x16xf32>
    tpu.vector_store %arg4[%c0_7, %c0_8, %c0_9], %11 {strides = array<i32>} : memref<12x16x16xf32, #tpu.memory_space<vmem>>, vector<1x16x16xf32>,
    %c0_10 = arith.constant 0 : index
    %c0_11 = arith.constant 0 : index
    %12 = vector.load %arg3[%c0_10, %c0_11] : memref<16x46xf32, #tpu.memory_space<vmem>>, vector<16x46xf32>
    %13 = vector.extract_strided_slice %4 {offsets = [1, 0, 0], sizes = [1, 46, 16], strides = [1, 1, 1]} : vector<12x46x16xf32> to vector<1x46x16xf32>
    %14 = vector.shape_cast %13 : vector<1x46x16xf32> to vector<46x16xf32>
    %cst_12 = arith.constant dense<0.000000e+00> : vector<16x16xf32>
    %15 = tpu.matmul %12, %14, %cst_12 {dimension_numbers = #tpu.dot_dimension_numbers<[1], [0], [0], [1], [0, 0, 1, 1], [], []>} : vector<16x46xf32>, vector<46x16xf32>, vector<16x16xf32> -> vector<16x16xf32>
    %c1 = arith.constant 1 : index
    %c0_13 = arith.constant 0 : index
    %c0_14 = arith.constant 0 : index
    %16 = vector.load %arg4[%c1, %c0_13, %c0_14] : memref<12x16x16xf32, #tpu.memory_space<vmem>>, vector<1x16x16xf32>
    %17 = vector.shape_cast %16 : vector<1x16x16xf32> to vector<16x16xf32>
    %18 = vector.shape_cast %15 : vector<16x16xf32> to vector<1x16x16xf32>
    tpu.vector_store %arg4[%c1, %c0_13, %c0_14], %18 {strides = array<i32>} : memref<12x16x16xf32, #tpu.memory_space<vmem>>, vector<1x16x16xf32>,
    %c0_15 = arith.constant 0 : index
    %c0_16 = arith.constant 0 : index
    %19 = vector.load %arg3[%c0_15, %c0_16] : memref<16x46xf32, #tpu.memory_space<vmem>>, vector<16x46xf32>
    %20 = vector.extract_strided_slice %4 {offsets = [2, 0, 0], sizes = [1, 46, 16], strides = [1, 1, 1]} : vector<12x46x16xf32> to vector<1x46x16xf32>
    %21 = vector.shape_cast %20 : vector<1x46x16xf32> to vector<46x16xf32>
    %cst_17 = arith.constant dense<0.000000e+00> : vector<16x16xf32>
    %22 = tpu.matmul %19, %21, %cst_17 {dimension_numbers = #tpu.dot_dimension_numbers<[1], [0], [0], [1], [0, 0, 1, 1], [], []>} : vector<16x46xf32>, vector<46x16xf32>, vector<16x16xf32> -> vector<16x16xf32>
    %c2 = arith.constant 2 : index
    %c0_18 = arith.constant 0 : index
    %c0_19 = arith.constant 0 : index
    %23 = vector.load %arg4[%c2, %c0_18, %c0_19] : memref<12x16x16xf32, #tpu.memory_space<vmem>>, vector<1x16x16xf32>
    %24 = vector.shape_cast %23 : vector<1x16x16xf32> to vector<16x16xf32>
    %25 = vector.shape_cast %22 : vector<16x16xf32> to vector<1x16x16xf32>
    tpu.vector_store %arg4[%c2, %c0_18, %c0_19], %25 {strides = array<i32>} : memref<12x16x16xf32, #tpu.memory_space<vmem>>, vector<1x16x16xf32>,
    %c0_20 = arith.constant 0 : index
    %c0_21 = arith.constant 0 : index
    %26 = vector.load %arg3[%c0_20, %c0_21] : memref<16x46xf32, #tpu.memory_space<vmem>>, vector<16x46xf32>
    %27 = vector.extract_strided_slice %4 {offsets = [3, 0, 0], sizes = [1, 46, 16], strides = [1, 1, 1]} : vector<12x46x16xf32> to vector<1x46x16xf32>
    %28 = vector.shape_cast %27 : vector<1x46x16xf32> to vector<46x16xf32>
    %cst_22 = arith.constant dense<0.000000e+00> : vector<16x16xf32>
    %29 = tpu.matmul %26, %28, %cst_22 {dimension_numbers = #tpu.dot_dimension_numbers<[1], [0], [0], [1], [0, 0, 1, 1], [], []>} : vector<16x46xf32>, vector<46x16xf32>, vector<16x16xf32> -> vector<16x16xf32>
    %c3 = arith.constant 3 : index
    %c0_23 = arith.constant 0 : index
    %c0_24 = arith.constant 0 : index
    %30 = vector.load %arg4[%c3, %c0_23, %c0_24] : memref<12x16x16xf32, #tpu.memory_space<vmem>>, vector<1x16x16xf32>
    %31 = vector.shape_cast %30 : vector<1x16x16xf32> to vector<16x16xf32>
    %32 = vector.shape_cast %29 : vector<16x16xf32> to vector<1x16x16xf32>
    tpu.vector_store %arg4[%c3, %c0_23, %c0_24], %32 {strides = array<i32>} : memref<12x16x16xf32, #tpu.memory_space<vmem>>, vector<1x16x16xf32>,
    %c0_25 = arith.constant 0 : index
    %c0_26 = arith.constant 0 : index
    %33 = vector.load %arg3[%c0_25, %c0_26] : memref<16x46xf32, #tpu.memory_space<vmem>>, vector<16x46xf32>
    %34 = vector.extract_strided_slice %4 {offsets = [4, 0, 0], sizes = [1, 46, 16], strides = [1, 1, 1]} : vector<12x46x16xf32> to vector<1x46x16xf32>
    %35 = vector.shape_cast %34 : vector<1x46x16xf32> to vector<46x16xf32>
    %cst_27 = arith.constant dense<0.000000e+00> : vector<16x16xf32>
    %36 = tpu.matmul %33, %35, %cst_27 {dimension_numbers = #tpu.dot_dimension_numbers<[1], [0], [0], [1], [0, 0, 1, 1], [], []>} : vector<16x46xf32>, vector<46x16xf32>, vector<16x16xf32> -> vector<16x16xf32>
    %c4 = arith.constant 4 : index
    %c0_28 = arith.constant 0 : index
    %c0_29 = arith.constant 0 : index
    %37 = vector.load %arg4[%c4, %c0_28, %c0_29] : memref<12x16x16xf32, #tpu.memory_space<vmem>>, vector<1x16x16xf32>
    %38 = vector.shape_cast %37 : vector<1x16x16xf32> to vector<16x16xf32>
    %39 = vector.shape_cast %36 : vector<16x16xf32> to vector<1x16x16xf32>
    tpu.vector_store %arg4[%c4, %c0_28, %c0_29], %39 {strides = array<i32>} : memref<12x16x16xf32, #tpu.memory_space<vmem>>, vector<1x16x16xf32>,
    %c0_30 = arith.constant 0 : index
    %c0_31 = arith.constant 0 : index
    %40 = vector.load %arg3[%c0_30, %c0_31] : memref<16x46xf32, #tpu.memory_space<vmem>>, vector<16x46xf32>
    %41 = vector.extract_strided_slice %4 {offsets = [5, 0, 0], sizes = [1, 46, 16], strides = [1, 1, 1]} : vector<12x46x16xf32> to vector<1x46x16xf32>
    %42 = vector.shape_cast %41 : vector<1x46x16xf32> to vector<46x16xf32>
    %cst_32 = arith.constant dense<0.000000e+00> : vector<16x16xf32>
    %43 = tpu.matmul %40, %42, %cst_32 {dimension_numbers = #tpu.dot_dimension_numbers<[1], [0], [0], [1], [0, 0, 1, 1], [], []>} : vector<16x46xf32>, vector<46x16xf32>, vector<16x16xf32> -> vector<16x16xf32>
    %c5 = arith.constant 5 : index
    %c0_33 = arith.constant 0 : index
    %c0_34 = arith.constant 0 : index
    %44 = vector.load %arg4[%c5, %c0_33, %c0_34] : memref<12x16x16xf32, #tpu.memory_space<vmem>>, vector<1x16x16xf32>
    %45 = vector.shape_cast %44 : vector<1x16x16xf32> to vector<16x16xf32>
    %46 = vector.shape_cast %43 : vector<16x16xf32> to vector<1x16x16xf32>
    tpu.vector_store %arg4[%c5, %c0_33, %c0_34], %46 {strides = array<i32>} : memref<12x16x16xf32, #tpu.memory_space<vmem>>, vector<1x16x16xf32>,
    %c0_35 = arith.constant 0 : index
    %c0_36 = arith.constant 0 : index
    %47 = vector.load %arg3[%c0_35, %c0_36] : memref<16x46xf32, #tpu.memory_space<vmem>>, vector<16x46xf32>
    %48 = vector.extract_strided_slice %4 {offsets = [6, 0, 0], sizes = [1, 46, 16], strides = [1, 1, 1]} : vector<12x46x16xf32> to vector<1x46x16xf32>
    %49 = vector.shape_cast %48 : vector<1x46x16xf32> to vector<46x16xf32>
    %cst_37 = arith.constant dense<0.000000e+00> : vector<16x16xf32>
    %50 = tpu.matmul %47, %49, %cst_37 {dimension_numbers = #tpu.dot_dimension_numbers<[1], [0], [0], [1], [0, 0, 1, 1], [], []>} : vector<16x46xf32>, vector<46x16xf32>, vector<16x16xf32> -> vector<16x16xf32>
    %c6 = arith.constant 6 : index
    %c0_38 = arith.constant 0 : index
    %c0_39 = arith.constant 0 : index
    %51 = vector.load %arg4[%c6, %c0_38, %c0_39] : memref<12x16x16xf32, #tpu.memory_space<vmem>>, vector<1x16x16xf32>
    %52 = vector.shape_cast %51 : vector<1x16x16xf32> to vector<16x16xf32>
    %53 = vector.shape_cast %50 : vector<16x16xf32> to vector<1x16x16xf32>
    tpu.vector_store %arg4[%c6, %c0_38, %c0_39], %53 {strides = array<i32>} : memref<12x16x16xf32, #tpu.memory_space<vmem>>, vector<1x16x16xf32>,
    %c0_40 = arith.constant 0 : index
    %c0_41 = arith.constant 0 : index
    %54 = vector.load %arg3[%c0_40, %c0_41] : memref<16x46xf32, #tpu.memory_space<vmem>>, vector<16x46xf32>
    %55 = vector.extract_strided_slice %4 {offsets = [7, 0, 0], sizes = [1, 46, 16], strides = [1, 1, 1]} : vector<12x46x16xf32> to vector<1x46x16xf32>
    %56 = vector.shape_cast %55 : vector<1x46x16xf32> to vector<46x16xf32>
    %cst_42 = arith.constant dense<0.000000e+00> : vector<16x16xf32>
    %57 = tpu.matmul %54, %56, %cst_42 {dimension_numbers = #tpu.dot_dimension_numbers<[1], [0], [0], [1], [0, 0, 1, 1], [], []>} : vector<16x46xf32>, vector<46x16xf32>, vector<16x16xf32> -> vector<16x16xf32>
    %c7 = arith.constant 7 : index
    %c0_43 = arith.constant 0 : index
    %c0_44 = arith.constant 0 : index
    %58 = vector.load %arg4[%c7, %c0_43, %c0_44] : memref<12x16x16xf32, #tpu.memory_space<vmem>>, vector<1x16x16xf32>
    %59 = vector.shape_cast %58 : vector<1x16x16xf32> to vector<16x16xf32>
    %60 = vector.shape_cast %57 : vector<16x16xf32> to vector<1x16x16xf32>
    tpu.vector_store %arg4[%c7, %c0_43, %c0_44], %60 {strides = array<i32>} : memref<12x16x16xf32, #tpu.memory_space<vmem>>, vector<1x16x16xf32>,
    %c0_45 = arith.constant 0 : index
    %c0_46 = arith.constant 0 : index
    %61 = vector.load %arg3[%c0_45, %c0_46] : memref<16x46xf32, #tpu.memory_space<vmem>>, vector<16x46xf32>
    %62 = vector.extract_strided_slice %4 {offsets = [8, 0, 0], sizes = [1, 46, 16], strides = [1, 1, 1]} : vector<12x46x16xf32> to vector<1x46x16xf32>
    %63 = vector.shape_cast %62 : vector<1x46x16xf32> to vector<46x16xf32>
    %cst_47 = arith.constant dense<0.000000e+00> : vector<16x16xf32>
    %64 = tpu.matmul %61, %63, %cst_47 {dimension_numbers = #tpu.dot_dimension_numbers<[1], [0], [0], [1], [0, 0, 1, 1], [], []>} : vector<16x46xf32>, vector<46x16xf32>, vector<16x16xf32> -> vector<16x16xf32>
    %c8 = arith.constant 8 : index
    %c0_48 = arith.constant 0 : index
    %c0_49 = arith.constant 0 : index
    %65 = vector.load %arg4[%c8, %c0_48, %c0_49] : memref<12x16x16xf32, #tpu.memory_space<vmem>>, vector<1x16x16xf32>
    %66 = vector.shape_cast %65 : vector<1x16x16xf32> to vector<16x16xf32>
    %67 = vector.shape_cast %64 : vector<16x16xf32> to vector<1x16x16xf32>
    tpu.vector_store %arg4[%c8, %c0_48, %c0_49], %67 {strides = array<i32>} : memref<12x16x16xf32, #tpu.memory_space<vmem>>, vector<1x16x16xf32>,
    %c0_50 = arith.constant 0 : index
    %c0_51 = arith.constant 0 : index
    %68 = vector.load %arg3[%c0_50, %c0_51] : memref<16x46xf32, #tpu.memory_space<vmem>>, vector<16x46xf32>
    %69 = vector.extract_strided_slice %4 {offsets = [9, 0, 0], sizes = [1, 46, 16], strides = [1, 1, 1]} : vector<12x46x16xf32> to vector<1x46x16xf32>
    %70 = vector.shape_cast %69 : vector<1x46x16xf32> to vector<46x16xf32>
    %cst_52 = arith.constant dense<0.000000e+00> : vector<16x16xf32>
    %71 = tpu.matmul %68, %70, %cst_52 {dimension_numbers = #tpu.dot_dimension_numbers<[1], [0], [0], [1], [0, 0, 1, 1], [], []>} : vector<16x46xf32>, vector<46x16xf32>, vector<16x16xf32> -> vector<16x16xf32>
    %c9 = arith.constant 9 : index
    %c0_53 = arith.constant 0 : index
    %c0_54 = arith.constant 0 : index
    %72 = vector.load %arg4[%c9, %c0_53, %c0_54] : memref<12x16x16xf32, #tpu.memory_space<vmem>>, vector<1x16x16xf32>
    %73 = vector.shape_cast %72 : vector<1x16x16xf32> to vector<16x16xf32>
    %74 = vector.shape_cast %71 : vector<16x16xf32> to vector<1x16x16xf32>
    tpu.vector_store %arg4[%c9, %c0_53, %c0_54], %74 {strides = array<i32>} : memref<12x16x16xf32, #tpu.memory_space<vmem>>, vector<1x16x16xf32>,
    %c0_55 = arith.constant 0 : index
    %c0_56 = arith.constant 0 : index
    %75 = vector.load %arg3[%c0_55, %c0_56] : memref<16x46xf32, #tpu.memory_space<vmem>>, vector<16x46xf32>
    %76 = vector.extract_strided_slice %4 {offsets = [10, 0, 0], sizes = [1, 46, 16], strides = [1, 1, 1]} : vector<12x46x16xf32> to vector<1x46x16xf32>
    %77 = vector.shape_cast %76 : vector<1x46x16xf32> to vector<46x16xf32>
    %cst_57 = arith.constant dense<0.000000e+00> : vector<16x16xf32>
    %78 = tpu.matmul %75, %77, %cst_57 {dimension_numbers = #tpu.dot_dimension_numbers<[1], [0], [0], [1], [0, 0, 1, 1], [], []>} : vector<16x46xf32>, vector<46x16xf32>, vector<16x16xf32> -> vector<16x16xf32>
    %c10 = arith.constant 10 : index
    %c0_58 = arith.constant 0 : index
    %c0_59 = arith.constant 0 : index
    %79 = vector.load %arg4[%c10, %c0_58, %c0_59] : memref<12x16x16xf32, #tpu.memory_space<vmem>>, vector<1x16x16xf32>
    %80 = vector.shape_cast %79 : vector<1x16x16xf32> to vector<16x16xf32>
    %81 = vector.shape_cast %78 : vector<16x16xf32> to vector<1x16x16xf32>
    tpu.vector_store %arg4[%c10, %c0_58, %c0_59], %81 {strides = array<i32>} : memref<12x16x16xf32, #tpu.memory_space<vmem>>, vector<1x16x16xf32>,
    %c0_60 = arith.constant 0 : index
    %c0_61 = arith.constant 0 : index
    %82 = vector.load %arg3[%c0_60, %c0_61] : memref<16x46xf32, #tpu.memory_space<vmem>>, vector<16x46xf32>
    %83 = vector.extract_strided_slice %4 {offsets = [11, 0, 0], sizes = [1, 46, 16], strides = [1, 1, 1]} : vector<12x46x16xf32> to vector<1x46x16xf32>
    %84 = vector.shape_cast %83 : vector<1x46x16xf32> to vector<46x16xf32>
    %cst_62 = arith.constant dense<0.000000e+00> : vector<16x16xf32>
    %85 = tpu.matmul %82, %84, %cst_62 {dimension_numbers = #tpu.dot_dimension_numbers<[1], [0], [0], [1], [0, 0, 1, 1], [], []>} : vector<16x46xf32>, vector<46x16xf32>, vector<16x16xf32> -> vector<16x16xf32>
    %c11 = arith.constant 11 : index
    %c0_63 = arith.constant 0 : index
    %c0_64 = arith.constant 0 : index
    %86 = vector.load %arg4[%c11, %c0_63, %c0_64] : memref<12x16x16xf32, #tpu.memory_space<vmem>>, vector<1x16x16xf32>
    %87 = vector.shape_cast %86 : vector<1x16x16xf32> to vector<16x16xf32>
    %88 = vector.shape_cast %85 : vector<16x16xf32> to vector<1x16x16xf32>
    tpu.vector_store %arg4[%c11, %c0_63, %c0_64], %88 {strides = array<i32>} : memref<12x16x16xf32, #tpu.memory_space<vmem>>, vector<1x16x16xf32>,
    return
  }
  func.func @transform_0(%arg0: i32) -> (i32, i32, i32) {
    %c0_i32 = arith.constant 0 : i32
    %c0_i32_0 = arith.constant 0 : i32
    %c0_i32_1 = arith.constant 0 : i32
    return %arg0, %c0_i32, %c0_i32_0 : i32, i32, i32
  }
  func.func @transform_1(%arg0: i32) -> (i32, i32) {
    %c0_i32 = arith.constant 0 : i32
    %c0_i32_0 = arith.constant 0 : i32
    %c0_i32_1 = arith.constant 0 : i32
    return %c0_i32, %c0_i32_0 : i32, i32
  }
  func.func @transform_2(%arg0: i32) -> (i32, i32) {
    %c0_i32 = arith.constant 0 : i32
    %c0_i32_0 = arith.constant 0 : i32
    %c0_i32_1 = arith.constant 0 : i32
    return %c0_i32, %c0_i32_0 : i32, i32
  }
  func.func @transform_3(%arg0: i32) -> (i32, i32, i32) {
    %c0_i32 = arith.constant 0 : i32
    %c0_i32_0 = arith.constant 0 : i32
    %c0_i32_1 = arith.constant 0 : i32
    return %arg0, %c0_i32, %c0_i32_0 : i32, i32, i32
  }
}

</mosaic_0001>

<llo_original>
// kernel: tpu_custom_call.1
$region0: #{tpu_custom_call.1}
  #allocation0 [shape = 'u32[]', space=smem, size = 0x4, offset = 0x4, fixed_abs, tag = 'smem constant byte address 0x4 - core index']
  #allocation1 [shape = 'u32[144,128]{1,0:T(1,128)}', space=vmem, size = 0x12000, scoped, tag = 'internal scratch']
  %s0 = inlined_call_operand.hbm [shape: f32[12,46,46], index: 0, kind: input, shape index: {}]
  %s1 = inlined_call_operand.vmem [shape: f32[46,16], index: 1, kind: input, shape index: {}]
  %s2 = inlined_call_operand.vmem [shape: f32[16,46], index: 2, kind: input, shape index: {}]
  %s3 = inlined_call_operand.hbm [shape: f32[12,16,16], index: 3, kind: output, shape index: {}]
  %s4 = sld [smem:[#allocation0]]
  $region26: #{tpu_custom_call.1} parent=0
    _
  %s6 = ssub.s32 1, %s4
  %s7 = scalar_select 0, %s6, %s4
  $region1: #{tpu_custom_call.1} parent=0
    #allocation2 [shape = 'u8[294912]{0}', space=vmem, size = 0x48000, scoped, tag = 'input window, operand 0, single buffered']
    #allocation3 [shape = 's32[1]{0}', space=sflag, size = 0x4, scoped, tag = 'scoped memory for tpu_custom_call.1']
    #allocation4 [shape = 's32[1]{0}', space=sflag, size = 0x4, scoped, tag = 'scoped memory for tpu_custom_call.1']
    #allocation5 [shape = 'u8[98304]{0}', space=vmem, size = 0x18000, scoped, tag = 'output window, operand 0, single buffered']
    %8 = vsyncpa [#allocation3], 0
    %9 = vsyncpa [#allocation4], 0
    // Predicated region
    $region2: #{tpu_custom_call.1} parent=1 // pred_check
      _
    $region3: #{tpu_custom_call.1} parent=1 // pred_check_branch
      %11 = sbr.rel (0) target = $region5
    $region4: #{tpu_custom_call.1} parent=1 // pred_region
      %s13 = ssub.s32 9216, 9216
      %14 = vsyncadd [#allocation3], %s13
      %s15 = sshll.u32 [#allocation2], 4
      %s16 = int_to_ptr.vmem [resolvable:$true] %s15
      %21 = dma.hbm_to_vmem [thread:$0]  %s0, 9216, %s16, [#allocation3], 128, 128, 8
    $region5: #{tpu_custom_call.1} parent=1 // pred_fallthru
      _
    // Predicated region
    $region6: #{tpu_custom_call.1} parent=1 // pred_check
      _
    $region7: #{tpu_custom_call.1} parent=1 // pred_check_branch
      %23 = sbr.rel (0) target = $region9
    $region8: #{tpu_custom_call.1} parent=1 // pred_region
      _
    $region9: #{tpu_custom_call.1} parent=1 // pred_fallthru
      _
    // Predicated region
    $region10: #{tpu_custom_call.1} parent=1 // pred_check
      _
    $region11: #{tpu_custom_call.1} parent=1 // pred_check_branch
      %25 = sbr.rel (0) target = $region13
    $region12: #{tpu_custom_call.1} parent=1 // pred_region
      _
    $region13: #{tpu_custom_call.1} parent=1 // pred_fallthru
      _
    // Predicated region
    $region14: #{tpu_custom_call.1} parent=1 // pred_check
      _
    $region15: #{tpu_custom_call.1} parent=1 // pred_check_branch
      %27 = sbr.rel (0) target = $region17
    $region16: #{tpu_custom_call.1} parent=1 // pred_region
      %28 = dma.done [#allocation3], 9216
    $region17: #{tpu_custom_call.1} parent=1 // pred_fallthru
      _
    %v29 = vld [vmem:[#allocation2] sm:$0xff]
    %v30 = vld [vmem:[#allocation2 + $0x8] sm:$0xff]
    %v31 = vld [vmem:[#allocation2 + $0x10] sm:$0xff]
    %v32 = vld [vmem:[#allocation2 + $0x18] sm:$0xff]
    %v33 = vld [vmem:[#allocation2 + $0x20] sm:$0xff]
    %v34 = vld [vmem:[#allocation2 + $0x28] sm:$0x3f]
    %v35 = vld [vmem:[#allocation2 + $0x30] sm:$0xff]
    %v36 = vld [vmem:[#allocation2 + $0x38] sm:$0xff]
    %v37 = vld [vmem:[#allocation2 + $0x40] sm:$0xff]
    %v38 = vld [vmem:[#allocation2 + $0x48] sm:$0xff]
    %v39 = vld [vmem:[#allocation2 + $0x50] sm:$0xff]
    %v40 = vld [vmem:[#allocation2 + $0x58] sm:$0x3f]
    %v41 = vld [vmem:[#allocation2 + $0x60] sm:$0xff]
    %v42 = vld [vmem:[#allocation2 + $0x68] sm:$0xff]
    %v43 = vld [vmem:[#allocation2 + $0x70] sm:$0xff]
    %v44 = vld [vmem:[#allocation2 + $0x78] sm:$0xff]
    %v45 = vld [vmem:[#allocation2 + $0x80] sm:$0xff]
    %v46 = vld [vmem:[#allocation2 + $0x88] sm:$0x3f]
    %v47 = vld [vmem:[#allocation2 + $0x90] sm:$0xff]
    %v48 = vld [vmem:[#allocation2 + $0x98] sm:$0xff]
    %v49 = vld [vmem:[#allocation2 + $0xa0] sm:$0xff]
    %v50 = vld [vmem:[#allocation2 + $0xa8] sm:$0xff]
    %v51 = vld [vmem:[#allocation2 + $0xb0] sm:$0xff]
    %v52 = vld [vmem:[#allocation2 + $0xb8] sm:$0x3f]
    %v53 = vld [vmem:[#allocation2 + $0xc0] sm:$0xff]
    %v54 = vld [vmem:[#allocation2 + $0xc8] sm:$0xff]
    %v55 = vld [vmem:[#allocation2 + $0xd0] sm:$0xff]
    %v56 = vld [vmem:[#allocation2 + $0xd8] sm:$0xff]
    %v57 = vld [vmem:[#allocation2 + $0xe0] sm:$0xff]
    %v58 = vld [vmem:[#allocation2 + $0xe8] sm:$0x3f]
    %v59 = vld [vmem:[#allocation2 + $0xf0] sm:$0xff]
    %v60 = vld [vmem:[#allocation2 + $0xf8] sm:$0xff]
    %v61 = vld [vmem:[#allocation2 + $0x100] sm:$0xff]
    %v62 = vld [vmem:[#allocation2 + $0x108] sm:$0xff]
    %v63 = vld [vmem:[#allocation2 + $0x110] sm:$0xff]
    %v64 = vld [vmem:[#allocation2 + $0x118] sm:$0x3f]
    %v65 = vld [vmem:[#allocation2 + $0x120] sm:$0xff]
    %v66 = vld [vmem:[#allocation2 + $0x128] sm:$0xff]
    %v67 = vld [vmem:[#allocation2 + $0x130] sm:$0xff]
    %v68 = vld [vmem:[#allocation2 + $0x138] sm:$0xff]
    %v69 = vld [vmem:[#allocation2 + $0x140] sm:$0xff]
    %v70 = vld [vmem:[#allocation2 + $0x148] sm:$0x3f]
    %v71 = vld [vmem:[#allocation2 + $0x150] sm:$0xff]
    %v72 = vld [vmem:[#allocation2 + $0x158] sm:$0xff]
    %v73 = vld [vmem:[#allocation2 + $0x160] sm:$0xff]
    %v74 = vld [vmem:[#allocation2 + $0x168] sm:$0xff]
    %v75 = vld [vmem:[#allocation2 + $0x170] sm:$0xff]
    %v76 = vld [vmem:[#allocation2 + $0x178] sm:$0x3f]
    %v77 = vld [vmem:[#allocation2 + $0x180] sm:$0xff]
    %v78 = vld [vmem:[#allocation2 + $0x188] sm:$0xff]
    %v79 = vld [vmem:[#allocation2 + $0x190] sm:$0xff]
    %v80 = vld [vmem:[#allocation2 + $0x198] sm:$0xff]
    %v81 = vld [vmem:[#allocation2 + $0x1a0] sm:$0xff]
    %v82 = vld [vmem:[#allocation2 + $0x1a8] sm:$0x3f]
    %v83 = vld [vmem:[#allocation2 + $0x1b0] sm:$0xff]
    %v84 = vld [vmem:[#allocation2 + $0x1b8] sm:$0xff]
    %v85 = vld [vmem:[#allocation2 + $0x1c0] sm:$0xff]
    %v86 = vld [vmem:[#allocation2 + $0x1c8] sm:$0xff]
    %v87 = vld [vmem:[#allocation2 + $0x1d0] sm:$0xff]
    %v88 = vld [vmem:[#allocation2 + $0x1d8] sm:$0x3f]
    %v89 = vld [vmem:[#allocation2 + $0x1e0] sm:$0xff]
    %v90 = vld [vmem:[#allocation2 + $0x1e8] sm:$0xff]
    %v91 = vld [vmem:[#allocation2 + $0x1f0] sm:$0xff]
    %v92 = vld [vmem:[#allocation2 + $0x1f8] sm:$0xff]
    %v93 = vld [vmem:[#allocation2 + $0x200] sm:$0xff]
    %v94 = vld [vmem:[#allocation2 + $0x208] sm:$0x3f]
    %v95 = vld [vmem:[#allocation2 + $0x210] sm:$0xff]
    %v96 = vld [vmem:[#allocation2 + $0x218] sm:$0xff]
    %v97 = vld [vmem:[#allocation2 + $0x220] sm:$0xff]
    %v98 = vld [vmem:[#allocation2 + $0x228] sm:$0xff]
    %v99 = vld [vmem:[#allocation2 + $0x230] sm:$0xff]
    %v100 = vld [vmem:[#allocation2 + $0x238] sm:$0x3f]
    %v173 = vcombine.high %v29, %v29
    %v175 = vunpack.c.l.s4 1983009808
    %v176 = vunpack.c.0.s8 %v175
    %v177 = vlaneseq
    %v178 = vshrl.u32 %v177, 7
    %v179 = vsub.s32 %v176, %v178
    %v180 = vrot.slane %v29, %v179
    %v182 = vunpack.c.l.s4 1983009808
    %v183 = vunpack.c.0.s8 %v182
    %v184 = vlaneseq
    %v185 = vshrl.u32 %v184, 7
    %v186 = vsub.s32 %v183, %v185
    %v187 = vrot.slane %v173, %v186
    %v188 = vcombine.high %v180, %v180
    %v189 = vcombine.high %v187, %v187
    %v190 = vcombine.high %v30, %v30
    %v192 = vunpack.c.l.s4 1983009808
    %v193 = vunpack.c.0.s8 %v192
    %v194 = vlaneseq
    %v195 = vshrl.u32 %v194, 7
    %v196 = vsub.s32 %v193, %v195
    %v197 = vrot.slane %v30, %v196
    %v199 = vunpack.c.l.s4 1983009808
    %v200 = vunpack.c.0.s8 %v199
    %v201 = vlaneseq
    %v202 = vshrl.u32 %v201, 7
    %v203 = vsub.s32 %v200, %v202
    %v204 = vrot.slane %v190, %v203
    %v205 = vcombine.high %v197, %v197
    %v206 = vcombine.high %v204, %v204
    %v207 = vcombine.high %v31, %v31
    %v209 = vunpack.c.l.s4 1983009808
    %v210 = vunpack.c.0.s8 %v209
    %v211 = vlaneseq
    %v212 = vshrl.u32 %v211, 7
    %v213 = vsub.s32 %v210, %v212
    %v214 = vrot.slane %v31, %v213
    %v216 = vunpack.c.l.s4 1983009808
    %v217 = vunpack.c.0.s8 %v216
    %v218 = vlaneseq
    %v219 = vshrl.u32 %v218, 7
    %v220 = vsub.s32 %v217, %v219
    %v221 = vrot.slane %v207, %v220
    %v222 = vcombine.high %v214, %v214
    %v223 = vcombine.high %v221, %v221
    %v224 = vcombine.high %v32, %v32
    %v226 = vunpack.c.l.s4 1983009808
    %v227 = vunpack.c.0.s8 %v226
    %v228 = vlaneseq
    %v229 = vshrl.u32 %v228, 7
    %v230 = vsub.s32 %v227, %v229
    %v231 = vrot.slane %v32, %v230
    %v233 = vunpack.c.l.s4 1983009808
    %v234 = vunpack.c.0.s8 %v233
    %v235 = vlaneseq
    %v236 = vshrl.u32 %v235, 7
    %v237 = vsub.s32 %v234, %v236
    %v238 = vrot.slane %v224, %v237
    %v239 = vcombine.high %v231, %v231
    %v240 = vcombine.high %v238, %v238
    %v241 = vcombine.high %v33, %v33
    %v243 = vunpack.c.l.s4 1983009808
    %v244 = vunpack.c.0.s8 %v243
    %v245 = vlaneseq
    %v246 = vshrl.u32 %v245, 7
    %v247 = vsub.s32 %v244, %v246
    %v248 = vrot.slane %v33, %v247
    %v250 = vunpack.c.l.s4 1983009808
    %v251 = vunpack.c.0.s8 %v250
    %v252 = vlaneseq
    %v253 = vshrl.u32 %v252, 7
    %v254 = vsub.s32 %v251, %v253
    %v255 = vrot.slane %v241, %v254
    %v256 = vcombine.high %v248, %v248
    %v257 = vcombine.high %v255, %v255
    %v258 = vcombine.high %v34, %v34
    %v260 = vunpack.c.l.s4 1983009808
    %v261 = vunpack.c.0.s8 %v260
    %v262 = vlaneseq
    %v263 = vshrl.u32 %v262, 7
    %v264 = vsub.s32 %v261, %v263
    %v265 = vrot.slane %v34, %v264
    %v267 = vunpack.c.l.s4 1983009808
    %v268 = vunpack.c.0.s8 %v267
    %v269 = vlaneseq
    %v270 = vshrl.u32 %v269, 7
    %v271 = vsub.s32 %v268, %v270
    %v272 = vrot.slane %v258, %v271
    %v273 = vcombine.high %v265, %v265
    %v274 = vcombine.high %v35, %v35
    %v276 = vunpack.c.l.s4 1983009808
    %v277 = vunpack.c.0.s8 %v276
    %v278 = vlaneseq
    %v279 = vshrl.u32 %v278, 7
    %v280 = vsub.s32 %v277, %v279
    %v281 = vrot.slane %v35, %v280
    %v283 = vunpack.c.l.s4 1983009808
    %v284 = vunpack.c.0.s8 %v283
    %v285 = vlaneseq
    %v286 = vshrl.u32 %v285, 7
    %v287 = vsub.s32 %v284, %v286
    %v288 = vrot.slane %v274, %v287
    %v289 = vcombine.high %v281, %v281
    %v290 = vcombine.high %v288, %v288
    %v291 = vcombine.high %v36, %v36
    %v293 = vunpack.c.l.s4 1983009808
    %v294 = vunpack.c.0.s8 %v293
    %v295 = vlaneseq
    %v296 = vshrl.u32 %v295, 7
    %v297 = vsub.s32 %v294, %v296
    %v298 = vrot.slane %v36, %v297
    %v300 = vunpack.c.l.s4 1983009808
    %v301 = vunpack.c.0.s8 %v300
    %v302 = vlaneseq
    %v303 = vshrl.u32 %v302, 7
    %v304 = vsub.s32 %v301, %v303
    %v305 = vrot.slane %v291, %v304
    %v306 = vcombine.high %v298, %v298
    %v307 = vcombine.high %v305, %v305
    %v308 = vcombine.high %v37, %v37
    %v310 = vunpack.c.l.s4 1983009808
    %v311 = vunpack.c.0.s8 %v310
    %v312 = vlaneseq
    %v313 = vshrl.u32 %v312, 7
    %v314 = vsub.s32 %v311, %v313
    %v315 = vrot.slane %v37, %v314
    %v317 = vunpack.c.l.s4 1983009808
    %v318 = vunpack.c.0.s8 %v317
    %v319 = vlaneseq
    %v320 = vshrl.u32 %v319, 7
    %v321 = vsub.s32 %v318, %v320
    %v322 = vrot.slane %v308, %v321
    %v323 = vcombine.high %v315, %v315
    %v324 = vcombine.high %v322, %v322
    %v325 = vcombine.high %v38, %v38
    %v327 = vunpack.c.l.s4 1983009808
    %v328 = vunpack.c.0.s8 %v327
    %v329 = vlaneseq
    %v330 = vshrl.u32 %v329, 7
    %v331 = vsub.s32 %v328, %v330
    %v332 = vrot.slane %v38, %v331
    %v334 = vunpack.c.l.s4 1983009808
    %v335 = vunpack.c.0.s8 %v334
    %v336 = vlaneseq
    %v337 = vshrl.u32 %v336, 7
    %v338 = vsub.s32 %v335, %v337
    %v339 = vrot.slane %v325, %v338
    %v340 = vcombine.high %v332, %v332
    %v341 = vcombine.high %v339, %v339
    %v342 = vcombine.high %v39, %v39
    %v344 = vunpack.c.l.s4 1983009808
    %v345 = vunpack.c.0.s8 %v344
    %v346 = vlaneseq
    %v347 = vshrl.u32 %v346, 7
    %v348 = vsub.s32 %v345, %v347
    %v349 = vrot.slane %v39, %v348
    %v351 = vunpack.c.l.s4 1983009808
    %v352 = vunpack.c.0.s8 %v351
    %v353 = vlaneseq
    %v354 = vshrl.u32 %v353, 7
    %v355 = vsub.s32 %v352, %v354
    %v356 = vrot.slane %v342, %v355
    %v357 = vcombine.high %v349, %v349
    %v358 = vcombine.high %v356, %v356
    %v359 = vcombine.high %v40, %v40
    %v361 = vunpack.c.l.s4 1983009808
    %v362 = vunpack.c.0.s8 %v361
    %v363 = vlaneseq
    %v364 = vshrl.u32 %v363, 7
    %v365 = vsub.s32 %v362, %v364
    %v366 = vrot.slane %v40, %v365
    %v368 = vunpack.c.l.s4 1983009808
    %v369 = vunpack.c.0.s8 %v368
    %v370 = vlaneseq
    %v371 = vshrl.u32 %v370, 7
    %v372 = vsub.s32 %v369, %v371
    %v373 = vrot.slane %v359, %v372
    %v374 = vcombine.high %v366, %v366
    %v375 = vcombine.high %v41, %v41
    %v377 = vunpack.c.l.s4 1983009808
    %v378 = vunpack.c.0.s8 %v377
    %v379 = vlaneseq
    %v380 = vshrl.u32 %v379, 7
    %v381 = vsub.s32 %v378, %v380
    %v382 = vrot.slane %v41, %v381
    %v384 = vunpack.c.l.s4 1983009808
    %v385 = vunpack.c.0.s8 %v384
    %v386 = vlaneseq
    %v387 = vshrl.u32 %v386, 7
    %v388 = vsub.s32 %v385, %v387
    %v389 = vrot.slane %v375, %v388
    %v390 = vcombine.high %v382, %v382
    %v391 = vcombine.high %v389, %v389
    %v392 = vcombine.high %v42, %v42
    %v394 = vunpack.c.l.s4 1983009808
    %v395 = vunpack.c.0.s8 %v394
    %v396 = vlaneseq
    %v397 = vshrl.u32 %v396, 7
    %v398 = vsub.s32 %v395, %v397
    %v399 = vrot.slane %v42, %v398
    %v401 = vunpack.c.l.s4 1983009808
    %v402 = vunpack.c.0.s8 %v401
    %v403 = vlaneseq
    %v404 = vshrl.u32 %v403, 7
    %v405 = vsub.s32 %v402, %v404
    %v406 = vrot.slane %v392, %v405
    %v407 = vcombine.high %v399, %v399
    %v408 = vcombine.high %v406, %v406
    %v409 = vcombine.high %v43, %v43
    %v411 = vunpack.c.l.s4 1983009808
    %v412 = vunpack.c.0.s8 %v411
    %v413 = vlaneseq
    %v414 = vshrl.u32 %v413, 7
    %v415 = vsub.s32 %v412, %v414
    %v416 = vrot.slane %v43, %v415
    %v418 = vunpack.c.l.s4 1983009808
    %v419 = vunpack.c.0.s8 %v418
    %v420 = vlaneseq
    %v421 = vshrl.u32 %v420, 7
    %v422 = vsub.s32 %v419, %v421
    %v423 = vrot.slane %v409, %v422
    %v424 = vcombine.high %v416, %v416
    %v425 = vcombine.high %v423, %v423
    %v426 = vcombine.high %v44, %v44
    %v428 = vunpack.c.l.s4 1983009808
    %v429 = vunpack.c.0.s8 %v428
    %v430 = vlaneseq
    %v431 = vshrl.u32 %v430, 7
    %v432 = vsub.s32 %v429, %v431
    %v433 = vrot.slane %v44, %v432
    %v435 = vunpack.c.l.s4 1983009808
    %v436 = vunpack.c.0.s8 %v435
    %v437 = vlaneseq
    %v438 = vshrl.u32 %v437, 7
    %v439 = vsub.s32 %v436, %v438
    %v440 = vrot.slane %v426, %v439
    %v441 = vcombine.high %v433, %v433
    %v442 = vcombine.high %v440, %v440
    %v443 = vcombine.high %v45, %v45
    %v445 = vunpack.c.l.s4 1983009808
    %v446 = vunpack.c.0.s8 %v445
    %v447 = vlaneseq
    %v448 = vshrl.u32 %v447, 7
    %v449 = vsub.s32 %v446, %v448
    %v450 = vrot.slane %v45, %v449
    %v452 = vunpack.c.l.s4 1983009808
    %v453 = vunpack.c.0.s8 %v452
    %v454 = vlaneseq
    %v455 = vshrl.u32 %v454, 7
    %v456 = vsub.s32 %v453, %v455
    %v457 = vrot.slane %v443, %v456
    %v458 = vcombine.high %v450, %v450
    %v459 = vcombine.high %v457, %v457
    %v460 = vcombine.high %v46, %v46
    %v462 = vunpack.c.l.s4 1983009808
    %v463 = vunpack.c.0.s8 %v462
    %v464 = vlaneseq
    %v465 = vshrl.u32 %v464, 7
    %v466 = vsub.s32 %v463, %v465
    %v467 = vrot.slane %v46, %v466
    %v469 = vunpack.c.l.s4 1983009808
    %v470 = vunpack.c.0.s8 %v469
    %v471 = vlaneseq
    %v472 = vshrl.u32 %v471, 7
    %v473 = vsub.s32 %v470, %v472
    %v474 = vrot.slane %v460, %v473
    %v475 = vcombine.high %v467, %v467
    %v476 = vcombine.high %v47, %v47
    %v478 = vunpack.c.l.s4 1983009808
    %v479 = vunpack.c.0.s8 %v478
    %v480 = vlaneseq
    %v481 = vshrl.u32 %v480, 7
    %v482 = vsub.s32 %v479, %v481
    %v483 = vrot.slane %v47, %v482
    %v485 = vunpack.c.l.s4 1983009808
    %v486 = vunpack.c.0.s8 %v485
    %v487 = vlaneseq
    %v488 = vshrl.u32 %v487, 7
    %v489 = vsub.s32 %v486, %v488
    %v490 = vrot.slane %v476, %v489
    %v491 = vcombine.high %v483, %v483
    %v492 = vcombine.high %v490, %v490
    %v493 = vcombine.high %v48, %v48
    %v495 = vunpack.c.l.s4 1983009808
    %v496 = vunpack.c.0.s8 %v495
    %v497 = vlaneseq
    %v498 = vshrl.u32 %v497, 7
    %v499 = vsub.s32 %v496, %v498
    %v500 = vrot.slane %v48, %v499
    %v502 = vunpack.c.l.s4 1983009808
    %v503 = vunpack.c.0.s8 %v502
    %v504 = vlaneseq
    %v505 = vshrl.u32 %v504, 7
    %v506 = vsub.s32 %v503, %v505
    %v507 = vrot.slane %v493, %v506
    %v508 = vcombine.high %v500, %v500
    %v509 = vcombine.high %v507, %v507
    %v510 = vcombine.high %v49, %v49
    %v512 = vunpack.c.l.s4 1983009808
    %v513 = vunpack.c.0.s8 %v512
    %v514 = vlaneseq
    %v515 = vshrl.u32 %v514, 7
    %v516 = vsub.s32 %v513, %v515
    %v517 = vrot.slane %v49, %v516
    %v519 = vunpack.c.l.s4 1983009808
    %v520 = vunpack.c.0.s8 %v519
    %v521 = vlaneseq
    %v522 = vshrl.u32 %v521, 7
    %v523 = vsub.s32 %v520, %v522
    %v524 = vrot.slane %v510, %v523
    %v525 = vcombine.high %v517, %v517
    %v526 = vcombine.high %v524, %v524
    %v527 = vcombine.high %v50, %v50
    %v529 = vunpack.c.l.s4 1983009808
    %v530 = vunpack.c.0.s8 %v529
    %v531 = vlaneseq
    %v532 = vshrl.u32 %v531, 7
    %v533 = vsub.s32 %v530, %v532
    %v534 = vrot.slane %v50, %v533
    %v536 = vunpack.c.l.s4 1983009808
    %v537 = vunpack.c.0.s8 %v536
    %v538 = vlaneseq
    %v539 = vshrl.u32 %v538, 7
    %v540 = vsub.s32 %v537, %v539
    %v541 = vrot.slane %v527, %v540
    %v542 = vcombine.high %v534, %v534
    %v543 = vcombine.high %v541, %v541
    %v544 = vcombine.high %v51, %v51
    %v546 = vunpack.c.l.s4 1983009808
    %v547 = vunpack.c.0.s8 %v546
    %v548 = vlaneseq
    %v549 = vshrl.u32 %v548, 7
    %v550 = vsub.s32 %v547, %v549
    %v551 = vrot.slane %v51, %v550
    %v553 = vunpack.c.l.s4 1983009808
    %v554 = vunpack.c.0.s8 %v553
    %v555 = vlaneseq
    %v556 = vshrl.u32 %v555, 7
    %v557 = vsub.s32 %v554, %v556
    %v558 = vrot.slane %v544, %v557
    %v559 = vcombine.high %v551, %v551
    %v560 = vcombine.high %v558, %v558
    %v561 = vcombine.high %v52, %v52
    %v563 = vunpack.c.l.s4 1983009808
    %v564 = vunpack.c.0.s8 %v563
    %v565 = vlaneseq
    %v566 = vshrl.u32 %v565, 7
    %v567 = vsub.s32 %v564, %v566
    %v568 = vrot.slane %v52, %v567
    %v570 = vunpack.c.l.s4 1983009808
    %v571 = vunpack.c.0.s8 %v570
    %v572 = vlaneseq
    %v573 = vshrl.u32 %v572, 7
    %v574 = vsub.s32 %v571, %v573
    %v575 = vrot.slane %v561, %v574
    %v576 = vcombine.high %v568, %v568
    %v577 = vcombine.high %v53, %v53
    %v579 = vunpack.c.l.s4 1983009808
    %v580 = vunpack.c.0.s8 %v579
    %v581 = vlaneseq
    %v582 = vshrl.u32 %v581, 7
    %v583 = vsub.s32 %v580, %v582
    %v584 = vrot.slane %v53, %v583
    %v586 = vunpack.c.l.s4 1983009808
    %v587 = vunpack.c.0.s8 %v586
    %v588 = vlaneseq
    %v589 = vshrl.u32 %v588, 7
    %v590 = vsub.s32 %v587, %v589
    %v591 = vrot.slane %v577, %v590
    %v592 = vcombine.high %v584, %v584
    %v593 = vcombine.high %v591, %v591
    %v594 = vcombine.high %v54, %v54
    %v596 = vunpack.c.l.s4 1983009808
    %v597 = vunpack.c.0.s8 %v596
    %v598 = vlaneseq
    %v599 = vshrl.u32 %v598, 7
    %v600 = vsub.s32 %v597, %v599
    %v601 = vrot.slane %v54, %v600
    %v603 = vunpack.c.l.s4 1983009808
    %v604 = vunpack.c.0.s8 %v603
    %v605 = vlaneseq
    %v606 = vshrl.u32 %v605, 7
    %v607 = vsub.s32 %v604, %v606
    %v608 = vrot.slane %v594, %v607
    %v609 = vcombine.high %v601, %v601
    %v610 = vcombine.high %v608, %v608
    %v611 = vcombine.high %v55, %v55
    %v613 = vunpack.c.l.s4 1983009808
    %v614 = vunpack.c.0.s8 %v613
    %v615 = vlaneseq
    %v616 = vshrl.u32 %v615, 7
    %v617 = vsub.s32 %v614, %v616
    %v618 = vrot.slane %v55, %v617
    %v620 = vunpack.c.l.s4 1983009808
    %v621 = vunpack.c.0.s8 %v620
    %v622 = vlaneseq
    %v623 = vshrl.u32 %v622, 7
    %v624 = vsub.s32 %v621, %v623
    %v625 = vrot.slane %v611, %v624
    %v626 = vcombine.high %v618, %v618
    %v627 = vcombine.high %v625, %v625
    %v628 = vcombine.high %v56, %v56
    %v630 = vunpack.c.l.s4 1983009808
    %v631 = vunpack.c.0.s8 %v630
    %v632 = vlaneseq
    %v633 = vshrl.u32 %v632, 7
    %v634 = vsub.s32 %v631, %v633
    %v635 = vrot.slane %v56, %v634
    %v637 = vunpack.c.l.s4 1983009808
    %v638 = vunpack.c.0.s8 %v637
    %v639 = vlaneseq
    %v640 = vshrl.u32 %v639, 7
    %v641 = vsub.s32 %v638, %v640
    %v642 = vrot.slane %v628, %v641
    %v643 = vcombine.high %v635, %v635
    %v644 = vcombine.high %v642, %v642
    %v645 = vcombine.high %v57, %v57
    %v647 = vunpack.c.l.s4 1983009808
    %v648 = vunpack.c.0.s8 %v647
    %v649 = vlaneseq
    %v650 = vshrl.u32 %v649, 7
    %v651 = vsub.s32 %v648, %v650
    %v652 = vrot.slane %v57, %v651
    %v654 = vunpack.c.l.s4 1983009808
    %v655 = vunpack.c.0.s8 %v654
    %v656 = vlaneseq
    %v657 = vshrl.u32 %v656, 7
    %v658 = vsub.s32 %v655, %v657
    %v659 = vrot.slane %v645, %v658
    %v660 = vcombine.high %v652, %v652
    %v661 = vcombine.high %v659, %v659
    %v662 = vcombine.high %v58, %v58
    %v664 = vunpack.c.l.s4 1983009808
    %v665 = vunpack.c.0.s8 %v664
    %v666 = vlaneseq
    %v667 = vshrl.u32 %v666, 7
    %v668 = vsub.s32 %v665, %v667
    %v669 = vrot.slane %v58, %v668
    %v671 = vunpack.c.l.s4 1983009808
    %v672 = vunpack.c.0.s8 %v671
    %v673 = vlaneseq
    %v674 = vshrl.u32 %v673, 7
    %v675 = vsub.s32 %v672, %v674
    %v676 = vrot.slane %v662, %v675
    %v677 = vcombine.high %v669, %v669
    %v678 = vcombine.high %v59, %v59
    %v680 = vunpack.c.l.s4 1983009808
    %v681 = vunpack.c.0.s8 %v680
    %v682 = vlaneseq
    %v683 = vshrl.u32 %v682, 7
    %v684 = vsub.s32 %v681, %v683
    %v685 = vrot.slane %v59, %v684
    %v687 = vunpack.c.l.s4 1983009808
    %v688 = vunpack.c.0.s8 %v687
    %v689 = vlaneseq
    %v690 = vshrl.u32 %v689, 7
    %v691 = vsub.s32 %v688, %v690
    %v692 = vrot.slane %v678, %v691
    %v693 = vcombine.high %v685, %v685
    %v694 = vcombine.high %v692, %v692
    %v695 = vcombine.high %v60, %v60
    %v697 = vunpack.c.l.s4 1983009808
    %v698 = vunpack.c.0.s8 %v697
    %v699 = vlaneseq
    %v700 = vshrl.u32 %v699, 7
    %v701 = vsub.s32 %v698, %v700
    %v702 = vrot.slane %v60, %v701
    %v704 = vunpack.c.l.s4 1983009808
    %v705 = vunpack.c.0.s8 %v704
    %v706 = vlaneseq
    %v707 = vshrl.u32 %v706, 7
    %v708 = vsub.s32 %v705, %v707
    %v709 = vrot.slane %v695, %v708
    %v710 = vcombine.high %v702, %v702
    %v711 = vcombine.high %v709, %v709
    %v712 = vcombine.high %v61, %v61
    %v714 = vunpack.c.l.s4 1983009808
    %v715 = vunpack.c.0.s8 %v714
    %v716 = vlaneseq
    %v717 = vshrl.u32 %v716, 7
    %v718 = vsub.s32 %v715, %v717
    %v719 = vrot.slane %v61, %v718
    %v721 = vunpack.c.l.s4 1983009808
    %v722 = vunpack.c.0.s8 %v721
    %v723 = vlaneseq
    %v724 = vshrl.u32 %v723, 7
    %v725 = vsub.s32 %v722, %v724
    %v726 = vrot.slane %v712, %v725
    %v727 = vcombine.high %v719, %v719
    %v728 = vcombine.high %v726, %v726
    %v729 = vcombine.high %v62, %v62
    %v731 = vunpack.c.l.s4 1983009808
    %v732 = vunpack.c.0.s8 %v731
    %v733 = vlaneseq
    %v734 = vshrl.u32 %v733, 7
    %v735 = vsub.s32 %v732, %v734
    %v736 = vrot.slane %v62, %v735
    %v738 = vunpack.c.l.s4 1983009808
    %v739 = vunpack.c.0.s8 %v738
    %v740 = vlaneseq
    %v741 = vshrl.u32 %v740, 7
    %v742 = vsub.s32 %v739, %v741
    %v743 = vrot.slane %v729, %v742
    %v744 = vcombine.high %v736, %v736
    %v745 = vcombine.high %v743, %v743
    %v746 = vcombine.high %v63, %v63
    %v748 = vunpack.c.l.s4 1983009808
    %v749 = vunpack.c.0.s8 %v748
    %v750 = vlaneseq
    %v751 = vshrl.u32 %v750, 7
    %v752 = vsub.s32 %v749, %v751
    %v753 = vrot.slane %v63, %v752
    %v755 = vunpack.c.l.s4 1983009808
    %v756 = vunpack.c.0.s8 %v755
    %v757 = vlaneseq
    %v758 = vshrl.u32 %v757, 7
    %v759 = vsub.s32 %v756, %v758
    %v760 = vrot.slane %v746, %v759
    %v761 = vcombine.high %v753, %v753
    %v762 = vcombine.high %v760, %v760
    %v763 = vcombine.high %v64, %v64
    %v765 = vunpack.c.l.s4 1983009808
    %v766 = vunpack.c.0.s8 %v765
    %v767 = vlaneseq
    %v768 = vshrl.u32 %v767, 7
    %v769 = vsub.s32 %v766, %v768
    %v770 = vrot.slane %v64, %v769
    %v772 = vunpack.c.l.s4 1983009808
    %v773 = vunpack.c.0.s8 %v772
    %v774 = vlaneseq
    %v775 = vshrl.u32 %v774, 7
    %v776 = vsub.s32 %v773, %v775
    %v777 = vrot.slane %v763, %v776
    %v778 = vcombine.high %v770, %v770
    %v779 = vcombine.high %v65, %v65
    %v781 = vunpack.c.l.s4 1983009808
    %v782 = vunpack.c.0.s8 %v781
    %v783 = vlaneseq
    %v784 = vshrl.u32 %v783, 7
    %v785 = vsub.s32 %v782, %v784
    %v786 = vrot.slane %v65, %v785
    %v788 = vunpack.c.l.s4 1983009808
    %v789 = vunpack.c.0.s8 %v788
    %v790 = vlaneseq
    %v791 = vshrl.u32 %v790, 7
    %v792 = vsub.s32 %v789, %v791
    %v793 = vrot.slane %v779, %v792
    %v794 = vcombine.high %v786, %v786
    %v795 = vcombine.high %v793, %v793
    %v796 = vcombine.high %v66, %v66
    %v798 = vunpack.c.l.s4 1983009808
    %v799 = vunpack.c.0.s8 %v798
    %v800 = vlaneseq
    %v801 = vshrl.u32 %v800, 7
    %v802 = vsub.s32 %v799, %v801
    %v803 = vrot.slane %v66, %v802
    %v805 = vunpack.c.l.s4 1983009808
    %v806 = vunpack.c.0.s8 %v805
    %v807 = vlaneseq
    %v808 = vshrl.u32 %v807, 7
    %v809 = vsub.s32 %v806, %v808
    %v810 = vrot.slane %v796, %v809
    %v811 = vcombine.high %v803, %v803
    %v812 = vcombine.high %v810, %v810
    %v813 = vcombine.high %v67, %v67
    %v815 = vunpack.c.l.s4 1983009808
    %v816 = vunpack.c.0.s8 %v815
    %v817 = vlaneseq
    %v818 = vshrl.u32 %v817, 7
    %v819 = vsub.s32 %v816, %v818
    %v820 = vrot.slane %v67, %v819
    %v822 = vunpack.c.l.s4 1983009808
    %v823 = vunpack.c.0.s8 %v822
    %v824 = vlaneseq
    %v825 = vshrl.u32 %v824, 7
    %v826 = vsub.s32 %v823, %v825
    %v827 = vrot.slane %v813, %v826
    %v828 = vcombine.high %v820, %v820
    %v829 = vcombine.high %v827, %v827
    %v830 = vcombine.high %v68, %v68
    %v832 = vunpack.c.l.s4 1983009808
    %v833 = vunpack.c.0.s8 %v832
    %v834 = vlaneseq
    %v835 = vshrl.u32 %v834, 7
    %v836 = vsub.s32 %v833, %v835
    %v837 = vrot.slane %v68, %v836
    %v839 = vunpack.c.l.s4 1983009808
    %v840 = vunpack.c.0.s8 %v839
    %v841 = vlaneseq
    %v842 = vshrl.u32 %v841, 7
    %v843 = vsub.s32 %v840, %v842
    %v844 = vrot.slane %v830, %v843
    %v845 = vcombine.high %v837, %v837
    %v846 = vcombine.high %v844, %v844
    %v847 = vcombine.high %v69, %v69
    %v849 = vunpack.c.l.s4 1983009808
    %v850 = vunpack.c.0.s8 %v849
    %v851 = vlaneseq
    %v852 = vshrl.u32 %v851, 7
    %v853 = vsub.s32 %v850, %v852
    %v854 = vrot.slane %v69, %v853
    %v856 = vunpack.c.l.s4 1983009808
    %v857 = vunpack.c.0.s8 %v856
    %v858 = vlaneseq
    %v859 = vshrl.u32 %v858, 7
    %v860 = vsub.s32 %v857, %v859
    %v861 = vrot.slane %v847, %v860
    %v862 = vcombine.high %v854, %v854
    %v863 = vcombine.high %v861, %v861
    %v864 = vcombine.high %v70, %v70
    %v866 = vunpack.c.l.s4 1983009808
    %v867 = vunpack.c.0.s8 %v866
    %v868 = vlaneseq
    %v869 = vshrl.u32 %v868, 7
    %v870 = vsub.s32 %v867, %v869
    %v871 = vrot.slane %v70, %v870
    %v873 = vunpack.c.l.s4 1983009808
    %v874 = vunpack.c.0.s8 %v873
    %v875 = vlaneseq
    %v876 = vshrl.u32 %v875, 7
    %v877 = vsub.s32 %v874, %v876
    %v878 = vrot.slane %v864, %v877
    %v879 = vcombine.high %v871, %v871
    %v880 = vcombine.high %v71, %v71
    %v882 = vunpack.c.l.s4 1983009808
    %v883 = vunpack.c.0.s8 %v882
    %v884 = vlaneseq
    %v885 = vshrl.u32 %v884, 7
    %v886 = vsub.s32 %v883, %v885
    %v887 = vrot.slane %v71, %v886
    %v889 = vunpack.c.l.s4 1983009808
    %v890 = vunpack.c.0.s8 %v889
    %v891 = vlaneseq
    %v892 = vshrl.u32 %v891, 7
    %v893 = vsub.s32 %v890, %v892
    %v894 = vrot.slane %v880, %v893
    %v895 = vcombine.high %v887, %v887
    %v896 = vcombine.high %v894, %v894
    %v897 = vcombine.high %v72, %v72
    %v899 = vunpack.c.l.s4 1983009808
    %v900 = vunpack.c.0.s8 %v899
    %v901 = vlaneseq
    %v902 = vshrl.u32 %v901, 7
    %v903 = vsub.s32 %v900, %v902
    %v904 = vrot.slane %v72, %v903
    %v906 = vunpack.c.l.s4 1983009808
    %v907 = vunpack.c.0.s8 %v906
    %v908 = vlaneseq
    %v909 = vshrl.u32 %v908, 7
    %v910 = vsub.s32 %v907, %v909
    %v911 = vrot.slane %v897, %v910
    %v912 = vcombine.high %v904, %v904
    %v913 = vcombine.high %v911, %v911
    %v914 = vcombine.high %v73, %v73
    %v916 = vunpack.c.l.s4 1983009808
    %v917 = vunpack.c.0.s8 %v916
    %v918 = vlaneseq
    %v919 = vshrl.u32 %v918, 7
    %v920 = vsub.s32 %v917, %v919
    %v921 = vrot.slane %v73, %v920
    %v923 = vunpack.c.l.s4 1983009808
    %v924 = vunpack.c.0.s8 %v923
    %v925 = vlaneseq
    %v926 = vshrl.u32 %v925, 7
    %v927 = vsub.s32 %v924, %v926
    %v928 = vrot.slane %v914, %v927
    %v929 = vcombine.high %v921, %v921
    %v930 = vcombine.high %v928, %v928
    %v931 = vcombine.high %v74, %v74
    %v933 = vunpack.c.l.s4 1983009808
    %v934 = vunpack.c.0.s8 %v933
    %v935 = vlaneseq
    %v936 = vshrl.u32 %v935, 7
    %v937 = vsub.s32 %v934, %v936
    %v938 = vrot.slane %v74, %v937
    %v940 = vunpack.c.l.s4 1983009808
    %v941 = vunpack.c.0.s8 %v940
    %v942 = vlaneseq
    %v943 = vshrl.u32 %v942, 7
    %v944 = vsub.s32 %v941, %v943
    %v945 = vrot.slane %v931, %v944
    %v946 = vcombine.high %v938, %v938
    %v947 = vcombine.high %v945, %v945
    %v948 = vcombine.high %v75, %v75
    %v950 = vunpack.c.l.s4 1983009808
    %v951 = vunpack.c.0.s8 %v950
    %v952 = vlaneseq
    %v953 = vshrl.u32 %v952, 7
    %v954 = vsub.s32 %v951, %v953
    %v955 = vrot.slane %v75, %v954
    %v957 = vunpack.c.l.s4 1983009808
    %v958 = vunpack.c.0.s8 %v957
    %v959 = vlaneseq
    %v960 = vshrl.u32 %v959, 7
    %v961 = vsub.s32 %v958, %v960
    %v962 = vrot.slane %v948, %v961
    %v963 = vcombine.high %v955, %v955
    %v964 = vcombine.high %v962, %v962
    %v965 = vcombine.high %v76, %v76
    %v967 = vunpack.c.l.s4 1983009808
    %v968 = vunpack.c.0.s8 %v967
    %v969 = vlaneseq
    %v970 = vshrl.u32 %v969, 7
    %v971 = vsub.s32 %v968, %v970
    %v972 = vrot.slane %v76, %v971
    %v974 = vunpack.c.l.s4 1983009808
    %v975 = vunpack.c.0.s8 %v974
    %v976 = vlaneseq
    %v977 = vshrl.u32 %v976, 7
    %v978 = vsub.s32 %v975, %v977
    %v979 = vrot.slane %v965, %v978
    %v980 = vcombine.high %v972, %v972
    %v981 = vcombine.high %v77, %v77
    %v983 = vunpack.c.l.s4 1983009808
    %v984 = vunpack.c.0.s8 %v983
    %v985 = vlaneseq
    %v986 = vshrl.u32 %v985, 7
    %v987 = vsub.s32 %v984, %v986
    %v988 = vrot.slane %v77, %v987
    %v990 = vunpack.c.l.s4 1983009808
    %v991 = vunpack.c.0.s8 %v990
    %v992 = vlaneseq
    %v993 = vshrl.u32 %v992, 7
    %v994 = vsub.s32 %v991, %v993
    %v995 = vrot.slane %v981, %v994
    %v996 = vcombine.high %v988, %v988
    %v997 = vcombine.high %v995, %v995
    %v998 = vcombine.high %v78, %v78
    %v1000 = vunpack.c.l.s4 1983009808
    %v1001 = vunpack.c.0.s8 %v1000
    %v1002 = vlaneseq
    %v1003 = vshrl.u32 %v1002, 7
    %v1004 = vsub.s32 %v1001, %v1003
    %v1005 = vrot.slane %v78, %v1004
    %v1007 = vunpack.c.l.s4 1983009808
    %v1008 = vunpack.c.0.s8 %v1007
    %v1009 = vlaneseq
    %v1010 = vshrl.u32 %v1009, 7
    %v1011 = vsub.s32 %v1008, %v1010
    %v1012 = vrot.slane %v998, %v1011
    %v1013 = vcombine.high %v1005, %v1005
    %v1014 = vcombine.high %v1012, %v1012
    %v1015 = vcombine.high %v79, %v79
    %v1017 = vunpack.c.l.s4 1983009808
    %v1018 = vunpack.c.0.s8 %v1017
    %v1019 = vlaneseq
    %v1020 = vshrl.u32 %v1019, 7
    %v1021 = vsub.s32 %v1018, %v1020
    %v1022 = vrot.slane %v79, %v1021
    %v1024 = vunpack.c.l.s4 1983009808
    %v1025 = vunpack.c.0.s8 %v1024
    %v1026 = vlaneseq
    %v1027 = vshrl.u32 %v1026, 7
    %v1028 = vsub.s32 %v1025, %v1027
    %v1029 = vrot.slane %v1015, %v1028
    %v1030 = vcombine.high %v1022, %v1022
    %v1031 = vcombine.high %v1029, %v1029
    %v1032 = vcombine.high %v80, %v80
    %v1034 = vunpack.c.l.s4 1983009808
    %v1035 = vunpack.c.0.s8 %v1034
    %v1036 = vlaneseq
    %v1037 = vshrl.u32 %v1036, 7
    %v1038 = vsub.s32 %v1035, %v1037
    %v1039 = vrot.slane %v80, %v1038
    %v1041 = vunpack.c.l.s4 1983009808
    %v1042 = vunpack.c.0.s8 %v1041
    %v1043 = vlaneseq
    %v1044 = vshrl.u32 %v1043, 7
    %v1045 = vsub.s32 %v1042, %v1044
    %v1046 = vrot.slane %v1032, %v1045
    %v1047 = vcombine.high %v1039, %v1039
    %v1048 = vcombine.high %v1046, %v1046
    %v1049 = vcombine.high %v81, %v81
    %v1051 = vunpack.c.l.s4 1983009808
    %v1052 = vunpack.c.0.s8 %v1051
    %v1053 = vlaneseq
    %v1054 = vshrl.u32 %v1053, 7
    %v1055 = vsub.s32 %v1052, %v1054
    %v1056 = vrot.slane %v81, %v1055
    %v1058 = vunpack.c.l.s4 1983009808
    %v1059 = vunpack.c.0.s8 %v1058
    %v1060 = vlaneseq
    %v1061 = vshrl.u32 %v1060, 7
    %v1062 = vsub.s32 %v1059, %v1061
    %v1063 = vrot.slane %v1049, %v1062
    %v1064 = vcombine.high %v1056, %v1056
    %v1065 = vcombine.high %v1063, %v1063
    %v1066 = vcombine.high %v82, %v82
    %v1068 = vunpack.c.l.s4 1983009808
    %v1069 = vunpack.c.0.s8 %v1068
    %v1070 = vlaneseq
    %v1071 = vshrl.u32 %v1070, 7
    %v1072 = vsub.s32 %v1069, %v1071
    %v1073 = vrot.slane %v82, %v1072
    %v1075 = vunpack.c.l.s4 1983009808
    %v1076 = vunpack.c.0.s8 %v1075
    %v1077 = vlaneseq
    %v1078 = vshrl.u32 %v1077, 7
    %v1079 = vsub.s32 %v1076, %v1078
    %v1080 = vrot.slane %v1066, %v1079
    %v1081 = vcombine.high %v1073, %v1073
    %v1082 = vcombine.high %v83, %v83
    %v1084 = vunpack.c.l.s4 1983009808
    %v1085 = vunpack.c.0.s8 %v1084
    %v1086 = vlaneseq
    %v1087 = vshrl.u32 %v1086, 7
    %v1088 = vsub.s32 %v1085, %v1087
    %v1089 = vrot.slane %v83, %v1088
    %v1091 = vunpack.c.l.s4 1983009808
    %v1092 = vunpack.c.0.s8 %v1091
    %v1093 = vlaneseq
    %v1094 = vshrl.u32 %v1093, 7
    %v1095 = vsub.s32 %v1092, %v1094
    %v1096 = vrot.slane %v1082, %v1095
    %v1097 = vcombine.high %v1089, %v1089
    %v1098 = vcombine.high %v1096, %v1096
    %v1099 = vcombine.high %v84, %v84
    %v1101 = vunpack.c.l.s4 1983009808
    %v1102 = vunpack.c.0.s8 %v1101
    %v1103 = vlaneseq
    %v1104 = vshrl.u32 %v1103, 7
    %v1105 = vsub.s32 %v1102, %v1104
    %v1106 = vrot.slane %v84, %v1105
    %v1108 = vunpack.c.l.s4 1983009808
    %v1109 = vunpack.c.0.s8 %v1108
    %v1110 = vlaneseq
    %v1111 = vshrl.u32 %v1110, 7
    %v1112 = vsub.s32 %v1109, %v1111
    %v1113 = vrot.slane %v1099, %v1112
    %v1114 = vcombine.high %v1106, %v1106
    %v1115 = vcombine.high %v1113, %v1113
    %v1116 = vcombine.high %v85, %v85
    %v1118 = vunpack.c.l.s4 1983009808
    %v1119 = vunpack.c.0.s8 %v1118
    %v1120 = vlaneseq
    %v1121 = vshrl.u32 %v1120, 7
    %v1122 = vsub.s32 %v1119, %v1121
    %v1123 = vrot.slane %v85, %v1122
    %v1125 = vunpack.c.l.s4 1983009808
    %v1126 = vunpack.c.0.s8 %v1125
    %v1127 = vlaneseq
    %v1128 = vshrl.u32 %v1127, 7
    %v1129 = vsub.s32 %v1126, %v1128
    %v1130 = vrot.slane %v1116, %v1129
    %v1131 = vcombine.high %v1123, %v1123
    %v1132 = vcombine.high %v1130, %v1130
    %v1133 = vcombine.high %v86, %v86
    %v1135 = vunpack.c.l.s4 1983009808
    %v1136 = vunpack.c.0.s8 %v1135
    %v1137 = vlaneseq
    %v1138 = vshrl.u32 %v1137, 7
    %v1139 = vsub.s32 %v1136, %v1138
    %v1140 = vrot.slane %v86, %v1139
    %v1142 = vunpack.c.l.s4 1983009808
    %v1143 = vunpack.c.0.s8 %v1142
    %v1144 = vlaneseq
    %v1145 = vshrl.u32 %v1144, 7
    %v1146 = vsub.s32 %v1143, %v1145
    %v1147 = vrot.slane %v1133, %v1146
    %v1148 = vcombine.high %v1140, %v1140
    %v1149 = vcombine.high %v1147, %v1147
    %v1150 = vcombine.high %v87, %v87
    %v1152 = vunpack.c.l.s4 1983009808
    %v1153 = vunpack.c.0.s8 %v1152
    %v1154 = vlaneseq
    %v1155 = vshrl.u32 %v1154, 7
    %v1156 = vsub.s32 %v1153, %v1155
    %v1157 = vrot.slane %v87, %v1156
    %v1159 = vunpack.c.l.s4 1983009808
    %v1160 = vunpack.c.0.s8 %v1159
    %v1161 = vlaneseq
    %v1162 = vshrl.u32 %v1161, 7
    %v1163 = vsub.s32 %v1160, %v1162
    %v1164 = vrot.slane %v1150, %v1163
    %v1165 = vcombine.high %v1157, %v1157
    %v1166 = vcombine.high %v1164, %v1164
    %v1167 = vcombine.high %v88, %v88
    %v1169 = vunpack.c.l.s4 1983009808
    %v1170 = vunpack.c.0.s8 %v1169
    %v1171 = vlaneseq
    %v1172 = vshrl.u32 %v1171, 7
    %v1173 = vsub.s32 %v1170, %v1172
    %v1174 = vrot.slane %v88, %v1173
    %v1176 = vunpack.c.l.s4 1983009808
    %v1177 = vunpack.c.0.s8 %v1176
    %v1178 = vlaneseq
    %v1179 = vshrl.u32 %v1178, 7
    %v1180 = vsub.s32 %v1177, %v1179
    %v1181 = vrot.slane %v1167, %v1180
    %v1182 = vcombine.high %v1174, %v1174
    %v1183 = vcombine.high %v89, %v89
    %v1185 = vunpack.c.l.s4 1983009808
    %v1186 = vunpack.c.0.s8 %v1185
    %v1187 = vlaneseq
    %v1188 = vshrl.u32 %v1187, 7
    %v1189 = vsub.s32 %v1186, %v1188
    %v1190 = vrot.slane %v89, %v1189
    %v1192 = vunpack.c.l.s4 1983009808
    %v1193 = vunpack.c.0.s8 %v1192
    %v1194 = vlaneseq
    %v1195 = vshrl.u32 %v1194, 7
    %v1196 = vsub.s32 %v1193, %v1195
    %v1197 = vrot.slane %v1183, %v1196
    %v1198 = vcombine.high %v1190, %v1190
    %v1199 = vcombine.high %v1197, %v1197
    %v1200 = vcombine.high %v90, %v90
    %v1202 = vunpack.c.l.s4 1983009808
    %v1203 = vunpack.c.0.s8 %v1202
    %v1204 = vlaneseq
    %v1205 = vshrl.u32 %v1204, 7
    %v1206 = vsub.s32 %v1203, %v1205
    %v1207 = vrot.slane %v90, %v1206
    %v1209 = vunpack.c.l.s4 1983009808
    %v1210 = vunpack.c.0.s8 %v1209
    %v1211 = vlaneseq
    %v1212 = vshrl.u32 %v1211, 7
    %v1213 = vsub.s32 %v1210, %v1212
    %v1214 = vrot.slane %v1200, %v1213
    %v1215 = vcombine.high %v1207, %v1207
    %v1216 = vcombine.high %v1214, %v1214
    %v1217 = vcombine.high %v91, %v91
    %v1219 = vunpack.c.l.s4 1983009808
    %v1220 = vunpack.c.0.s8 %v1219
    %v1221 = vlaneseq
    %v1222 = vshrl.u32 %v1221, 7
    %v1223 = vsub.s32 %v1220, %v1222
    %v1224 = vrot.slane %v91, %v1223
    %v1226 = vunpack.c.l.s4 1983009808
    %v1227 = vunpack.c.0.s8 %v1226
    %v1228 = vlaneseq
    %v1229 = vshrl.u32 %v1228, 7
    %v1230 = vsub.s32 %v1227, %v1229
    %v1231 = vrot.slane %v1217, %v1230
    %v1232 = vcombine.high %v1224, %v1224
    %v1233 = vcombine.high %v1231, %v1231
    %v1234 = vcombine.high %v92, %v92
    %v1236 = vunpack.c.l.s4 1983009808
    %v1237 = vunpack.c.0.s8 %v1236
    %v1238 = vlaneseq
    %v1239 = vshrl.u32 %v1238, 7
    %v1240 = vsub.s32 %v1237, %v1239
    %v1241 = vrot.slane %v92, %v1240
    %v1243 = vunpack.c.l.s4 1983009808
    %v1244 = vunpack.c.0.s8 %v1243
    %v1245 = vlaneseq
    %v1246 = vshrl.u32 %v1245, 7
    %v1247 = vsub.s32 %v1244, %v1246
    %v1248 = vrot.slane %v1234, %v1247
    %v1249 = vcombine.high %v1241, %v1241
    %v1250 = vcombine.high %v1248, %v1248
    %v1251 = vcombine.high %v93, %v93
    %v1253 = vunpack.c.l.s4 1983009808
    %v1254 = vunpack.c.0.s8 %v1253
    %v1255 = vlaneseq
    %v1256 = vshrl.u32 %v1255, 7
    %v1257 = vsub.s32 %v1254, %v1256
    %v1258 = vrot.slane %v93, %v1257
    %v1260 = vunpack.c.l.s4 1983009808
    %v1261 = vunpack.c.0.s8 %v1260
    %v1262 = vlaneseq
    %v1263 = vshrl.u32 %v1262, 7
    %v1264 = vsub.s32 %v1261, %v1263
    %v1265 = vrot.slane %v1251, %v1264
    %v1266 = vcombine.high %v1258, %v1258
    %v1267 = vcombine.high %v1265, %v1265
    %v1268 = vcombine.high %v94, %v94
    %v1270 = vunpack.c.l.s4 1983009808
    %v1271 = vunpack.c.0.s8 %v1270
    %v1272 = vlaneseq
    %v1273 = vshrl.u32 %v1272, 7
    %v1274 = vsub.s32 %v1271, %v1273
    %v1275 = vrot.slane %v94, %v1274
    %v1277 = vunpack.c.l.s4 1983009808
    %v1278 = vunpack.c.0.s8 %v1277
    %v1279 = vlaneseq
    %v1280 = vshrl.u32 %v1279, 7
    %v1281 = vsub.s32 %v1278, %v1280
    %v1282 = vrot.slane %v1268, %v1281
    %v1283 = vcombine.high %v1275, %v1275
    %v1284 = vcombine.high %v95, %v95
    %v1286 = vunpack.c.l.s4 1983009808
    %v1287 = vunpack.c.0.s8 %v1286
    %v1288 = vlaneseq
    %v1289 = vshrl.u32 %v1288, 7
    %v1290 = vsub.s32 %v1287, %v1289
    %v1291 = vrot.slane %v95, %v1290
    %v1293 = vunpack.c.l.s4 1983009808
    %v1294 = vunpack.c.0.s8 %v1293
    %v1295 = vlaneseq
    %v1296 = vshrl.u32 %v1295, 7
    %v1297 = vsub.s32 %v1294, %v1296
    %v1298 = vrot.slane %v1284, %v1297
    %v1299 = vcombine.high %v1291, %v1291
    %v1300 = vcombine.high %v1298, %v1298
    %v1301 = vcombine.high %v96, %v96
    %v1303 = vunpack.c.l.s4 1983009808
    %v1304 = vunpack.c.0.s8 %v1303
    %v1305 = vlaneseq
    %v1306 = vshrl.u32 %v1305, 7
    %v1307 = vsub.s32 %v1304, %v1306
    %v1308 = vrot.slane %v96, %v1307
    %v1310 = vunpack.c.l.s4 1983009808
    %v1311 = vunpack.c.0.s8 %v1310
    %v1312 = vlaneseq
    %v1313 = vshrl.u32 %v1312, 7
    %v1314 = vsub.s32 %v1311, %v1313
    %v1315 = vrot.slane %v1301, %v1314
    %v1316 = vcombine.high %v1308, %v1308
    %v1317 = vcombine.high %v1315, %v1315
    %v1318 = vcombine.high %v97, %v97
    %v1320 = vunpack.c.l.s4 1983009808
    %v1321 = vunpack.c.0.s8 %v1320
    %v1322 = vlaneseq
    %v1323 = vshrl.u32 %v1322, 7
    %v1324 = vsub.s32 %v1321, %v1323
    %v1325 = vrot.slane %v97, %v1324
    %v1327 = vunpack.c.l.s4 1983009808
    %v1328 = vunpack.c.0.s8 %v1327
    %v1329 = vlaneseq
    %v1330 = vshrl.u32 %v1329, 7
    %v1331 = vsub.s32 %v1328, %v1330
    %v1332 = vrot.slane %v1318, %v1331
    %v1333 = vcombine.high %v1325, %v1325
    %v1334 = vcombine.high %v1332, %v1332
    %v1335 = vcombine.high %v98, %v98
    %v1337 = vunpack.c.l.s4 1983009808
    %v1338 = vunpack.c.0.s8 %v1337
    %v1339 = vlaneseq
    %v1340 = vshrl.u32 %v1339, 7
    %v1341 = vsub.s32 %v1338, %v1340
    %v1342 = vrot.slane %v98, %v1341
    %v1344 = vunpack.c.l.s4 1983009808
    %v1345 = vunpack.c.0.s8 %v1344
    %v1346 = vlaneseq
    %v1347 = vshrl.u32 %v1346, 7
    %v1348 = vsub.s32 %v1345, %v1347
    %v1349 = vrot.slane %v1335, %v1348
    %v1350 = vcombine.high %v1342, %v1342
    %v1351 = vcombine.high %v1349, %v1349
    %v1352 = vcombine.high %v99, %v99
    %v1354 = vunpack.c.l.s4 1983009808
    %v1355 = vunpack.c.0.s8 %v1354
    %v1356 = vlaneseq
    %v1357 = vshrl.u32 %v1356, 7
    %v1358 = vsub.s32 %v1355, %v1357
    %v1359 = vrot.slane %v99, %v1358
    %v1361 = vunpack.c.l.s4 1983009808
    %v1362 = vunpack.c.0.s8 %v1361
    %v1363 = vlaneseq
    %v1364 = vshrl.u32 %v1363, 7
    %v1365 = vsub.s32 %v1362, %v1364
    %v1366 = vrot.slane %v1352, %v1365
    %v1367 = vcombine.high %v1359, %v1359
    %v1368 = vcombine.high %v1366, %v1366
    %v1369 = vcombine.high %v100, %v100
    %v1371 = vunpack.c.l.s4 1983009808
    %v1372 = vunpack.c.0.s8 %v1371
    %v1373 = vlaneseq
    %v1374 = vshrl.u32 %v1373, 7
    %v1375 = vsub.s32 %v1372, %v1374
    %v1376 = vrot.slane %v100, %v1375
    %v1378 = vunpack.c.l.s4 1983009808
    %v1379 = vunpack.c.0.s8 %v1378
    %v1380 = vlaneseq
    %v1381 = vshrl.u32 %v1380, 7
    %v1382 = vsub.s32 %v1379, %v1381
    %v1383 = vrot.slane %v1369, %v1382
    %v1384 = vcombine.high %v1376, %v1376
    %v1385 = vld [vmem:[%s1] sm:$0xff]
    %v1386 = vld [vmem:[%s1 + $0x8] sm:$0xff]
    %v1387 = vld [vmem:[%s1 + $0x10] sm:$0xff]
    %v1388 = vld [vmem:[%s1 + $0x18] sm:$0xff]
    %v1389 = vld [vmem:[%s1 + $0x20] sm:$0xff]
    %v1390 = vld [vmem:[%s1 + $0x28] sm:$0x3f]
    %v1391 = vcombine.low %v180, %v188
    %v1392 = vcombine.low %v187, %v189
    %v1394 = vunpack.c.l.s4 1983009808
    %v1395 = vunpack.c.0.s8 %v1394
    %v1396 = vlaneseq
    %v1397 = vshrl.u32 %v1396, 7
    %v1398 = vsub.s32 %v1395, %v1397
    %v1399 = vrot.slane %v1391, %v1398
    %v1401 = vunpack.c.l.s4 1983009808
    %v1402 = vunpack.c.0.s8 %v1401
    %v1403 = vlaneseq
    %v1404 = vshrl.u32 %v1403, 7
    %v1405 = vsub.s32 %v1402, %v1404
    %v1406 = vrot.slane %v1392, %v1405
    %v1407 = vcombine.low %v1399, %v1406
    %v1408 = vcombine.low %v197, %v205
    %v1409 = vcombine.low %v204, %v206
    %v1411 = vunpack.c.l.s4 1983009808
    %v1412 = vunpack.c.0.s8 %v1411
    %v1413 = vlaneseq
    %v1414 = vshrl.u32 %v1413, 7
    %v1415 = vsub.s32 %v1412, %v1414
    %v1416 = vrot.slane %v1408, %v1415
    %v1418 = vunpack.c.l.s4 1983009808
    %v1419 = vunpack.c.0.s8 %v1418
    %v1420 = vlaneseq
    %v1421 = vshrl.u32 %v1420, 7
    %v1422 = vsub.s32 %v1419, %v1421
    %v1423 = vrot.slane %v1409, %v1422
    %v1424 = vcombine.low %v1416, %v1423
    %v1425 = vcombine.low %v214, %v222
    %v1426 = vcombine.low %v221, %v223
    %v1428 = vunpack.c.l.s4 1983009808
    %v1429 = vunpack.c.0.s8 %v1428
    %v1430 = vlaneseq
    %v1431 = vshrl.u32 %v1430, 7
    %v1432 = vsub.s32 %v1429, %v1431
    %v1433 = vrot.slane %v1425, %v1432
    %v1435 = vunpack.c.l.s4 1983009808
    %v1436 = vunpack.c.0.s8 %v1435
    %v1437 = vlaneseq
    %v1438 = vshrl.u32 %v1437, 7
    %v1439 = vsub.s32 %v1436, %v1438
    %v1440 = vrot.slane %v1426, %v1439
    %v1441 = vcombine.low %v1433, %v1440
    %v1442 = vcombine.low %v231, %v239
    %v1443 = vcombine.low %v238, %v240
    %v1445 = vunpack.c.l.s4 1983009808
    %v1446 = vunpack.c.0.s8 %v1445
    %v1447 = vlaneseq
    %v1448 = vshrl.u32 %v1447, 7
    %v1449 = vsub.s32 %v1446, %v1448
    %v1450 = vrot.slane %v1442, %v1449
    %v1452 = vunpack.c.l.s4 1983009808
    %v1453 = vunpack.c.0.s8 %v1452
    %v1454 = vlaneseq
    %v1455 = vshrl.u32 %v1454, 7
    %v1456 = vsub.s32 %v1453, %v1455
    %v1457 = vrot.slane %v1443, %v1456
    %v1458 = vcombine.low %v1450, %v1457
    %v1459 = vcombine.low %v248, %v256
    %v1460 = vcombine.low %v255, %v257
    %v1462 = vunpack.c.l.s4 1983009808
    %v1463 = vunpack.c.0.s8 %v1462
    %v1464 = vlaneseq
    %v1465 = vshrl.u32 %v1464, 7
    %v1466 = vsub.s32 %v1463, %v1465
    %v1467 = vrot.slane %v1459, %v1466
    %v1469 = vunpack.c.l.s4 1983009808
    %v1470 = vunpack.c.0.s8 %v1469
    %v1471 = vlaneseq
    %v1472 = vshrl.u32 %v1471, 7
    %v1473 = vsub.s32 %v1470, %v1472
    %v1474 = vrot.slane %v1460, %v1473
    %v1475 = vcombine.low %v1467, %v1474
    %v1476 = vcombine.low %v265, %v273
    %v1477 = vcombine.low %v272, %v281
    %v1479 = vunpack.c.l.s4 1983009808
    %v1480 = vunpack.c.0.s8 %v1479
    %v1481 = vlaneseq
    %v1482 = vshrl.u32 %v1481, 7
    %v1483 = vsub.s32 %v1480, %v1482
    %v1484 = vrot.slane %v1476, %v1483
    %v1486 = vunpack.c.l.s4 1983009808
    %v1487 = vunpack.c.0.s8 %v1486
    %v1488 = vlaneseq
    %v1489 = vshrl.u32 %v1488, 7
    %v1490 = vsub.s32 %v1487, %v1489
    %v1491 = vrot.slane %v1477, %v1490
    %v1492 = vcombine.low %v1484, %v1491
    %v1493 = vcombine.low %v289, %v288
    %v1494 = vcombine.low %v290, %v298
    %v1496 = vunpack.c.l.s4 1983009808
    %v1497 = vunpack.c.0.s8 %v1496
    %v1498 = vlaneseq
    %v1499 = vshrl.u32 %v1498, 7
    %v1500 = vsub.s32 %v1497, %v1499
    %v1501 = vrot.slane %v1493, %v1500
    %v1503 = vunpack.c.l.s4 1983009808
    %v1504 = vunpack.c.0.s8 %v1503
    %v1505 = vlaneseq
    %v1506 = vshrl.u32 %v1505, 7
    %v1507 = vsub.s32 %v1504, %v1506
    %v1508 = vrot.slane %v1494, %v1507
    %v1509 = vcombine.low %v1501, %v1508
    %v1510 = vcombine.low %v306, %v305
    %v1511 = vcombine.low %v307, %v315
    %v1513 = vunpack.c.l.s4 1983009808
    %v1514 = vunpack.c.0.s8 %v1513
    %v1515 = vlaneseq
    %v1516 = vshrl.u32 %v1515, 7
    %v1517 = vsub.s32 %v1514, %v1516
    %v1518 = vrot.slane %v1510, %v1517
    %v1520 = vunpack.c.l.s4 1983009808
    %v1521 = vunpack.c.0.s8 %v1520
    %v1522 = vlaneseq
    %v1523 = vshrl.u32 %v1522, 7
    %v1524 = vsub.s32 %v1521, %v1523
    %v1525 = vrot.slane %v1511, %v1524
    %v1526 = vcombine.low %v1518, %v1525
    %v1527 = vcombine.low %v323, %v322
    %v1528 = vcombine.low %v324, %v332
    %v1530 = vunpack.c.l.s4 1983009808
    %v1531 = vunpack.c.0.s8 %v1530
    %v1532 = vlaneseq
    %v1533 = vshrl.u32 %v1532, 7
    %v1534 = vsub.s32 %v1531, %v1533
    %v1535 = vrot.slane %v1527, %v1534
    %v1537 = vunpack.c.l.s4 1983009808
    %v1538 = vunpack.c.0.s8 %v1537
    %v1539 = vlaneseq
    %v1540 = vshrl.u32 %v1539, 7
    %v1541 = vsub.s32 %v1538, %v1540
    %v1542 = vrot.slane %v1528, %v1541
    %v1543 = vcombine.low %v1535, %v1542
    %v1544 = vcombine.low %v340, %v339
    %v1545 = vcombine.low %v341, %v349
    %v1547 = vunpack.c.l.s4 1983009808
    %v1548 = vunpack.c.0.s8 %v1547
    %v1549 = vlaneseq
    %v1550 = vshrl.u32 %v1549, 7
    %v1551 = vsub.s32 %v1548, %v1550
    %v1552 = vrot.slane %v1544, %v1551
    %v1554 = vunpack.c.l.s4 1983009808
    %v1555 = vunpack.c.0.s8 %v1554
    %v1556 = vlaneseq
    %v1557 = vshrl.u32 %v1556, 7
    %v1558 = vsub.s32 %v1555, %v1557
    %v1559 = vrot.slane %v1545, %v1558
    %v1560 = vcombine.low %v1552, %v1559
    %v1561 = vcombine.low %v357, %v356
    %v1562 = vcombine.low %v358, %v366
    %v1564 = vunpack.c.l.s4 1983009808
    %v1565 = vunpack.c.0.s8 %v1564
    %v1566 = vlaneseq
    %v1567 = vshrl.u32 %v1566, 7
    %v1568 = vsub.s32 %v1565, %v1567
    %v1569 = vrot.slane %v1561, %v1568
    %v1571 = vunpack.c.l.s4 1983009808
    %v1572 = vunpack.c.0.s8 %v1571
    %v1573 = vlaneseq
    %v1574 = vshrl.u32 %v1573, 7
    %v1575 = vsub.s32 %v1572, %v1574
    %v1576 = vrot.slane %v1562, %v1575
    %v1577 = vcombine.low %v1569, %v1576
    %v1578 = vcombine.low %v374, %v373
    %v1579 = vcombine.low %v382, %v390
    %v1581 = vunpack.c.l.s4 1983009808
    %v1582 = vunpack.c.0.s8 %v1581
    %v1583 = vlaneseq
    %v1584 = vshrl.u32 %v1583, 7
    %v1585 = vsub.s32 %v1582, %v1584
    %v1586 = vrot.slane %v1578, %v1585
    %v1588 = vunpack.c.l.s4 1983009808
    %v1589 = vunpack.c.0.s8 %v1588
    %v1590 = vlaneseq
    %v1591 = vshrl.u32 %v1590, 7
    %v1592 = vsub.s32 %v1589, %v1591
    %v1593 = vrot.slane %v1579, %v1592
    %v1594 = vcombine.low %v1586, %v1593
    %v1595 = vcombine.low %v389, %v391
    %v1596 = vcombine.low %v399, %v407
    %v1598 = vunpack.c.l.s4 1983009808
    %v1599 = vunpack.c.0.s8 %v1598
    %v1600 = vlaneseq
    %v1601 = vshrl.u32 %v1600, 7
    %v1602 = vsub.s32 %v1599, %v1601
    %v1603 = vrot.slane %v1595, %v1602
    %v1605 = vunpack.c.l.s4 1983009808
    %v1606 = vunpack.c.0.s8 %v1605
    %v1607 = vlaneseq
    %v1608 = vshrl.u32 %v1607, 7
    %v1609 = vsub.s32 %v1606, %v1608
    %v1610 = vrot.slane %v1596, %v1609
    %v1611 = vcombine.low %v1603, %v1610
    %v1612 = vcombine.low %v406, %v408
    %v1613 = vcombine.low %v416, %v424
    %v1615 = vunpack.c.l.s4 1983009808
    %v1616 = vunpack.c.0.s8 %v1615
    %v1617 = vlaneseq
    %v1618 = vshrl.u32 %v1617, 7
    %v1619 = vsub.s32 %v1616, %v1618
    %v1620 = vrot.slane %v1612, %v1619
    %v1622 = vunpack.c.l.s4 1983009808
    %v1623 = vunpack.c.0.s8 %v1622
    %v1624 = vlaneseq
    %v1625 = vshrl.u32 %v1624, 7
    %v1626 = vsub.s32 %v1623, %v1625
    %v1627 = vrot.slane %v1613, %v1626
    %v1628 = vcombine.low %v1620, %v1627
    %v1629 = vcombine.low %v423, %v425
    %v1630 = vcombine.low %v433, %v441
    %v1632 = vunpack.c.l.s4 1983009808
    %v1633 = vunpack.c.0.s8 %v1632
    %v1634 = vlaneseq
    %v1635 = vshrl.u32 %v1634, 7
    %v1636 = vsub.s32 %v1633, %v1635
    %v1637 = vrot.slane %v1629, %v1636
    %v1639 = vunpack.c.l.s4 1983009808
    %v1640 = vunpack.c.0.s8 %v1639
    %v1641 = vlaneseq
    %v1642 = vshrl.u32 %v1641, 7
    %v1643 = vsub.s32 %v1640, %v1642
    %v1644 = vrot.slane %v1630, %v1643
    %v1645 = vcombine.low %v1637, %v1644
    %v1646 = vcombine.low %v440, %v442
    %v1647 = vcombine.low %v450, %v458
    %v1649 = vunpack.c.l.s4 1983009808
    %v1650 = vunpack.c.0.s8 %v1649
    %v1651 = vlaneseq
    %v1652 = vshrl.u32 %v1651, 7
    %v1653 = vsub.s32 %v1650, %v1652
    %v1654 = vrot.slane %v1646, %v1653
    %v1656 = vunpack.c.l.s4 1983009808
    %v1657 = vunpack.c.0.s8 %v1656
    %v1658 = vlaneseq
    %v1659 = vshrl.u32 %v1658, 7
    %v1660 = vsub.s32 %v1657, %v1659
    %v1661 = vrot.slane %v1647, %v1660
    %v1662 = vcombine.low %v1654, %v1661
    %v1663 = vcombine.low %v457, %v459
    %v1664 = vcombine.low %v467, %v475
    %v1666 = vunpack.c.l.s4 1983009808
    %v1667 = vunpack.c.0.s8 %v1666
    %v1668 = vlaneseq
    %v1669 = vshrl.u32 %v1668, 7
    %v1670 = vsub.s32 %v1667, %v1669
    %v1671 = vrot.slane %v1663, %v1670
    %v1673 = vunpack.c.l.s4 1983009808
    %v1674 = vunpack.c.0.s8 %v1673
    %v1675 = vlaneseq
    %v1676 = vshrl.u32 %v1675, 7
    %v1677 = vsub.s32 %v1674, %v1676
    %v1678 = vrot.slane %v1664, %v1677
    %v1679 = vcombine.low %v1671, %v1678
    %v1680 = vcombine.low %v474, %v483
    %v1681 = vcombine.low %v491, %v490
    %v1683 = vunpack.c.l.s4 1983009808
    %v1684 = vunpack.c.0.s8 %v1683
    %v1685 = vlaneseq
    %v1686 = vshrl.u32 %v1685, 7
    %v1687 = vsub.s32 %v1684, %v1686
    %v1688 = vrot.slane %v1680, %v1687
    %v1690 = vunpack.c.l.s4 1983009808
    %v1691 = vunpack.c.0.s8 %v1690
    %v1692 = vlaneseq
    %v1693 = vshrl.u32 %v1692, 7
    %v1694 = vsub.s32 %v1691, %v1693
    %v1695 = vrot.slane %v1681, %v1694
    %v1696 = vcombine.low %v1688, %v1695
    %v1697 = vcombine.low %v492, %v500
    %v1698 = vcombine.low %v508, %v507
    %v1700 = vunpack.c.l.s4 1983009808
    %v1701 = vunpack.c.0.s8 %v1700
    %v1702 = vlaneseq
    %v1703 = vshrl.u32 %v1702, 7
    %v1704 = vsub.s32 %v1701, %v1703
    %v1705 = vrot.slane %v1697, %v1704
    %v1707 = vunpack.c.l.s4 1983009808
    %v1708 = vunpack.c.0.s8 %v1707
    %v1709 = vlaneseq
    %v1710 = vshrl.u32 %v1709, 7
    %v1711 = vsub.s32 %v1708, %v1710
    %v1712 = vrot.slane %v1698, %v1711
    %v1713 = vcombine.low %v1705, %v1712
    %v1714 = vcombine.low %v509, %v517
    %v1715 = vcombine.low %v525, %v524
    %v1717 = vunpack.c.l.s4 1983009808
    %v1718 = vunpack.c.0.s8 %v1717
    %v1719 = vlaneseq
    %v1720 = vshrl.u32 %v1719, 7
    %v1721 = vsub.s32 %v1718, %v1720
    %v1722 = vrot.slane %v1714, %v1721
    %v1724 = vunpack.c.l.s4 1983009808
    %v1725 = vunpack.c.0.s8 %v1724
    %v1726 = vlaneseq
    %v1727 = vshrl.u32 %v1726, 7
    %v1728 = vsub.s32 %v1725, %v1727
    %v1729 = vrot.slane %v1715, %v1728
    %v1730 = vcombine.low %v1722, %v1729
    %v1731 = vcombine.low %v526, %v534
    %v1732 = vcombine.low %v542, %v541
    %v1734 = vunpack.c.l.s4 1983009808
    %v1735 = vunpack.c.0.s8 %v1734
    %v1736 = vlaneseq
    %v1737 = vshrl.u32 %v1736, 7
    %v1738 = vsub.s32 %v1735, %v1737
    %v1739 = vrot.slane %v1731, %v1738
    %v1741 = vunpack.c.l.s4 1983009808
    %v1742 = vunpack.c.0.s8 %v1741
    %v1743 = vlaneseq
    %v1744 = vshrl.u32 %v1743, 7
    %v1745 = vsub.s32 %v1742, %v1744
    %v1746 = vrot.slane %v1732, %v1745
    %v1747 = vcombine.low %v1739, %v1746
    %v1748 = vcombine.low %v543, %v551
    %v1749 = vcombine.low %v559, %v558
    %v1751 = vunpack.c.l.s4 1983009808
    %v1752 = vunpack.c.0.s8 %v1751
    %v1753 = vlaneseq
    %v1754 = vshrl.u32 %v1753, 7
    %v1755 = vsub.s32 %v1752, %v1754
    %v1756 = vrot.slane %v1748, %v1755
    %v1758 = vunpack.c.l.s4 1983009808
    %v1759 = vunpack.c.0.s8 %v1758
    %v1760 = vlaneseq
    %v1761 = vshrl.u32 %v1760, 7
    %v1762 = vsub.s32 %v1759, %v1761
    %v1763 = vrot.slane %v1749, %v1762
    %v1764 = vcombine.low %v1756, %v1763
    %v1765 = vcombine.low %v560, %v568
    %v1766 = vcombine.low %v576, %v575
    %v1768 = vunpack.c.l.s4 1983009808
    %v1769 = vunpack.c.0.s8 %v1768
    %v1770 = vlaneseq
    %v1771 = vshrl.u32 %v1770, 7
    %v1772 = vsub.s32 %v1769, %v1771
    %v1773 = vrot.slane %v1765, %v1772
    %v1775 = vunpack.c.l.s4 1983009808
    %v1776 = vunpack.c.0.s8 %v1775
    %v1777 = vlaneseq
    %v1778 = vshrl.u32 %v1777, 7
    %v1779 = vsub.s32 %v1776, %v1778
    %v1780 = vrot.slane %v1766, %v1779
    %v1781 = vcombine.low %v1773, %v1780
    %v1782 = vcombine.low %v584, %v592
    %v1783 = vcombine.low %v591, %v593
    %v1785 = vunpack.c.l.s4 1983009808
    %v1786 = vunpack.c.0.s8 %v1785
    %v1787 = vlaneseq
    %v1788 = vshrl.u32 %v1787, 7
    %v1789 = vsub.s32 %v1786, %v1788
    %v1790 = vrot.slane %v1782, %v1789
    %v1792 = vunpack.c.l.s4 1983009808
    %v1793 = vunpack.c.0.s8 %v1792
    %v1794 = vlaneseq
    %v1795 = vshrl.u32 %v1794, 7
    %v1796 = vsub.s32 %v1793, %v1795
    %v1797 = vrot.slane %v1783, %v1796
    %v1798 = vcombine.low %v1790, %v1797
    %v1799 = vcombine.low %v601, %v609
    %v1800 = vcombine.low %v608, %v610
    %v1802 = vunpack.c.l.s4 1983009808
    %v1803 = vunpack.c.0.s8 %v1802
    %v1804 = vlaneseq
    %v1805 = vshrl.u32 %v1804, 7
    %v1806 = vsub.s32 %v1803, %v1805
    %v1807 = vrot.slane %v1799, %v1806
    %v1809 = vunpack.c.l.s4 1983009808
    %v1810 = vunpack.c.0.s8 %v1809
    %v1811 = vlaneseq
    %v1812 = vshrl.u32 %v1811, 7
    %v1813 = vsub.s32 %v1810, %v1812
    %v1814 = vrot.slane %v1800, %v1813
    %v1815 = vcombine.low %v1807, %v1814
    %v1816 = vcombine.low %v618, %v626
    %v1817 = vcombine.low %v625, %v627
    %v1819 = vunpack.c.l.s4 1983009808
    %v1820 = vunpack.c.0.s8 %v1819
    %v1821 = vlaneseq
    %v1822 = vshrl.u32 %v1821, 7
    %v1823 = vsub.s32 %v1820, %v1822
    %v1824 = vrot.slane %v1816, %v1823
    %v1826 = vunpack.c.l.s4 1983009808
    %v1827 = vunpack.c.0.s8 %v1826
    %v1828 = vlaneseq
    %v1829 = vshrl.u32 %v1828, 7
    %v1830 = vsub.s32 %v1827, %v1829
    %v1831 = vrot.slane %v1817, %v1830
    %v1832 = vcombine.low %v1824, %v1831
    %v1833 = vcombine.low %v635, %v643
    %v1834 = vcombine.low %v642, %v644
    %v1836 = vunpack.c.l.s4 1983009808
    %v1837 = vunpack.c.0.s8 %v1836
    %v1838 = vlaneseq
    %v1839 = vshrl.u32 %v1838, 7
    %v1840 = vsub.s32 %v1837, %v1839
    %v1841 = vrot.slane %v1833, %v1840
    %v1843 = vunpack.c.l.s4 1983009808
    %v1844 = vunpack.c.0.s8 %v1843
    %v1845 = vlaneseq
    %v1846 = vshrl.u32 %v1845, 7
    %v1847 = vsub.s32 %v1844, %v1846
    %v1848 = vrot.slane %v1834, %v1847
    %v1849 = vcombine.low %v1841, %v1848
    %v1850 = vcombine.low %v652, %v660
    %v1851 = vcombine.low %v659, %v661
    %v1853 = vunpack.c.l.s4 1983009808
    %v1854 = vunpack.c.0.s8 %v1853
    %v1855 = vlaneseq
    %v1856 = vshrl.u32 %v1855, 7
    %v1857 = vsub.s32 %v1854, %v1856
    %v1858 = vrot.slane %v1850, %v1857
    %v1860 = vunpack.c.l.s4 1983009808
    %v1861 = vunpack.c.0.s8 %v1860
    %v1862 = vlaneseq
    %v1863 = vshrl.u32 %v1862, 7
    %v1864 = vsub.s32 %v1861, %v1863
    %v1865 = vrot.slane %v1851, %v1864
    %v1866 = vcombine.low %v1858, %v1865
    %v1867 = vcombine.low %v669, %v677
    %v1868 = vcombine.low %v676, %v685
    %v1870 = vunpack.c.l.s4 1983009808
    %v1871 = vunpack.c.0.s8 %v1870
    %v1872 = vlaneseq
    %v1873 = vshrl.u32 %v1872, 7
    %v1874 = vsub.s32 %v1871, %v1873
    %v1875 = vrot.slane %v1867, %v1874
    %v1877 = vunpack.c.l.s4 1983009808
    %v1878 = vunpack.c.0.s8 %v1877
    %v1879 = vlaneseq
    %v1880 = vshrl.u32 %v1879, 7
    %v1881 = vsub.s32 %v1878, %v1880
    %v1882 = vrot.slane %v1868, %v1881
    %v1883 = vcombine.low %v1875, %v1882
    %v1884 = vcombine.low %v693, %v692
    %v1885 = vcombine.low %v694, %v702
    %v1887 = vunpack.c.l.s4 1983009808
    %v1888 = vunpack.c.0.s8 %v1887
    %v1889 = vlaneseq
    %v1890 = vshrl.u32 %v1889, 7
    %v1891 = vsub.s32 %v1888, %v1890
    %v1892 = vrot.slane %v1884, %v1891
    %v1894 = vunpack.c.l.s4 1983009808
    %v1895 = vunpack.c.0.s8 %v1894
    %v1896 = vlaneseq
    %v1897 = vshrl.u32 %v1896, 7
    %v1898 = vsub.s32 %v1895, %v1897
    %v1899 = vrot.slane %v1885, %v1898
    %v1900 = vcombine.low %v1892, %v1899
    %v1901 = vcombine.low %v710, %v709
    %v1902 = vcombine.low %v711, %v719
    %v1904 = vunpack.c.l.s4 1983009808
    %v1905 = vunpack.c.0.s8 %v1904
    %v1906 = vlaneseq
    %v1907 = vshrl.u32 %v1906, 7
    %v1908 = vsub.s32 %v1905, %v1907
    %v1909 = vrot.slane %v1901, %v1908
    %v1911 = vunpack.c.l.s4 1983009808
    %v1912 = vunpack.c.0.s8 %v1911
    %v1913 = vlaneseq
    %v1914 = vshrl.u32 %v1913, 7
    %v1915 = vsub.s32 %v1912, %v1914
    %v1916 = vrot.slane %v1902, %v1915
    %v1917 = vcombine.low %v1909, %v1916
    %v1918 = vcombine.low %v727, %v726
    %v1919 = vcombine.low %v728, %v736
    %v1921 = vunpack.c.l.s4 1983009808
    %v1922 = vunpack.c.0.s8 %v1921
    %v1923 = vlaneseq
    %v1924 = vshrl.u32 %v1923, 7
    %v1925 = vsub.s32 %v1922, %v1924
    %v1926 = vrot.slane %v1918, %v1925
    %v1928 = vunpack.c.l.s4 1983009808
    %v1929 = vunpack.c.0.s8 %v1928
    %v1930 = vlaneseq
    %v1931 = vshrl.u32 %v1930, 7
    %v1932 = vsub.s32 %v1929, %v1931
    %v1933 = vrot.slane %v1919, %v1932
    %v1934 = vcombine.low %v1926, %v1933
    %v1935 = vcombine.low %v744, %v743
    %v1936 = vcombine.low %v745, %v753
    %v1938 = vunpack.c.l.s4 1983009808
    %v1939 = vunpack.c.0.s8 %v1938
    %v1940 = vlaneseq
    %v1941 = vshrl.u32 %v1940, 7
    %v1942 = vsub.s32 %v1939, %v1941
    %v1943 = vrot.slane %v1935, %v1942
    %v1945 = vunpack.c.l.s4 1983009808
    %v1946 = vunpack.c.0.s8 %v1945
    %v1947 = vlaneseq
    %v1948 = vshrl.u32 %v1947, 7
    %v1949 = vsub.s32 %v1946, %v1948
    %v1950 = vrot.slane %v1936, %v1949
    %v1951 = vcombine.low %v1943, %v1950
    %v1952 = vcombine.low %v761, %v760
    %v1953 = vcombine.low %v762, %v770
    %v1955 = vunpack.c.l.s4 1983009808
    %v1956 = vunpack.c.0.s8 %v1955
    %v1957 = vlaneseq
    %v1958 = vshrl.u32 %v1957, 7
    %v1959 = vsub.s32 %v1956, %v1958
    %v1960 = vrot.slane %v1952, %v1959
    %v1962 = vunpack.c.l.s4 1983009808
    %v1963 = vunpack.c.0.s8 %v1962
    %v1964 = vlaneseq
    %v1965 = vshrl.u32 %v1964, 7
    %v1966 = vsub.s32 %v1963, %v1965
    %v1967 = vrot.slane %v1953, %v1966
    %v1968 = vcombine.low %v1960, %v1967
    %v1969 = vcombine.low %v778, %v777
    %v1970 = vcombine.low %v786, %v794
    %v1972 = vunpack.c.l.s4 1983009808
    %v1973 = vunpack.c.0.s8 %v1972
    %v1974 = vlaneseq
    %v1975 = vshrl.u32 %v1974, 7
    %v1976 = vsub.s32 %v1973, %v1975
    %v1977 = vrot.slane %v1969, %v1976
    %v1979 = vunpack.c.l.s4 1983009808
    %v1980 = vunpack.c.0.s8 %v1979
    %v1981 = vlaneseq
    %v1982 = vshrl.u32 %v1981, 7
    %v1983 = vsub.s32 %v1980, %v1982
    %v1984 = vrot.slane %v1970, %v1983
    %v1985 = vcombine.low %v1977, %v1984
    %v1986 = vcombine.low %v793, %v795
    %v1987 = vcombine.low %v803, %v811
    %v1989 = vunpack.c.l.s4 1983009808
    %v1990 = vunpack.c.0.s8 %v1989
    %v1991 = vlaneseq
    %v1992 = vshrl.u32 %v1991, 7
    %v1993 = vsub.s32 %v1990, %v1992
    %v1994 = vrot.slane %v1986, %v1993
    %v1996 = vunpack.c.l.s4 1983009808
    %v1997 = vunpack.c.0.s8 %v1996
    %v1998 = vlaneseq
    %v1999 = vshrl.u32 %v1998, 7
    %v2000 = vsub.s32 %v1997, %v1999
    %v2001 = vrot.slane %v1987, %v2000
    %v2002 = vcombine.low %v1994, %v2001
    %v2003 = vcombine.low %v810, %v812
    %v2004 = vcombine.low %v820, %v828
    %v2006 = vunpack.c.l.s4 1983009808
    %v2007 = vunpack.c.0.s8 %v2006
    %v2008 = vlaneseq
    %v2009 = vshrl.u32 %v2008, 7
    %v2010 = vsub.s32 %v2007, %v2009
    %v2011 = vrot.slane %v2003, %v2010
    %v2013 = vunpack.c.l.s4 1983009808
    %v2014 = vunpack.c.0.s8 %v2013
    %v2015 = vlaneseq
    %v2016 = vshrl.u32 %v2015, 7
    %v2017 = vsub.s32 %v2014, %v2016
    %v2018 = vrot.slane %v2004, %v2017
    %v2019 = vcombine.low %v2011, %v2018
    %v2020 = vcombine.low %v827, %v829
    %v2021 = vcombine.low %v837, %v845
    %v2023 = vunpack.c.l.s4 1983009808
    %v2024 = vunpack.c.0.s8 %v2023
    %v2025 = vlaneseq
    %v2026 = vshrl.u32 %v2025, 7
    %v2027 = vsub.s32 %v2024, %v2026
    %v2028 = vrot.slane %v2020, %v2027
    %v2030 = vunpack.c.l.s4 1983009808
    %v2031 = vunpack.c.0.s8 %v2030
    %v2032 = vlaneseq
    %v2033 = vshrl.u32 %v2032, 7
    %v2034 = vsub.s32 %v2031, %v2033
    %v2035 = vrot.slane %v2021, %v2034
    %v2036 = vcombine.low %v2028, %v2035
    %v2037 = vcombine.low %v844, %v846
    %v2038 = vcombine.low %v854, %v862
    %v2040 = vunpack.c.l.s4 1983009808
    %v2041 = vunpack.c.0.s8 %v2040
    %v2042 = vlaneseq
    %v2043 = vshrl.u32 %v2042, 7
    %v2044 = vsub.s32 %v2041, %v2043
    %v2045 = vrot.slane %v2037, %v2044
    %v2047 = vunpack.c.l.s4 1983009808
    %v2048 = vunpack.c.0.s8 %v2047
    %v2049 = vlaneseq
    %v2050 = vshrl.u32 %v2049, 7
    %v2051 = vsub.s32 %v2048, %v2050
    %v2052 = vrot.slane %v2038, %v2051
    %v2053 = vcombine.low %v2045, %v2052
    %v2054 = vcombine.low %v861, %v863
    %v2055 = vcombine.low %v871, %v879
    %v2057 = vunpack.c.l.s4 1983009808
    %v2058 = vunpack.c.0.s8 %v2057
    %v2059 = vlaneseq
    %v2060 = vshrl.u32 %v2059, 7
    %v2061 = vsub.s32 %v2058, %v2060
    %v2062 = vrot.slane %v2054, %v2061
    %v2064 = vunpack.c.l.s4 1983009808
    %v2065 = vunpack.c.0.s8 %v2064
    %v2066 = vlaneseq
    %v2067 = vshrl.u32 %v2066, 7
    %v2068 = vsub.s32 %v2065, %v2067
    %v2069 = vrot.slane %v2055, %v2068
    %v2070 = vcombine.low %v2062, %v2069
    %v2071 = vcombine.low %v878, %v887
    %v2072 = vcombine.low %v895, %v894
    %v2074 = vunpack.c.l.s4 1983009808
    %v2075 = vunpack.c.0.s8 %v2074
    %v2076 = vlaneseq
    %v2077 = vshrl.u32 %v2076, 7
    %v2078 = vsub.s32 %v2075, %v2077
    %v2079 = vrot.slane %v2071, %v2078
    %v2081 = vunpack.c.l.s4 1983009808
    %v2082 = vunpack.c.0.s8 %v2081
    %v2083 = vlaneseq
    %v2084 = vshrl.u32 %v2083, 7
    %v2085 = vsub.s32 %v2082, %v2084
    %v2086 = vrot.slane %v2072, %v2085
    %v2087 = vcombine.low %v2079, %v2086
    %v2088 = vcombine.low %v896, %v904
    %v2089 = vcombine.low %v912, %v911
    %v2091 = vunpack.c.l.s4 1983009808
    %v2092 = vunpack.c.0.s8 %v2091
    %v2093 = vlaneseq
    %v2094 = vshrl.u32 %v2093, 7
    %v2095 = vsub.s32 %v2092, %v2094
    %v2096 = vrot.slane %v2088, %v2095
    %v2098 = vunpack.c.l.s4 1983009808
    %v2099 = vunpack.c.0.s8 %v2098
    %v2100 = vlaneseq
    %v2101 = vshrl.u32 %v2100, 7
    %v2102 = vsub.s32 %v2099, %v2101
    %v2103 = vrot.slane %v2089, %v2102
    %v2104 = vcombine.low %v2096, %v2103
    %v2105 = vcombine.low %v913, %v921
    %v2106 = vcombine.low %v929, %v928
    %v2108 = vunpack.c.l.s4 1983009808
    %v2109 = vunpack.c.0.s8 %v2108
    %v2110 = vlaneseq
    %v2111 = vshrl.u32 %v2110, 7
    %v2112 = vsub.s32 %v2109, %v2111
    %v2113 = vrot.slane %v2105, %v2112
    %v2115 = vunpack.c.l.s4 1983009808
    %v2116 = vunpack.c.0.s8 %v2115
    %v2117 = vlaneseq
    %v2118 = vshrl.u32 %v2117, 7
    %v2119 = vsub.s32 %v2116, %v2118
    %v2120 = vrot.slane %v2106, %v2119
    %v2121 = vcombine.low %v2113, %v2120
    %v2122 = vcombine.low %v930, %v938
    %v2123 = vcombine.low %v946, %v945
    %v2125 = vunpack.c.l.s4 1983009808
    %v2126 = vunpack.c.0.s8 %v2125
    %v2127 = vlaneseq
    %v2128 = vshrl.u32 %v2127, 7
    %v2129 = vsub.s32 %v2126, %v2128
    %v2130 = vrot.slane %v2122, %v2129
    %v2132 = vunpack.c.l.s4 1983009808
    %v2133 = vunpack.c.0.s8 %v2132
    %v2134 = vlaneseq
    %v2135 = vshrl.u32 %v2134, 7
    %v2136 = vsub.s32 %v2133, %v2135
    %v2137 = vrot.slane %v2123, %v2136
    %v2138 = vcombine.low %v2130, %v2137
    %v2139 = vcombine.low %v947, %v955
    %v2140 = vcombine.low %v963, %v962
    %v2142 = vunpack.c.l.s4 1983009808
    %v2143 = vunpack.c.0.s8 %v2142
    %v2144 = vlaneseq
    %v2145 = vshrl.u32 %v2144, 7
    %v2146 = vsub.s32 %v2143, %v2145
    %v2147 = vrot.slane %v2139, %v2146
    %v2149 = vunpack.c.l.s4 1983009808
    %v2150 = vunpack.c.0.s8 %v2149
    %v2151 = vlaneseq
    %v2152 = vshrl.u32 %v2151, 7
    %v2153 = vsub.s32 %v2150, %v2152
    %v2154 = vrot.slane %v2140, %v2153
    %v2155 = vcombine.low %v2147, %v2154
    %v2156 = vcombine.low %v964, %v972
    %v2157 = vcombine.low %v980, %v979
    %v2159 = vunpack.c.l.s4 1983009808
    %v2160 = vunpack.c.0.s8 %v2159
    %v2161 = vlaneseq
    %v2162 = vshrl.u32 %v2161, 7
    %v2163 = vsub.s32 %v2160, %v2162
    %v2164 = vrot.slane %v2156, %v2163
    %v2166 = vunpack.c.l.s4 1983009808
    %v2167 = vunpack.c.0.s8 %v2166
    %v2168 = vlaneseq
    %v2169 = vshrl.u32 %v2168, 7
    %v2170 = vsub.s32 %v2167, %v2169
    %v2171 = vrot.slane %v2157, %v2170
    %v2172 = vcombine.low %v2164, %v2171
    %v2173 = vcombine.low %v988, %v996
    %v2174 = vcombine.low %v995, %v997
    %v2176 = vunpack.c.l.s4 1983009808
    %v2177 = vunpack.c.0.s8 %v2176
    %v2178 = vlaneseq
    %v2179 = vshrl.u32 %v2178, 7
    %v2180 = vsub.s32 %v2177, %v2179
    %v2181 = vrot.slane %v2173, %v2180
    %v2183 = vunpack.c.l.s4 1983009808
    %v2184 = vunpack.c.0.s8 %v2183
    %v2185 = vlaneseq
    %v2186 = vshrl.u32 %v2185, 7
    %v2187 = vsub.s32 %v2184, %v2186
    %v2188 = vrot.slane %v2174, %v2187
    %v2189 = vcombine.low %v2181, %v2188
    %v2190 = vcombine.low %v1005, %v1013
    %v2191 = vcombine.low %v1012, %v1014
    %v2193 = vunpack.c.l.s4 1983009808
    %v2194 = vunpack.c.0.s8 %v2193
    %v2195 = vlaneseq
    %v2196 = vshrl.u32 %v2195, 7
    %v2197 = vsub.s32 %v2194, %v2196
    %v2198 = vrot.slane %v2190, %v2197
    %v2200 = vunpack.c.l.s4 1983009808
    %v2201 = vunpack.c.0.s8 %v2200
    %v2202 = vlaneseq
    %v2203 = vshrl.u32 %v2202, 7
    %v2204 = vsub.s32 %v2201, %v2203
    %v2205 = vrot.slane %v2191, %v2204
    %v2206 = vcombine.low %v2198, %v2205
    %v2207 = vcombine.low %v1022, %v1030
    %v2208 = vcombine.low %v1029, %v1031
    %v2210 = vunpack.c.l.s4 1983009808
    %v2211 = vunpack.c.0.s8 %v2210
    %v2212 = vlaneseq
    %v2213 = vshrl.u32 %v2212, 7
    %v2214 = vsub.s32 %v2211, %v2213
    %v2215 = vrot.slane %v2207, %v2214
    %v2217 = vunpack.c.l.s4 1983009808
    %v2218 = vunpack.c.0.s8 %v2217
    %v2219 = vlaneseq
    %v2220 = vshrl.u32 %v2219, 7
    %v2221 = vsub.s32 %v2218, %v2220
    %v2222 = vrot.slane %v2208, %v2221
    %v2223 = vcombine.low %v2215, %v2222
    %v2224 = vcombine.low %v1039, %v1047
    %v2225 = vcombine.low %v1046, %v1048
    %v2227 = vunpack.c.l.s4 1983009808
    %v2228 = vunpack.c.0.s8 %v2227
    %v2229 = vlaneseq
    %v2230 = vshrl.u32 %v2229, 7
    %v2231 = vsub.s32 %v2228, %v2230
    %v2232 = vrot.slane %v2224, %v2231
    %v2234 = vunpack.c.l.s4 1983009808
    %v2235 = vunpack.c.0.s8 %v2234
    %v2236 = vlaneseq
    %v2237 = vshrl.u32 %v2236, 7
    %v2238 = vsub.s32 %v2235, %v2237
    %v2239 = vrot.slane %v2225, %v2238
    %v2240 = vcombine.low %v2232, %v2239
    %v2241 = vcombine.low %v1056, %v1064
    %v2242 = vcombine.low %v1063, %v1065
    %v2244 = vunpack.c.l.s4 1983009808
    %v2245 = vunpack.c.0.s8 %v2244
    %v2246 = vlaneseq
    %v2247 = vshrl.u32 %v2246, 7
    %v2248 = vsub.s32 %v2245, %v2247
    %v2249 = vrot.slane %v2241, %v2248
    %v2251 = vunpack.c.l.s4 1983009808
    %v2252 = vunpack.c.0.s8 %v2251
    %v2253 = vlaneseq
    %v2254 = vshrl.u32 %v2253, 7
    %v2255 = vsub.s32 %v2252, %v2254
    %v2256 = vrot.slane %v2242, %v2255
    %v2257 = vcombine.low %v2249, %v2256
    %v2258 = vcombine.low %v1073, %v1081
    %v2259 = vcombine.low %v1080, %v1089
    %v2261 = vunpack.c.l.s4 1983009808
    %v2262 = vunpack.c.0.s8 %v2261
    %v2263 = vlaneseq
    %v2264 = vshrl.u32 %v2263, 7
    %v2265 = vsub.s32 %v2262, %v2264
    %v2266 = vrot.slane %v2258, %v2265
    %v2268 = vunpack.c.l.s4 1983009808
    %v2269 = vunpack.c.0.s8 %v2268
    %v2270 = vlaneseq
    %v2271 = vshrl.u32 %v2270, 7
    %v2272 = vsub.s32 %v2269, %v2271
    %v2273 = vrot.slane %v2259, %v2272
    %v2274 = vcombine.low %v2266, %v2273
    %v2275 = vcombine.low %v1097, %v1096
    %v2276 = vcombine.low %v1098, %v1106
    %v2278 = vunpack.c.l.s4 1983009808
    %v2279 = vunpack.c.0.s8 %v2278
    %v2280 = vlaneseq
    %v2281 = vshrl.u32 %v2280, 7
    %v2282 = vsub.s32 %v2279, %v2281
    %v2283 = vrot.slane %v2275, %v2282
    %v2285 = vunpack.c.l.s4 1983009808
    %v2286 = vunpack.c.0.s8 %v2285
    %v2287 = vlaneseq
    %v2288 = vshrl.u32 %v2287, 7
    %v2289 = vsub.s32 %v2286, %v2288
    %v2290 = vrot.slane %v2276, %v2289
    %v2291 = vcombine.low %v2283, %v2290
    %v2292 = vcombine.low %v1114, %v1113
    %v2293 = vcombine.low %v1115, %v1123
    %v2295 = vunpack.c.l.s4 1983009808
    %v2296 = vunpack.c.0.s8 %v2295
    %v2297 = vlaneseq
    %v2298 = vshrl.u32 %v2297, 7
    %v2299 = vsub.s32 %v2296, %v2298
    %v2300 = vrot.slane %v2292, %v2299
    %v2302 = vunpack.c.l.s4 1983009808
    %v2303 = vunpack.c.0.s8 %v2302
    %v2304 = vlaneseq
    %v2305 = vshrl.u32 %v2304, 7
    %v2306 = vsub.s32 %v2303, %v2305
    %v2307 = vrot.slane %v2293, %v2306
    %v2308 = vcombine.low %v2300, %v2307
    %v2309 = vcombine.low %v1131, %v1130
    %v2310 = vcombine.low %v1132, %v1140
    %v2312 = vunpack.c.l.s4 1983009808
    %v2313 = vunpack.c.0.s8 %v2312
    %v2314 = vlaneseq
    %v2315 = vshrl.u32 %v2314, 7
    %v2316 = vsub.s32 %v2313, %v2315
    %v2317 = vrot.slane %v2309, %v2316
    %v2319 = vunpack.c.l.s4 1983009808
    %v2320 = vunpack.c.0.s8 %v2319
    %v2321 = vlaneseq
    %v2322 = vshrl.u32 %v2321, 7
    %v2323 = vsub.s32 %v2320, %v2322
    %v2324 = vrot.slane %v2310, %v2323
    %v2325 = vcombine.low %v2317, %v2324
    %v2326 = vcombine.low %v1148, %v1147
    %v2327 = vcombine.low %v1149, %v1157
    %v2329 = vunpack.c.l.s4 1983009808
    %v2330 = vunpack.c.0.s8 %v2329
    %v2331 = vlaneseq
    %v2332 = vshrl.u32 %v2331, 7
    %v2333 = vsub.s32 %v2330, %v2332
    %v2334 = vrot.slane %v2326, %v2333
    %v2336 = vunpack.c.l.s4 1983009808
    %v2337 = vunpack.c.0.s8 %v2336
    %v2338 = vlaneseq
    %v2339 = vshrl.u32 %v2338, 7
    %v2340 = vsub.s32 %v2337, %v2339
    %v2341 = vrot.slane %v2327, %v2340
    %v2342 = vcombine.low %v2334, %v2341
    %v2343 = vcombine.low %v1165, %v1164
    %v2344 = vcombine.low %v1166, %v1174
    %v2346 = vunpack.c.l.s4 1983009808
    %v2347 = vunpack.c.0.s8 %v2346
    %v2348 = vlaneseq
    %v2349 = vshrl.u32 %v2348, 7
    %v2350 = vsub.s32 %v2347, %v2349
    %v2351 = vrot.slane %v2343, %v2350
    %v2353 = vunpack.c.l.s4 1983009808
    %v2354 = vunpack.c.0.s8 %v2353
    %v2355 = vlaneseq
    %v2356 = vshrl.u32 %v2355, 7
    %v2357 = vsub.s32 %v2354, %v2356
    %v2358 = vrot.slane %v2344, %v2357
    %v2359 = vcombine.low %v2351, %v2358
    %v2360 = vcombine.low %v1182, %v1181
    %v2361 = vcombine.low %v1190, %v1198
    %v2363 = vunpack.c.l.s4 1983009808
    %v2364 = vunpack.c.0.s8 %v2363
    %v2365 = vlaneseq
    %v2366 = vshrl.u32 %v2365, 7
    %v2367 = vsub.s32 %v2364, %v2366
    %v2368 = vrot.slane %v2360, %v2367
    %v2370 = vunpack.c.l.s4 1983009808
    %v2371 = vunpack.c.0.s8 %v2370
    %v2372 = vlaneseq
    %v2373 = vshrl.u32 %v2372, 7
    %v2374 = vsub.s32 %v2371, %v2373
    %v2375 = vrot.slane %v2361, %v2374
    %v2376 = vcombine.low %v2368, %v2375
    %v2377 = vcombine.low %v1197, %v1199
    %v2378 = vcombine.low %v1207, %v1215
    %v2380 = vunpack.c.l.s4 1983009808
    %v2381 = vunpack.c.0.s8 %v2380
    %v2382 = vlaneseq
    %v2383 = vshrl.u32 %v2382, 7
    %v2384 = vsub.s32 %v2381, %v2383
    %v2385 = vrot.slane %v2377, %v2384
    %v2387 = vunpack.c.l.s4 1983009808
    %v2388 = vunpack.c.0.s8 %v2387
    %v2389 = vlaneseq
    %v2390 = vshrl.u32 %v2389, 7
    %v2391 = vsub.s32 %v2388, %v2390
    %v2392 = vrot.slane %v2378, %v2391
    %v2393 = vcombine.low %v2385, %v2392
    %v2394 = vcombine.low %v1214, %v1216
    %v2395 = vcombine.low %v1224, %v1232
    %v2397 = vunpack.c.l.s4 1983009808
    %v2398 = vunpack.c.0.s8 %v2397
    %v2399 = vlaneseq
    %v2400 = vshrl.u32 %v2399, 7
    %v2401 = vsub.s32 %v2398, %v2400
    %v2402 = vrot.slane %v2394, %v2401
    %v2404 = vunpack.c.l.s4 1983009808
    %v2405 = vunpack.c.0.s8 %v2404
    %v2406 = vlaneseq
    %v2407 = vshrl.u32 %v2406, 7
    %v2408 = vsub.s32 %v2405, %v2407
    %v2409 = vrot.slane %v2395, %v2408
    %v2410 = vcombine.low %v2402, %v2409
    %v2411 = vcombine.low %v1231, %v1233
    %v2412 = vcombine.low %v1241, %v1249
    %v2414 = vunpack.c.l.s4 1983009808
    %v2415 = vunpack.c.0.s8 %v2414
    %v2416 = vlaneseq
    %v2417 = vshrl.u32 %v2416, 7
    %v2418 = vsub.s32 %v2415, %v2417
    %v2419 = vrot.slane %v2411, %v2418
    %v2421 = vunpack.c.l.s4 1983009808
    %v2422 = vunpack.c.0.s8 %v2421
    %v2423 = vlaneseq
    %v2424 = vshrl.u32 %v2423, 7
    %v2425 = vsub.s32 %v2422, %v2424
    %v2426 = vrot.slane %v2412, %v2425
    %v2427 = vcombine.low %v2419, %v2426
    %v2428 = vcombine.low %v1248, %v1250
    %v2429 = vcombine.low %v1258, %v1266
    %v2431 = vunpack.c.l.s4 1983009808
    %v2432 = vunpack.c.0.s8 %v2431
    %v2433 = vlaneseq
    %v2434 = vshrl.u32 %v2433, 7
    %v2435 = vsub.s32 %v2432, %v2434
    %v2436 = vrot.slane %v2428, %v2435
    %v2438 = vunpack.c.l.s4 1983009808
    %v2439 = vunpack.c.0.s8 %v2438
    %v2440 = vlaneseq
    %v2441 = vshrl.u32 %v2440, 7
    %v2442 = vsub.s32 %v2439, %v2441
    %v2443 = vrot.slane %v2429, %v2442
    %v2444 = vcombine.low %v2436, %v2443
    %v2445 = vcombine.low %v1265, %v1267
    %v2446 = vcombine.low %v1275, %v1283
    %v2448 = vunpack.c.l.s4 1983009808
    %v2449 = vunpack.c.0.s8 %v2448
    %v2450 = vlaneseq
    %v2451 = vshrl.u32 %v2450, 7
    %v2452 = vsub.s32 %v2449, %v2451
    %v2453 = vrot.slane %v2445, %v2452
    %v2455 = vunpack.c.l.s4 1983009808
    %v2456 = vunpack.c.0.s8 %v2455
    %v2457 = vlaneseq
    %v2458 = vshrl.u32 %v2457, 7
    %v2459 = vsub.s32 %v2456, %v2458
    %v2460 = vrot.slane %v2446, %v2459
    %v2461 = vcombine.low %v2453, %v2460
    %v2462 = vcombine.low %v1282, %v1291
    %v2463 = vcombine.low %v1299, %v1298
    %v2465 = vunpack.c.l.s4 1983009808
    %v2466 = vunpack.c.0.s8 %v2465
    %v2467 = vlaneseq
    %v2468 = vshrl.u32 %v2467, 7
    %v2469 = vsub.s32 %v2466, %v2468
    %v2470 = vrot.slane %v2462, %v2469
    %v2472 = vunpack.c.l.s4 1983009808
    %v2473 = vunpack.c.0.s8 %v2472
    %v2474 = vlaneseq
    %v2475 = vshrl.u32 %v2474, 7
    %v2476 = vsub.s32 %v2473, %v2475
    %v2477 = vrot.slane %v2463, %v2476
    %v2478 = vcombine.low %v2470, %v2477
    %v2479 = vcombine.low %v1300, %v1308
    %v2480 = vcombine.low %v1316, %v1315
    %v2482 = vunpack.c.l.s4 1983009808
    %v2483 = vunpack.c.0.s8 %v2482
    %v2484 = vlaneseq
    %v2485 = vshrl.u32 %v2484, 7
    %v2486 = vsub.s32 %v2483, %v2485
    %v2487 = vrot.slane %v2479, %v2486
    %v2489 = vunpack.c.l.s4 1983009808
    %v2490 = vunpack.c.0.s8 %v2489
    %v2491 = vlaneseq
    %v2492 = vshrl.u32 %v2491, 7
    %v2493 = vsub.s32 %v2490, %v2492
    %v2494 = vrot.slane %v2480, %v2493
    %v2495 = vcombine.low %v2487, %v2494
    %v2496 = vcombine.low %v1317, %v1325
    %v2497 = vcombine.low %v1333, %v1332
    %v2499 = vunpack.c.l.s4 1983009808
    %v2500 = vunpack.c.0.s8 %v2499
    %v2501 = vlaneseq
    %v2502 = vshrl.u32 %v2501, 7
    %v2503 = vsub.s32 %v2500, %v2502
    %v2504 = vrot.slane %v2496, %v2503
    %v2506 = vunpack.c.l.s4 1983009808
    %v2507 = vunpack.c.0.s8 %v2506
    %v2508 = vlaneseq
    %v2509 = vshrl.u32 %v2508, 7
    %v2510 = vsub.s32 %v2507, %v2509
    %v2511 = vrot.slane %v2497, %v2510
    %v2512 = vcombine.low %v2504, %v2511
    %v2513 = vcombine.low %v1334, %v1342
    %v2514 = vcombine.low %v1350, %v1349
    %v2516 = vunpack.c.l.s4 1983009808
    %v2517 = vunpack.c.0.s8 %v2516
    %v2518 = vlaneseq
    %v2519 = vshrl.u32 %v2518, 7
    %v2520 = vsub.s32 %v2517, %v2519
    %v2521 = vrot.slane %v2513, %v2520
    %v2523 = vunpack.c.l.s4 1983009808
    %v2524 = vunpack.c.0.s8 %v2523
    %v2525 = vlaneseq
    %v2526 = vshrl.u32 %v2525, 7
    %v2527 = vsub.s32 %v2524, %v2526
    %v2528 = vrot.slane %v2514, %v2527
    %v2529 = vcombine.low %v2521, %v2528
    %v2530 = vcombine.low %v1351, %v1359
    %v2531 = vcombine.low %v1367, %v1366
    %v2533 = vunpack.c.l.s4 1983009808
    %v2534 = vunpack.c.0.s8 %v2533
    %v2535 = vlaneseq
    %v2536 = vshrl.u32 %v2535, 7
    %v2537 = vsub.s32 %v2534, %v2536
    %v2538 = vrot.slane %v2530, %v2537
    %v2540 = vunpack.c.l.s4 1983009808
    %v2541 = vunpack.c.0.s8 %v2540
    %v2542 = vlaneseq
    %v2543 = vshrl.u32 %v2542, 7
    %v2544 = vsub.s32 %v2541, %v2543
    %v2545 = vrot.slane %v2531, %v2544
    %v2546 = vcombine.low %v2538, %v2545
    %v2547 = vcombine.low %v1368, %v1376
    %v2548 = vcombine.low %v1384, %v1383
    %v2550 = vunpack.c.l.s4 1983009808
    %v2551 = vunpack.c.0.s8 %v2550
    %v2552 = vlaneseq
    %v2553 = vshrl.u32 %v2552, 7
    %v2554 = vsub.s32 %v2551, %v2553
    %v2555 = vrot.slane %v2547, %v2554
    %v2557 = vunpack.c.l.s4 1983009808
    %v2558 = vunpack.c.0.s8 %v2557
    %v2559 = vlaneseq
    %v2560 = vshrl.u32 %v2559, 7
    %v2561 = vsub.s32 %v2558, %v2560
    %v2562 = vrot.slane %v2548, %v2561
    %v2563 = vcombine.low %v2555, %v2562
    %vm2564 = vcmask 375808
    %v2565 = vsel %vm2564, %v1407, 0
    %v2567 = vsel %vm2564, %v1424, 0
    %v2569 = vsel %vm2564, %v1441, 0
    %v2571 = vsel %vm2564, %v1458, 0
    %v2573 = vsel %vm2564, %v1475, 0
    %v2575 = vsel %vm2564, %v1492, 0
    %v2577 = vsel %vm2564, %v1509, 0
    %v2579 = vsel %vm2564, %v1526, 0
    %v2581 = vsel %vm2564, %v1543, 0
    %v2583 = vsel %vm2564, %v1560, 0
    %v2585 = vsel %vm2564, %v1577, 0
    %v2587 = vsel %vm2564, %v1594, 0
    %v2589 = vsel %vm2564, %v1611, 0
    %v2591 = vsel %vm2564, %v1628, 0
    %v2593 = vsel %vm2564, %v1645, 0
    %v2595 = vsel %vm2564, %v1662, 0
    %v2597 = vsel %vm2564, %v1679, 0
    %v2599 = vsel %vm2564, %v1696, 0
    %v2601 = vsel %vm2564, %v1713, 0
    %v2603 = vsel %vm2564, %v1730, 0
    %v2605 = vsel %vm2564, %v1747, 0
    %v2607 = vsel %vm2564, %v1764, 0
    %v2609 = vsel %vm2564, %v1781, 0
    %v2611 = vsel %vm2564, %v1798, 0
    %v2613 = vsel %vm2564, %v1815, 0
    %v2615 = vsel %vm2564, %v1832, 0
    %v2617 = vsel %vm2564, %v1849, 0
    %v2619 = vsel %vm2564, %v1866, 0
    %v2621 = vsel %vm2564, %v1883, 0
    %v2623 = vsel %vm2564, %v1900, 0
    %v2625 = vsel %vm2564, %v1917, 0
    %v2627 = vsel %vm2564, %v1934, 0
    %v2629 = vsel %vm2564, %v1951, 0
    %v2631 = vsel %vm2564, %v1968, 0
    %v2633 = vsel %vm2564, %v1985, 0
    %v2635 = vsel %vm2564, %v2002, 0
    %v2637 = vsel %vm2564, %v2019, 0
    %v2639 = vsel %vm2564, %v2036, 0
    %v2641 = vsel %vm2564, %v2053, 0
    %v2643 = vsel %vm2564, %v2070, 0
    %v2645 = vsel %vm2564, %v2087, 0
    %v2647 = vsel %vm2564, %v2104, 0
    %v2649 = vsel %vm2564, %v2121, 0
    %v2651 = vsel %vm2564, %v2138, 0
    %v2653 = vsel %vm2564, %v2155, 0
    %v2655 = vsel %vm2564, %v2172, 0
    %v2657 = vsel %vm2564, %v2189, 0
    %v2659 = vsel %vm2564, %v2206, 0
    %v2661 = vsel %vm2564, %v2223, 0
    %v2663 = vsel %vm2564, %v2240, 0
    %v2665 = vsel %vm2564, %v2257, 0
    %v2667 = vsel %vm2564, %v2274, 0
    %v2669 = vsel %vm2564, %v2291, 0
    %v2671 = vsel %vm2564, %v2308, 0
    %v2673 = vsel %vm2564, %v2325, 0
    %v2675 = vsel %vm2564, %v2342, 0
    %v2677 = vsel %vm2564, %v2359, 0
    %v2679 = vsel %vm2564, %v2376, 0
    %v2681 = vsel %vm2564, %v2393, 0
    %v2683 = vsel %vm2564, %v2410, 0
    %v2685 = vsel %vm2564, %v2427, 0
    %v2687 = vsel %vm2564, %v2444, 0
    %v2689 = vsel %vm2564, %v2461, 0
    %v2691 = vsel %vm2564, %v2478, 0
    %v2693 = vsel %vm2564, %v2495, 0
    %v2695 = vsel %vm2564, %v2512, 0
    %v2697 = vsel %vm2564, %v2529, 0
    %v2699 = vsel %vm2564, %v2546, 0
    %v2701 = vsel %vm2564, %v2563, 0
    %vm2703 = vcmask 1045504
    %v2705 = vsel %vm2703, %v1390, 0
    %2707 = vmatprep.subr.mxu0 0.0
    %2708 = vmatpush1.msra.mxu0 %v1385
    %2709 = vmatprep.subr.mxu0 0.0
    %2710 = vmatpush1.msra.mxu0 %v1386
    %2711 = vmatprep.subr.mxu0 0.0
    %2712 = vmatpush1.msra.mxu0 %v1387
    %2713 = vmatprep.subr.mxu0 0.0
    %2714 = vmatpush1.msra.mxu0 %v1388
    %2715 = vmatprep.subr.mxu0 0.0
    %2716 = vmatpush1.msra.mxu0 %v1389
    %2717 = vmatprep.subr.mxu0 0.0
    %2718 = vmatpush1.msra.mxu0 %v2705
    %2719 = vmatprep.subr.mxu0 0.0
    %2720 = vmatpush1.msra.mxu0 0.0
    %2721 = vmatprep.subr.mxu0 0.0
    %2722 = vmatpush1.msra.mxu0 0.0
    %2723 = vmatprep.subr.mxu0 0.0
    %2724 = vmatpush1.msra.mxu0 0.0
    %2725 = vmatprep.subr.mxu0 0.0
    %2726 = vmatpush1.msra.mxu0 0.0
    %2727 = vmatprep.subr.mxu0 0.0
    %2728 = vmatpush1.msra.mxu0 0.0
    %2729 = vmatprep.subr.mxu0 0.0
    %2730 = vmatpush1.msra.mxu0 0.0
    %2731 = vmatprep.subr.mxu0 0.0
    %2732 = vmatpush1.msra.mxu0 0.0
    %2733 = vmatprep.subr.mxu0 0.0
    %2734 = vmatpush1.msra.mxu0 0.0
    %2735 = vmatprep.subr.mxu0 0.0
    %2736 = vmatpush1.msra.mxu0 0.0
    %2737 = vmatprep.subr.mxu0 0.0
    %2738 = vmatpush1.msra.mxu0 0.0
    %2739 = vmatprep.subr.mxu0 0.0
    %2740 = vmatpush1.msra.mxu0 0.0
    %2741 = vmatprep.subr.mxu0 0.0
    %2742 = vmatpush1.msra.mxu0 0.0
    %2743 = vmatprep.subr.mxu0 0.0
    %2744 = vmatpush1.msra.mxu0 0.0
    %2745 = vmatprep.subr.mxu0 0.0
    %2746 = vmatpush1.msra.mxu0 0.0
    %2747 = vmatprep.subr.mxu0 0.0
    %2748 = vmatpush1.msra.mxu0 0.0
    %2749 = vmatprep.subr.mxu0 0.0
    %2750 = vmatpush1.msra.mxu0 0.0
    %2751 = vmatprep.subr.mxu0 0.0
    %2752 = vmatpush1.msra.mxu0 0.0
    %2753 = vmatprep.subr.mxu0 0.0
    %2754 = vmatpush1.msra.mxu0 0.0
    %2755 = vmatprep.subr.mxu0 0.0
    %2756 = vmatpush1.msra.mxu0 0.0
    %2757 = vmatprep.subr.mxu0 0.0
    %2758 = vmatpush1.msra.mxu0 0.0
    %2759 = vmatprep.subr.mxu0 0.0
    %2760 = vmatpush1.msra.mxu0 0.0
    %2761 = vmatprep.subr.mxu0 0.0
    %2762 = vmatpush1.msra.mxu0 0.0
    %2763 = vmatprep.subr.mxu0 0.0
    %2764 = vmatpush1.msra.mxu0 0.0
    %2765 = vmatprep.subr.mxu0 0.0
    %2766 = vmatpush1.msra.mxu0 0.0
    %2767 = vmatprep.subr.mxu0 0.0
    %2768 = vmatpush1.msra.mxu0 0.0
    %2769 = vmatprep.subr.mxu0 0.0
    %2770 = vmatpush1.msra.mxu0 0.0
    %2771 = vmatprep.mubr.f32.mxu0 0.0
    %2772 = vmatmul.mubr.f32.gmra.mrb[0].mxu0 %v2565
    %v2773 = vpop.f32.mrb[0].mxu0
    %v2774 = vadd.f32 0.0, %v2773
    %v2775 = vpop.f32.mrb[0].mxu0
    %2776 = vmatprep.mubr.f32.mxu0 0.0
    %2777 = vmatmul.mubr.f32.gmra.mrb[0].mxu0 %v2567
    %v2778 = vpop.f32.mrb[0].mxu0
    %v2779 = vadd.f32 0.0, %v2778
    %v2780 = vpop.f32.mrb[0].mxu0
    %2781 = vmatprep.mubr.f32.mxu0 0.0
    %2782 = vmatmul.mubr.f32.gmra.mrb[0].mxu0 %v2569
    %v2783 = vpop.f32.mrb[0].mxu0
    %v2784 = vadd.f32 0.0, %v2783
    %v2785 = vpop.f32.mrb[0].mxu0
    %2786 = vmatprep.mubr.f32.mxu0 0.0
    %2787 = vmatmul.mubr.f32.gmra.mrb[0].mxu0 %v2571
    %v2788 = vpop.f32.mrb[0].mxu0
    %v2789 = vadd.f32 0.0, %v2788
    %v2790 = vpop.f32.mrb[0].mxu0
    %2791 = vmatprep.mubr.f32.mxu0 0.0
    %2792 = vmatmul.mubr.f32.gmra.mrb[0].mxu0 %v2573
    %v2793 = vpop.f32.mrb[0].mxu0
    %v2794 = vadd.f32 0.0, %v2793
    %v2795 = vpop.f32.mrb[0].mxu0
    %2796 = vmatprep.mubr.f32.mxu0 0.0
    %2797 = vmatmul.mubr.f32.gmra.mrb[0].mxu0 %v2575
    %v2798 = vpop.f32.mrb[0].mxu0
    %v2799 = vadd.f32 0.0, %v2798
    %v2800 = vpop.f32.mrb[0].mxu0
    %2801 = vmatprep.mubr.f32.mxu0 0.0
    %2802 = vmatmul.mubr.f32.gmra.mrb[0].mxu0 %v2577
    %v2803 = vpop.f32.mrb[0].mxu0
    %v2804 = vadd.f32 0.0, %v2803
    %v2805 = vpop.f32.mrb[0].mxu0
    %2806 = vmatprep.mubr.f32.mxu0 0.0
    %2807 = vmatmul.mubr.f32.gmra.mrb[0].mxu0 %v2579
    %v2808 = vpop.f32.mrb[0].mxu0
    %v2809 = vadd.f32 0.0, %v2808
    %v2810 = vpop.f32.mrb[0].mxu0
    %2811 = vmatprep.mubr.f32.mxu0 0.0
    %2812 = vmatmul.mubr.f32.gmra.mrb[0].mxu0 %v2581
    %v2813 = vpop.f32.mrb[0].mxu0
    %v2814 = vadd.f32 0.0, %v2813
    %v2815 = vpop.f32.mrb[0].mxu0
    %2816 = vmatprep.mubr.f32.mxu0 0.0
    %2817 = vmatmul.mubr.f32.gmra.mrb[0].mxu0 %v2583
    %v2818 = vpop.f32.mrb[0].mxu0
    %v2819 = vadd.f32 0.0, %v2818
    %v2820 = vpop.f32.mrb[0].mxu0
    %2821 = vmatprep.mubr.f32.mxu0 0.0
    %2822 = vmatmul.mubr.f32.gmra.mrb[0].mxu0 %v2585
    %v2823 = vpop.f32.mrb[0].mxu0
    %v2824 = vadd.f32 0.0, %v2823
    %v2825 = vpop.f32.mrb[0].mxu0
    %2826 = vmatprep.mubr.f32.mxu0 0.0
    %2827 = vmatmul.mubr.f32.gmra.mrb[0].mxu0 %v2587
    %v2828 = vpop.f32.mrb[0].mxu0
    %v2829 = vadd.f32 0.0, %v2828
    %v2830 = vpop.f32.mrb[0].mxu0
    %2831 = vmatprep.mubr.f32.mxu0 0.0
    %2832 = vmatmul.mubr.f32.gmra.mrb[0].mxu0 %v2589
    %v2833 = vpop.f32.mrb[0].mxu0
    %v2834 = vadd.f32 0.0, %v2833
    %v2835 = vpop.f32.mrb[0].mxu0
    %2836 = vmatprep.mubr.f32.mxu0 0.0
    %2837 = vmatmul.mubr.f32.gmra.mrb[0].mxu0 %v2591
    %v2838 = vpop.f32.mrb[0].mxu0
    %v2839 = vadd.f32 0.0, %v2838
    %v2840 = vpop.f32.mrb[0].mxu0
    %2841 = vmatprep.mubr.f32.mxu0 0.0
    %2842 = vmatmul.mubr.f32.gmra.mrb[0].mxu0 %v2593
    %v2843 = vpop.f32.mrb[0].mxu0
    %v2844 = vadd.f32 0.0, %v2843
    %v2845 = vpop.f32.mrb[0].mxu0
    %2846 = vmatprep.mubr.f32.mxu0 0.0
    %2847 = vmatmul.mubr.f32.gmra.mrb[0].mxu0 %v2595
    %v2848 = vpop.f32.mrb[0].mxu0
    %v2849 = vadd.f32 0.0, %v2848
    %v2850 = vpop.f32.mrb[0].mxu0
    %2851 = vmatprep.mubr.f32.mxu0 0.0
    %2852 = vmatmul.mubr.f32.gmra.mrb[0].mxu0 %v2597
    %v2853 = vpop.f32.mrb[0].mxu0
    %v2854 = vadd.f32 0.0, %v2853
    %v2855 = vpop.f32.mrb[0].mxu0
    %2856 = vmatprep.mubr.f32.mxu0 0.0
    %2857 = vmatmul.mubr.f32.gmra.mrb[0].mxu0 %v2599
    %v2858 = vpop.f32.mrb[0].mxu0
    %v2859 = vadd.f32 0.0, %v2858
    %v2860 = vpop.f32.mrb[0].mxu0
    %2861 = vmatprep.mubr.f32.mxu0 0.0
    %2862 = vmatmul.mubr.f32.gmra.mrb[0].mxu0 %v2601
    %v2863 = vpop.f32.mrb[0].mxu0
    %v2864 = vadd.f32 0.0, %v2863
    %v2865 = vpop.f32.mrb[0].mxu0
    %2866 = vmatprep.mubr.f32.mxu0 0.0
    %2867 = vmatmul.mubr.f32.gmra.mrb[0].mxu0 %v2603
    %v2868 = vpop.f32.mrb[0].mxu0
    %v2869 = vadd.f32 0.0, %v2868
    %v2870 = vpop.f32.mrb[0].mxu0
    %2871 = vmatprep.mubr.f32.mxu0 0.0
    %2872 = vmatmul.mubr.f32.gmra.mrb[0].mxu0 %v2605
    %v2873 = vpop.f32.mrb[0].mxu0
    %v2874 = vadd.f32 0.0, %v2873
    %v2875 = vpop.f32.mrb[0].mxu0
    %2876 = vmatprep.mubr.f32.mxu0 0.0
    %2877 = vmatmul.mubr.f32.gmra.mrb[0].mxu0 %v2607
    %v2878 = vpop.f32.mrb[0].mxu0
    %v2879 = vadd.f32 0.0, %v2878
    %v2880 = vpop.f32.mrb[0].mxu0
    %2881 = vmatprep.mubr.f32.mxu0 0.0
    %2882 = vmatmul.mubr.f32.gmra.mrb[0].mxu0 %v2609
    %v2883 = vpop.f32.mrb[0].mxu0
    %v2884 = vadd.f32 0.0, %v2883
    %v2885 = vpop.f32.mrb[0].mxu0
    %2886 = vmatprep.mubr.f32.mxu0 0.0
    %2887 = vmatmul.mubr.f32.gmra.mrb[0].mxu0 %v2611
    %v2888 = vpop.f32.mrb[0].mxu0
    %v2889 = vadd.f32 0.0, %v2888
    %v2890 = vpop.f32.mrb[0].mxu0
    %2891 = vmatprep.mubr.f32.mxu0 0.0
    %2892 = vmatmul.mubr.f32.gmra.mrb[0].mxu0 %v2613
    %v2893 = vpop.f32.mrb[0].mxu0
    %v2894 = vadd.f32 0.0, %v2893
    %v2895 = vpop.f32.mrb[0].mxu0
    %2896 = vmatprep.mubr.f32.mxu0 0.0
    %2897 = vmatmul.mubr.f32.gmra.mrb[0].mxu0 %v2615
    %v2898 = vpop.f32.mrb[0].mxu0
    %v2899 = vadd.f32 0.0, %v2898
    %v2900 = vpop.f32.mrb[0].mxu0
    %2901 = vmatprep.mubr.f32.mxu0 0.0
    %2902 = vmatmul.mubr.f32.gmra.mrb[0].mxu0 %v2617
    %v2903 = vpop.f32.mrb[0].mxu0
    %v2904 = vadd.f32 0.0, %v2903
    %v2905 = vpop.f32.mrb[0].mxu0
    %2906 = vmatprep.mubr.f32.mxu0 0.0
    %2907 = vmatmul.mubr.f32.gmra.mrb[0].mxu0 %v2619
    %v2908 = vpop.f32.mrb[0].mxu0
    %v2909 = vadd.f32 0.0, %v2908
    %v2910 = vpop.f32.mrb[0].mxu0
    %2911 = vmatprep.mubr.f32.mxu0 0.0
    %2912 = vmatmul.mubr.f32.gmra.mrb[0].mxu0 %v2621
    %v2913 = vpop.f32.mrb[0].mxu0
    %v2914 = vadd.f32 0.0, %v2913
    %v2915 = vpop.f32.mrb[0].mxu0
    %2916 = vmatprep.mubr.f32.mxu0 0.0
    %2917 = vmatmul.mubr.f32.gmra.mrb[0].mxu0 %v2623
    %v2918 = vpop.f32.mrb[0].mxu0
    %v2919 = vadd.f32 0.0, %v2918
    %v2920 = vpop.f32.mrb[0].mxu0
    %2921 = vmatprep.mubr.f32.mxu0 0.0
    %2922 = vmatmul.mubr.f32.gmra.mrb[0].mxu0 %v2625
    %v2923 = vpop.f32.mrb[0].mxu0
    %v2924 = vadd.f32 0.0, %v2923
    %v2925 = vpop.f32.mrb[0].mxu0
    %2926 = vmatprep.mubr.f32.mxu0 0.0
    %2927 = vmatmul.mubr.f32.gmra.mrb[0].mxu0 %v2627
    %v2928 = vpop.f32.mrb[0].mxu0
    %v2929 = vadd.f32 0.0, %v2928
    %v2930 = vpop.f32.mrb[0].mxu0
    %2931 = vmatprep.mubr.f32.mxu0 0.0
    %2932 = vmatmul.mubr.f32.gmra.mrb[0].mxu0 %v2629
    %v2933 = vpop.f32.mrb[0].mxu0
    %v2934 = vadd.f32 0.0, %v2933
    %v2935 = vpop.f32.mrb[0].mxu0
    %2936 = vmatprep.mubr.f32.mxu0 0.0
    %2937 = vmatmul.mubr.f32.gmra.mrb[0].mxu0 %v2631
    %v2938 = vpop.f32.mrb[0].mxu0
    %v2939 = vadd.f32 0.0, %v2938
    %v2940 = vpop.f32.mrb[0].mxu0
    %2941 = vmatprep.mubr.f32.mxu0 0.0
    %2942 = vmatmul.mubr.f32.gmra.mrb[0].mxu0 %v2633
    %v2943 = vpop.f32.mrb[0].mxu0
    %v2944 = vadd.f32 0.0, %v2943
    %v2945 = vpop.f32.mrb[0].mxu0
    %2946 = vmatprep.mubr.f32.mxu0 0.0
    %2947 = vmatmul.mubr.f32.gmra.mrb[0].mxu0 %v2635
    %v2948 = vpop.f32.mrb[0].mxu0
    %v2949 = vadd.f32 0.0, %v2948
    %v2950 = vpop.f32.mrb[0].mxu0
    %2951 = vmatprep.mubr.f32.mxu0 0.0
    %2952 = vmatmul.mubr.f32.gmra.mrb[0].mxu0 %v2637
    %v2953 = vpop.f32.mrb[0].mxu0
    %v2954 = vadd.f32 0.0, %v2953
    %v2955 = vpop.f32.mrb[0].mxu0
    %2956 = vmatprep.mubr.f32.mxu0 0.0
    %2957 = vmatmul.mubr.f32.gmra.mrb[0].mxu0 %v2639
    %v2958 = vpop.f32.mrb[0].mxu0
    %v2959 = vadd.f32 0.0, %v2958
    %v2960 = vpop.f32.mrb[0].mxu0
    %2961 = vmatprep.mubr.f32.mxu0 0.0
    %2962 = vmatmul.mubr.f32.gmra.mrb[0].mxu0 %v2641
    %v2963 = vpop.f32.mrb[0].mxu0
    %v2964 = vadd.f32 0.0, %v2963
    %v2965 = vpop.f32.mrb[0].mxu0
    %2966 = vmatprep.mubr.f32.mxu0 0.0
    %2967 = vmatmul.mubr.f32.gmra.mrb[0].mxu0 %v2643
    %v2968 = vpop.f32.mrb[0].mxu0
    %v2969 = vadd.f32 0.0, %v2968
    %v2970 = vpop.f32.mrb[0].mxu0
    %2971 = vmatprep.mubr.f32.mxu0 0.0
    %2972 = vmatmul.mubr.f32.gmra.mrb[0].mxu0 %v2645
    %v2973 = vpop.f32.mrb[0].mxu0
    %v2974 = vadd.f32 0.0, %v2973
    %v2975 = vpop.f32.mrb[0].mxu0
    %2976 = vmatprep.mubr.f32.mxu0 0.0
    %2977 = vmatmul.mubr.f32.gmra.mrb[0].mxu0 %v2647
    %v2978 = vpop.f32.mrb[0].mxu0
    %v2979 = vadd.f32 0.0, %v2978
    %v2980 = vpop.f32.mrb[0].mxu0
    %2981 = vmatprep.mubr.f32.mxu0 0.0
    %2982 = vmatmul.mubr.f32.gmra.mrb[0].mxu0 %v2649
    %v2983 = vpop.f32.mrb[0].mxu0
    %v2984 = vadd.f32 0.0, %v2983
    %v2985 = vpop.f32.mrb[0].mxu0
    %2986 = vmatprep.mubr.f32.mxu0 0.0
    %2987 = vmatmul.mubr.f32.gmra.mrb[0].mxu0 %v2651
    %v2988 = vpop.f32.mrb[0].mxu0
    %v2989 = vadd.f32 0.0, %v2988
    %v2990 = vpop.f32.mrb[0].mxu0
    %2991 = vmatprep.mubr.f32.mxu0 0.0
    %2992 = vmatmul.mubr.f32.gmra.mrb[0].mxu0 %v2653
    %v2993 = vpop.f32.mrb[0].mxu0
    %v2994 = vadd.f32 0.0, %v2993
    %v2995 = vpop.f32.mrb[0].mxu0
    %2996 = vmatprep.mubr.f32.mxu0 0.0
    %2997 = vmatmul.mubr.f32.gmra.mrb[0].mxu0 %v2655
    %v2998 = vpop.f32.mrb[0].mxu0
    %v2999 = vadd.f32 0.0, %v2998
    %v3000 = vpop.f32.mrb[0].mxu0
    %3001 = vmatprep.mubr.f32.mxu0 0.0
    %3002 = vmatmul.mubr.f32.gmra.mrb[0].mxu0 %v2657
    %v3003 = vpop.f32.mrb[0].mxu0
    %v3004 = vadd.f32 0.0, %v3003
    %v3005 = vpop.f32.mrb[0].mxu0
    %3006 = vmatprep.mubr.f32.mxu0 0.0
    %3007 = vmatmul.mubr.f32.gmra.mrb[0].mxu0 %v2659
    %v3008 = vpop.f32.mrb[0].mxu0
    %v3009 = vadd.f32 0.0, %v3008
    %v3010 = vpop.f32.mrb[0].mxu0
    %3011 = vmatprep.mubr.f32.mxu0 0.0
    %3012 = vmatmul.mubr.f32.gmra.mrb[0].mxu0 %v2661
    %v3013 = vpop.f32.mrb[0].mxu0
    %v3014 = vadd.f32 0.0, %v3013
    %v3015 = vpop.f32.mrb[0].mxu0
    %3016 = vmatprep.mubr.f32.mxu0 0.0
    %3017 = vmatmul.mubr.f32.gmra.mrb[0].mxu0 %v2663
    %v3018 = vpop.f32.mrb[0].mxu0
    %v3019 = vadd.f32 0.0, %v3018
    %v3020 = vpop.f32.mrb[0].mxu0
    %3021 = vmatprep.mubr.f32.mxu0 0.0
    %3022 = vmatmul.mubr.f32.gmra.mrb[0].mxu0 %v2665
    %v3023 = vpop.f32.mrb[0].mxu0
    %v3024 = vadd.f32 0.0, %v3023
    %v3025 = vpop.f32.mrb[0].mxu0
    %3026 = vmatprep.mubr.f32.mxu0 0.0
    %3027 = vmatmul.mubr.f32.gmra.mrb[0].mxu0 %v2667
    %v3028 = vpop.f32.mrb[0].mxu0
    %v3029 = vadd.f32 0.0, %v3028
    %v3030 = vpop.f32.mrb[0].mxu0
    %3031 = vmatprep.mubr.f32.mxu0 0.0
    %3032 = vmatmul.mubr.f32.gmra.mrb[0].mxu0 %v2669
    %v3033 = vpop.f32.mrb[0].mxu0
    %v3034 = vadd.f32 0.0, %v3033
    %v3035 = vpop.f32.mrb[0].mxu0
    %3036 = vmatprep.mubr.f32.mxu0 0.0
    %3037 = vmatmul.mubr.f32.gmra.mrb[0].mxu0 %v2671
    %v3038 = vpop.f32.mrb[0].mxu0
    %v3039 = vadd.f32 0.0, %v3038
    %v3040 = vpop.f32.mrb[0].mxu0
    %3041 = vmatprep.mubr.f32.mxu0 0.0
    %3042 = vmatmul.mubr.f32.gmra.mrb[0].mxu0 %v2673
    %v3043 = vpop.f32.mrb[0].mxu0
    %v3044 = vadd.f32 0.0, %v3043
    %v3045 = vpop.f32.mrb[0].mxu0
    %3046 = vmatprep.mubr.f32.mxu0 0.0
    %3047 = vmatmul.mubr.f32.gmra.mrb[0].mxu0 %v2675
    %v3048 = vpop.f32.mrb[0].mxu0
    %v3049 = vadd.f32 0.0, %v3048
    %v3050 = vpop.f32.mrb[0].mxu0
    %3051 = vmatprep.mubr.f32.mxu0 0.0
    %3052 = vmatmul.mubr.f32.gmra.mrb[0].mxu0 %v2677
    %v3053 = vpop.f32.mrb[0].mxu0
    %v3054 = vadd.f32 0.0, %v3053
    %v3055 = vpop.f32.mrb[0].mxu0
    %3056 = vmatprep.mubr.f32.mxu0 0.0
    %3057 = vmatmul.mubr.f32.gmra.mrb[0].mxu0 %v2679
    %v3058 = vpop.f32.mrb[0].mxu0
    %v3059 = vadd.f32 0.0, %v3058
    %v3060 = vpop.f32.mrb[0].mxu0
    %3061 = vmatprep.mubr.f32.mxu0 0.0
    %3062 = vmatmul.mubr.f32.gmra.mrb[0].mxu0 %v2681
    %v3063 = vpop.f32.mrb[0].mxu0
    %v3064 = vadd.f32 0.0, %v3063
    %v3065 = vpop.f32.mrb[0].mxu0
    %3066 = vmatprep.mubr.f32.mxu0 0.0
    %3067 = vmatmul.mubr.f32.gmra.mrb[0].mxu0 %v2683
    %v3068 = vpop.f32.mrb[0].mxu0
    %v3069 = vadd.f32 0.0, %v3068
    %v3070 = vpop.f32.mrb[0].mxu0
    %3071 = vmatprep.mubr.f32.mxu0 0.0
    %3072 = vmatmul.mubr.f32.gmra.mrb[0].mxu0 %v2685
    %v3073 = vpop.f32.mrb[0].mxu0
    %v3074 = vadd.f32 0.0, %v3073
    %v3075 = vpop.f32.mrb[0].mxu0
    %3076 = vmatprep.mubr.f32.mxu0 0.0
    %3077 = vmatmul.mubr.f32.gmra.mrb[0].mxu0 %v2687
    %v3078 = vpop.f32.mrb[0].mxu0
    %v3079 = vadd.f32 0.0, %v3078
    %v3080 = vpop.f32.mrb[0].mxu0
    %3081 = vmatprep.mubr.f32.mxu0 0.0
    %3082 = vmatmul.mubr.f32.gmra.mrb[0].mxu0 %v2689
    %v3083 = vpop.f32.mrb[0].mxu0
    %v3084 = vadd.f32 0.0, %v3083
    %v3085 = vpop.f32.mrb[0].mxu0
    %3086 = vmatprep.mubr.f32.mxu0 0.0
    %3087 = vmatmul.mubr.f32.gmra.mrb[0].mxu0 %v2691
    %v3088 = vpop.f32.mrb[0].mxu0
    %v3089 = vadd.f32 0.0, %v3088
    %v3090 = vpop.f32.mrb[0].mxu0
    %3091 = vmatprep.mubr.f32.mxu0 0.0
    %3092 = vmatmul.mubr.f32.gmra.mrb[0].mxu0 %v2693
    %v3093 = vpop.f32.mrb[0].mxu0
    %v3094 = vadd.f32 0.0, %v3093
    %v3095 = vpop.f32.mrb[0].mxu0
    %3096 = vmatprep.mubr.f32.mxu0 0.0
    %3097 = vmatmul.mubr.f32.gmra.mrb[0].mxu0 %v2695
    %v3098 = vpop.f32.mrb[0].mxu0
    %v3099 = vadd.f32 0.0, %v3098
    %v3100 = vpop.f32.mrb[0].mxu0
    %3101 = vmatprep.mubr.f32.mxu0 0.0
    %3102 = vmatmul.mubr.f32.gmra.mrb[0].mxu0 %v2697
    %v3103 = vpop.f32.mrb[0].mxu0
    %v3104 = vadd.f32 0.0, %v3103
    %v3105 = vpop.f32.mrb[0].mxu0
    %3106 = vmatprep.mubr.f32.mxu0 0.0
    %3107 = vmatmul.mubr.f32.gmra.mrb[0].mxu0 %v2699
    %v3108 = vpop.f32.mrb[0].mxu0
    %v3109 = vadd.f32 0.0, %v3108
    %v3110 = vpop.f32.mrb[0].mxu0
    %3111 = vmatprep.mubr.f32.mxu0 0.0
    %3112 = vmatmul.mubr.f32.gmra.mrb[0].mxu0 %v2701
    %v3113 = vpop.f32.mrb[0].mxu0
    %v3114 = vadd.f32 0.0, %v3113
    %v3115 = vpop.f32.mrb[0].mxu0
    %3116 = vdwg.mxu0
    %v3186 = vcombine.high %v2774, %v2774
    %v3188 = vunpack.c.l.s4 1983009808
    %v3189 = vunpack.c.0.s8 %v3188
    %v3190 = vlaneseq
    %v3191 = vshrl.u32 %v3190, 7
    %v3192 = vsub.s32 %v3189, %v3191
    %v3193 = vrot.slane %v2774, %v3192
    %v3195 = vunpack.c.l.s4 1983009808
    %v3196 = vunpack.c.0.s8 %v3195
    %v3197 = vlaneseq
    %v3198 = vshrl.u32 %v3197, 7
    %v3199 = vsub.s32 %v3196, %v3198
    %v3200 = vrot.slane %v3186, %v3199
    %v3201 = vcombine.high %v3193, %v3193
    %v3202 = vcombine.high %v3200, %v3200
    %v3203 = vcombine.high %v2779, %v2779
    %v3205 = vunpack.c.l.s4 1983009808
    %v3206 = vunpack.c.0.s8 %v3205
    %v3207 = vlaneseq
    %v3208 = vshrl.u32 %v3207, 7
    %v3209 = vsub.s32 %v3206, %v3208
    %v3210 = vrot.slane %v2779, %v3209
    %v3212 = vunpack.c.l.s4 1983009808
    %v3213 = vunpack.c.0.s8 %v3212
    %v3214 = vlaneseq
    %v3215 = vshrl.u32 %v3214, 7
    %v3216 = vsub.s32 %v3213, %v3215
    %v3217 = vrot.slane %v3203, %v3216
    %v3218 = vcombine.high %v3210, %v3210
    %v3219 = vcombine.high %v3217, %v3217
    %v3220 = vcombine.high %v2784, %v2784
    %v3222 = vunpack.c.l.s4 1983009808
    %v3223 = vunpack.c.0.s8 %v3222
    %v3224 = vlaneseq
    %v3225 = vshrl.u32 %v3224, 7
    %v3226 = vsub.s32 %v3223, %v3225
    %v3227 = vrot.slane %v2784, %v3226
    %v3229 = vunpack.c.l.s4 1983009808
    %v3230 = vunpack.c.0.s8 %v3229
    %v3231 = vlaneseq
    %v3232 = vshrl.u32 %v3231, 7
    %v3233 = vsub.s32 %v3230, %v3232
    %v3234 = vrot.slane %v3220, %v3233
    %v3235 = vcombine.high %v3227, %v3227
    %v3236 = vcombine.high %v3234, %v3234
    %v3237 = vcombine.high %v2789, %v2789
    %v3239 = vunpack.c.l.s4 1983009808
    %v3240 = vunpack.c.0.s8 %v3239
    %v3241 = vlaneseq
    %v3242 = vshrl.u32 %v3241, 7
    %v3243 = vsub.s32 %v3240, %v3242
    %v3244 = vrot.slane %v2789, %v3243
    %v3246 = vunpack.c.l.s4 1983009808
    %v3247 = vunpack.c.0.s8 %v3246
    %v3248 = vlaneseq
    %v3249 = vshrl.u32 %v3248, 7
    %v3250 = vsub.s32 %v3247, %v3249
    %v3251 = vrot.slane %v3237, %v3250
    %v3252 = vcombine.high %v3244, %v3244
    %v3253 = vcombine.high %v3251, %v3251
    %v3254 = vcombine.high %v2794, %v2794
    %v3256 = vunpack.c.l.s4 1983009808
    %v3257 = vunpack.c.0.s8 %v3256
    %v3258 = vlaneseq
    %v3259 = vshrl.u32 %v3258, 7
    %v3260 = vsub.s32 %v3257, %v3259
    %v3261 = vrot.slane %v2794, %v3260
    %v3263 = vunpack.c.l.s4 1983009808
    %v3264 = vunpack.c.0.s8 %v3263
    %v3265 = vlaneseq
    %v3266 = vshrl.u32 %v3265, 7
    %v3267 = vsub.s32 %v3264, %v3266
    %v3268 = vrot.slane %v3254, %v3267
    %v3269 = vcombine.high %v3261, %v3261
    %v3270 = vcombine.high %v3268, %v3268
    %v3271 = vcombine.high %v2799, %v2799
    %v3273 = vunpack.c.l.s4 1983009808
    %v3274 = vunpack.c.0.s8 %v3273
    %v3275 = vlaneseq
    %v3276 = vshrl.u32 %v3275, 7
    %v3277 = vsub.s32 %v3274, %v3276
    %v3278 = vrot.slane %v2799, %v3277
    %v3280 = vunpack.c.l.s4 1983009808
    %v3281 = vunpack.c.0.s8 %v3280
    %v3282 = vlaneseq
    %v3283 = vshrl.u32 %v3282, 7
    %v3284 = vsub.s32 %v3281, %v3283
    %v3285 = vrot.slane %v3271, %v3284
    %v3286 = vcombine.high %v3278, %v3278
    %v3287 = vcombine.high %v3285, %v3285
    %v3288 = vcombine.high %v2804, %v2804
    %v3290 = vunpack.c.l.s4 1983009808
    %v3291 = vunpack.c.0.s8 %v3290
    %v3292 = vlaneseq
    %v3293 = vshrl.u32 %v3292, 7
    %v3294 = vsub.s32 %v3291, %v3293
    %v3295 = vrot.slane %v2804, %v3294
    %v3297 = vunpack.c.l.s4 1983009808
    %v3298 = vunpack.c.0.s8 %v3297
    %v3299 = vlaneseq
    %v3300 = vshrl.u32 %v3299, 7
    %v3301 = vsub.s32 %v3298, %v3300
    %v3302 = vrot.slane %v3288, %v3301
    %v3303 = vcombine.high %v3295, %v3295
    %v3304 = vcombine.high %v3302, %v3302
    %v3305 = vcombine.high %v2809, %v2809
    %v3307 = vunpack.c.l.s4 1983009808
    %v3308 = vunpack.c.0.s8 %v3307
    %v3309 = vlaneseq
    %v3310 = vshrl.u32 %v3309, 7
    %v3311 = vsub.s32 %v3308, %v3310
    %v3312 = vrot.slane %v2809, %v3311
    %v3314 = vunpack.c.l.s4 1983009808
    %v3315 = vunpack.c.0.s8 %v3314
    %v3316 = vlaneseq
    %v3317 = vshrl.u32 %v3316, 7
    %v3318 = vsub.s32 %v3315, %v3317
    %v3319 = vrot.slane %v3305, %v3318
    %v3320 = vcombine.high %v3312, %v3312
    %v3321 = vcombine.high %v3319, %v3319
    %v3322 = vcombine.high %v2814, %v2814
    %v3324 = vunpack.c.l.s4 1983009808
    %v3325 = vunpack.c.0.s8 %v3324
    %v3326 = vlaneseq
    %v3327 = vshrl.u32 %v3326, 7
    %v3328 = vsub.s32 %v3325, %v3327
    %v3329 = vrot.slane %v2814, %v3328
    %v3331 = vunpack.c.l.s4 1983009808
    %v3332 = vunpack.c.0.s8 %v3331
    %v3333 = vlaneseq
    %v3334 = vshrl.u32 %v3333, 7
    %v3335 = vsub.s32 %v3332, %v3334
    %v3336 = vrot.slane %v3322, %v3335
    %v3337 = vcombine.high %v3329, %v3329
    %v3338 = vcombine.high %v3336, %v3336
    %v3339 = vcombine.high %v2819, %v2819
    %v3341 = vunpack.c.l.s4 1983009808
    %v3342 = vunpack.c.0.s8 %v3341
    %v3343 = vlaneseq
    %v3344 = vshrl.u32 %v3343, 7
    %v3345 = vsub.s32 %v3342, %v3344
    %v3346 = vrot.slane %v2819, %v3345
    %v3348 = vunpack.c.l.s4 1983009808
    %v3349 = vunpack.c.0.s8 %v3348
    %v3350 = vlaneseq
    %v3351 = vshrl.u32 %v3350, 7
    %v3352 = vsub.s32 %v3349, %v3351
    %v3353 = vrot.slane %v3339, %v3352
    %v3354 = vcombine.high %v3346, %v3346
    %v3355 = vcombine.high %v3353, %v3353
    %v3356 = vcombine.high %v2824, %v2824
    %v3358 = vunpack.c.l.s4 1983009808
    %v3359 = vunpack.c.0.s8 %v3358
    %v3360 = vlaneseq
    %v3361 = vshrl.u32 %v3360, 7
    %v3362 = vsub.s32 %v3359, %v3361
    %v3363 = vrot.slane %v2824, %v3362
    %v3365 = vunpack.c.l.s4 1983009808
    %v3366 = vunpack.c.0.s8 %v3365
    %v3367 = vlaneseq
    %v3368 = vshrl.u32 %v3367, 7
    %v3369 = vsub.s32 %v3366, %v3368
    %v3370 = vrot.slane %v3356, %v3369
    %v3371 = vcombine.high %v3363, %v3363
    %v3372 = vcombine.high %v3370, %v3370
    %v3373 = vcombine.high %v2829, %v2829
    %v3375 = vunpack.c.l.s4 1983009808
    %v3376 = vunpack.c.0.s8 %v3375
    %v3377 = vlaneseq
    %v3378 = vshrl.u32 %v3377, 7
    %v3379 = vsub.s32 %v3376, %v3378
    %v3380 = vrot.slane %v2829, %v3379
    %v3382 = vunpack.c.l.s4 1983009808
    %v3383 = vunpack.c.0.s8 %v3382
    %v3384 = vlaneseq
    %v3385 = vshrl.u32 %v3384, 7
    %v3386 = vsub.s32 %v3383, %v3385
    %v3387 = vrot.slane %v3373, %v3386
    %v3388 = vcombine.high %v3380, %v3380
    %v3389 = vcombine.high %v3387, %v3387
    %v3390 = vcombine.high %v2834, %v2834
    %v3392 = vunpack.c.l.s4 1983009808
    %v3393 = vunpack.c.0.s8 %v3392
    %v3394 = vlaneseq
    %v3395 = vshrl.u32 %v3394, 7
    %v3396 = vsub.s32 %v3393, %v3395
    %v3397 = vrot.slane %v2834, %v3396
    %v3399 = vunpack.c.l.s4 1983009808
    %v3400 = vunpack.c.0.s8 %v3399
    %v3401 = vlaneseq
    %v3402 = vshrl.u32 %v3401, 7
    %v3403 = vsub.s32 %v3400, %v3402
    %v3404 = vrot.slane %v3390, %v3403
    %v3405 = vcombine.high %v3397, %v3397
    %v3406 = vcombine.high %v3404, %v3404
    %v3407 = vcombine.high %v2839, %v2839
    %v3409 = vunpack.c.l.s4 1983009808
    %v3410 = vunpack.c.0.s8 %v3409
    %v3411 = vlaneseq
    %v3412 = vshrl.u32 %v3411, 7
    %v3413 = vsub.s32 %v3410, %v3412
    %v3414 = vrot.slane %v2839, %v3413
    %v3416 = vunpack.c.l.s4 1983009808
    %v3417 = vunpack.c.0.s8 %v3416
    %v3418 = vlaneseq
    %v3419 = vshrl.u32 %v3418, 7
    %v3420 = vsub.s32 %v3417, %v3419
    %v3421 = vrot.slane %v3407, %v3420
    %v3422 = vcombine.high %v3414, %v3414
    %v3423 = vcombine.high %v3421, %v3421
    %v3424 = vcombine.high %v2844, %v2844
    %v3426 = vunpack.c.l.s4 1983009808
    %v3427 = vunpack.c.0.s8 %v3426
    %v3428 = vlaneseq
    %v3429 = vshrl.u32 %v3428, 7
    %v3430 = vsub.s32 %v3427, %v3429
    %v3431 = vrot.slane %v2844, %v3430
    %v3433 = vunpack.c.l.s4 1983009808
    %v3434 = vunpack.c.0.s8 %v3433
    %v3435 = vlaneseq
    %v3436 = vshrl.u32 %v3435, 7
    %v3437 = vsub.s32 %v3434, %v3436
    %v3438 = vrot.slane %v3424, %v3437
    %v3439 = vcombine.high %v3431, %v3431
    %v3440 = vcombine.high %v3438, %v3438
    %v3441 = vcombine.high %v2849, %v2849
    %v3443 = vunpack.c.l.s4 1983009808
    %v3444 = vunpack.c.0.s8 %v3443
    %v3445 = vlaneseq
    %v3446 = vshrl.u32 %v3445, 7
    %v3447 = vsub.s32 %v3444, %v3446
    %v3448 = vrot.slane %v2849, %v3447
    %v3450 = vunpack.c.l.s4 1983009808
    %v3451 = vunpack.c.0.s8 %v3450
    %v3452 = vlaneseq
    %v3453 = vshrl.u32 %v3452, 7
    %v3454 = vsub.s32 %v3451, %v3453
    %v3455 = vrot.slane %v3441, %v3454
    %v3456 = vcombine.high %v3448, %v3448
    %v3457 = vcombine.high %v3455, %v3455
    %v3458 = vcombine.high %v2854, %v2854
    %v3460 = vunpack.c.l.s4 1983009808
    %v3461 = vunpack.c.0.s8 %v3460
    %v3462 = vlaneseq
    %v3463 = vshrl.u32 %v3462, 7
    %v3464 = vsub.s32 %v3461, %v3463
    %v3465 = vrot.slane %v2854, %v3464
    %v3467 = vunpack.c.l.s4 1983009808
    %v3468 = vunpack.c.0.s8 %v3467
    %v3469 = vlaneseq
    %v3470 = vshrl.u32 %v3469, 7
    %v3471 = vsub.s32 %v3468, %v3470
    %v3472 = vrot.slane %v3458, %v3471
    %v3473 = vcombine.high %v3465, %v3465
    %v3474 = vcombine.high %v3472, %v3472
    %v3475 = vcombine.high %v2859, %v2859
    %v3477 = vunpack.c.l.s4 1983009808
    %v3478 = vunpack.c.0.s8 %v3477
    %v3479 = vlaneseq
    %v3480 = vshrl.u32 %v3479, 7
    %v3481 = vsub.s32 %v3478, %v3480
    %v3482 = vrot.slane %v2859, %v3481
    %v3484 = vunpack.c.l.s4 1983009808
    %v3485 = vunpack.c.0.s8 %v3484
    %v3486 = vlaneseq
    %v3487 = vshrl.u32 %v3486, 7
    %v3488 = vsub.s32 %v3485, %v3487
    %v3489 = vrot.slane %v3475, %v3488
    %v3490 = vcombine.high %v3482, %v3482
    %v3491 = vcombine.high %v3489, %v3489
    %v3492 = vcombine.high %v2864, %v2864
    %v3494 = vunpack.c.l.s4 1983009808
    %v3495 = vunpack.c.0.s8 %v3494
    %v3496 = vlaneseq
    %v3497 = vshrl.u32 %v3496, 7
    %v3498 = vsub.s32 %v3495, %v3497
    %v3499 = vrot.slane %v2864, %v3498
    %v3501 = vunpack.c.l.s4 1983009808
    %v3502 = vunpack.c.0.s8 %v3501
    %v3503 = vlaneseq
    %v3504 = vshrl.u32 %v3503, 7
    %v3505 = vsub.s32 %v3502, %v3504
    %v3506 = vrot.slane %v3492, %v3505
    %v3507 = vcombine.high %v3499, %v3499
    %v3508 = vcombine.high %v3506, %v3506
    %v3509 = vcombine.high %v2869, %v2869
    %v3511 = vunpack.c.l.s4 1983009808
    %v3512 = vunpack.c.0.s8 %v3511
    %v3513 = vlaneseq
    %v3514 = vshrl.u32 %v3513, 7
    %v3515 = vsub.s32 %v3512, %v3514
    %v3516 = vrot.slane %v2869, %v3515
    %v3518 = vunpack.c.l.s4 1983009808
    %v3519 = vunpack.c.0.s8 %v3518
    %v3520 = vlaneseq
    %v3521 = vshrl.u32 %v3520, 7
    %v3522 = vsub.s32 %v3519, %v3521
    %v3523 = vrot.slane %v3509, %v3522
    %v3524 = vcombine.high %v3516, %v3516
    %v3525 = vcombine.high %v3523, %v3523
    %v3526 = vcombine.high %v2874, %v2874
    %v3528 = vunpack.c.l.s4 1983009808
    %v3529 = vunpack.c.0.s8 %v3528
    %v3530 = vlaneseq
    %v3531 = vshrl.u32 %v3530, 7
    %v3532 = vsub.s32 %v3529, %v3531
    %v3533 = vrot.slane %v2874, %v3532
    %v3535 = vunpack.c.l.s4 1983009808
    %v3536 = vunpack.c.0.s8 %v3535
    %v3537 = vlaneseq
    %v3538 = vshrl.u32 %v3537, 7
    %v3539 = vsub.s32 %v3536, %v3538
    %v3540 = vrot.slane %v3526, %v3539
    %v3541 = vcombine.high %v3533, %v3533
    %v3542 = vcombine.high %v3540, %v3540
    %v3543 = vcombine.high %v2879, %v2879
    %v3545 = vunpack.c.l.s4 1983009808
    %v3546 = vunpack.c.0.s8 %v3545
    %v3547 = vlaneseq
    %v3548 = vshrl.u32 %v3547, 7
    %v3549 = vsub.s32 %v3546, %v3548
    %v3550 = vrot.slane %v2879, %v3549
    %v3552 = vunpack.c.l.s4 1983009808
    %v3553 = vunpack.c.0.s8 %v3552
    %v3554 = vlaneseq
    %v3555 = vshrl.u32 %v3554, 7
    %v3556 = vsub.s32 %v3553, %v3555
    %v3557 = vrot.slane %v3543, %v3556
    %v3558 = vcombine.high %v3550, %v3550
    %v3559 = vcombine.high %v3557, %v3557
    %v3560 = vcombine.high %v2884, %v2884
    %v3562 = vunpack.c.l.s4 1983009808
    %v3563 = vunpack.c.0.s8 %v3562
    %v3564 = vlaneseq
    %v3565 = vshrl.u32 %v3564, 7
    %v3566 = vsub.s32 %v3563, %v3565
    %v3567 = vrot.slane %v2884, %v3566
    %v3569 = vunpack.c.l.s4 1983009808
    %v3570 = vunpack.c.0.s8 %v3569
    %v3571 = vlaneseq
    %v3572 = vshrl.u32 %v3571, 7
    %v3573 = vsub.s32 %v3570, %v3572
    %v3574 = vrot.slane %v3560, %v3573
    %v3575 = vcombine.high %v3567, %v3567
    %v3576 = vcombine.high %v3574, %v3574
    %v3577 = vcombine.high %v2889, %v2889
    %v3579 = vunpack.c.l.s4 1983009808
    %v3580 = vunpack.c.0.s8 %v3579
    %v3581 = vlaneseq
    %v3582 = vshrl.u32 %v3581, 7
    %v3583 = vsub.s32 %v3580, %v3582
    %v3584 = vrot.slane %v2889, %v3583
    %v3586 = vunpack.c.l.s4 1983009808
    %v3587 = vunpack.c.0.s8 %v3586
    %v3588 = vlaneseq
    %v3589 = vshrl.u32 %v3588, 7
    %v3590 = vsub.s32 %v3587, %v3589
    %v3591 = vrot.slane %v3577, %v3590
    %v3592 = vcombine.high %v3584, %v3584
    %v3593 = vcombine.high %v3591, %v3591
    %v3594 = vcombine.high %v2894, %v2894
    %v3596 = vunpack.c.l.s4 1983009808
    %v3597 = vunpack.c.0.s8 %v3596
    %v3598 = vlaneseq
    %v3599 = vshrl.u32 %v3598, 7
    %v3600 = vsub.s32 %v3597, %v3599
    %v3601 = vrot.slane %v2894, %v3600
    %v3603 = vunpack.c.l.s4 1983009808
    %v3604 = vunpack.c.0.s8 %v3603
    %v3605 = vlaneseq
    %v3606 = vshrl.u32 %v3605, 7
    %v3607 = vsub.s32 %v3604, %v3606
    %v3608 = vrot.slane %v3594, %v3607
    %v3609 = vcombine.high %v3601, %v3601
    %v3610 = vcombine.high %v3608, %v3608
    %v3611 = vcombine.high %v2899, %v2899
    %v3613 = vunpack.c.l.s4 1983009808
    %v3614 = vunpack.c.0.s8 %v3613
    %v3615 = vlaneseq
    %v3616 = vshrl.u32 %v3615, 7
    %v3617 = vsub.s32 %v3614, %v3616
    %v3618 = vrot.slane %v2899, %v3617
    %v3620 = vunpack.c.l.s4 1983009808
    %v3621 = vunpack.c.0.s8 %v3620
    %v3622 = vlaneseq
    %v3623 = vshrl.u32 %v3622, 7
    %v3624 = vsub.s32 %v3621, %v3623
    %v3625 = vrot.slane %v3611, %v3624
    %v3626 = vcombine.high %v3618, %v3618
    %v3627 = vcombine.high %v3625, %v3625
    %v3628 = vcombine.high %v2904, %v2904
    %v3630 = vunpack.c.l.s4 1983009808
    %v3631 = vunpack.c.0.s8 %v3630
    %v3632 = vlaneseq
    %v3633 = vshrl.u32 %v3632, 7
    %v3634 = vsub.s32 %v3631, %v3633
    %v3635 = vrot.slane %v2904, %v3634
    %v3637 = vunpack.c.l.s4 1983009808
    %v3638 = vunpack.c.0.s8 %v3637
    %v3639 = vlaneseq
    %v3640 = vshrl.u32 %v3639, 7
    %v3641 = vsub.s32 %v3638, %v3640
    %v3642 = vrot.slane %v3628, %v3641
    %v3643 = vcombine.high %v3635, %v3635
    %v3644 = vcombine.high %v3642, %v3642
    %v3645 = vcombine.high %v2909, %v2909
    %v3647 = vunpack.c.l.s4 1983009808
    %v3648 = vunpack.c.0.s8 %v3647
    %v3649 = vlaneseq
    %v3650 = vshrl.u32 %v3649, 7
    %v3651 = vsub.s32 %v3648, %v3650
    %v3652 = vrot.slane %v2909, %v3651
    %v3654 = vunpack.c.l.s4 1983009808
    %v3655 = vunpack.c.0.s8 %v3654
    %v3656 = vlaneseq
    %v3657 = vshrl.u32 %v3656, 7
    %v3658 = vsub.s32 %v3655, %v3657
    %v3659 = vrot.slane %v3645, %v3658
    %v3660 = vcombine.high %v3652, %v3652
    %v3661 = vcombine.high %v3659, %v3659
    %v3662 = vcombine.high %v2914, %v2914
    %v3664 = vunpack.c.l.s4 1983009808
    %v3665 = vunpack.c.0.s8 %v3664
    %v3666 = vlaneseq
    %v3667 = vshrl.u32 %v3666, 7
    %v3668 = vsub.s32 %v3665, %v3667
    %v3669 = vrot.slane %v2914, %v3668
    %v3671 = vunpack.c.l.s4 1983009808
    %v3672 = vunpack.c.0.s8 %v3671
    %v3673 = vlaneseq
    %v3674 = vshrl.u32 %v3673, 7
    %v3675 = vsub.s32 %v3672, %v3674
    %v3676 = vrot.slane %v3662, %v3675
    %v3677 = vcombine.high %v3669, %v3669
    %v3678 = vcombine.high %v3676, %v3676
    %v3679 = vcombine.high %v2919, %v2919
    %v3681 = vunpack.c.l.s4 1983009808
    %v3682 = vunpack.c.0.s8 %v3681
    %v3683 = vlaneseq
    %v3684 = vshrl.u32 %v3683, 7
    %v3685 = vsub.s32 %v3682, %v3684
    %v3686 = vrot.slane %v2919, %v3685
    %v3688 = vunpack.c.l.s4 1983009808
    %v3689 = vunpack.c.0.s8 %v3688
    %v3690 = vlaneseq
    %v3691 = vshrl.u32 %v3690, 7
    %v3692 = vsub.s32 %v3689, %v3691
    %v3693 = vrot.slane %v3679, %v3692
    %v3694 = vcombine.high %v3686, %v3686
    %v3695 = vcombine.high %v3693, %v3693
    %v3696 = vcombine.high %v2924, %v2924
    %v3698 = vunpack.c.l.s4 1983009808
    %v3699 = vunpack.c.0.s8 %v3698
    %v3700 = vlaneseq
    %v3701 = vshrl.u32 %v3700, 7
    %v3702 = vsub.s32 %v3699, %v3701
    %v3703 = vrot.slane %v2924, %v3702
    %v3705 = vunpack.c.l.s4 1983009808
    %v3706 = vunpack.c.0.s8 %v3705
    %v3707 = vlaneseq
    %v3708 = vshrl.u32 %v3707, 7
    %v3709 = vsub.s32 %v3706, %v3708
    %v3710 = vrot.slane %v3696, %v3709
    %v3711 = vcombine.high %v3703, %v3703
    %v3712 = vcombine.high %v3710, %v3710
    %v3713 = vcombine.high %v2929, %v2929
    %v3715 = vunpack.c.l.s4 1983009808
    %v3716 = vunpack.c.0.s8 %v3715
    %v3717 = vlaneseq
    %v3718 = vshrl.u32 %v3717, 7
    %v3719 = vsub.s32 %v3716, %v3718
    %v3720 = vrot.slane %v2929, %v3719
    %v3722 = vunpack.c.l.s4 1983009808
    %v3723 = vunpack.c.0.s8 %v3722
    %v3724 = vlaneseq
    %v3725 = vshrl.u32 %v3724, 7
    %v3726 = vsub.s32 %v3723, %v3725
    %v3727 = vrot.slane %v3713, %v3726
    %v3728 = vcombine.high %v3720, %v3720
    %v3729 = vcombine.high %v3727, %v3727
    %v3730 = vcombine.high %v2934, %v2934
    %v3732 = vunpack.c.l.s4 1983009808
    %v3733 = vunpack.c.0.s8 %v3732
    %v3734 = vlaneseq
    %v3735 = vshrl.u32 %v3734, 7
    %v3736 = vsub.s32 %v3733, %v3735
    %v3737 = vrot.slane %v2934, %v3736
    %v3739 = vunpack.c.l.s4 1983009808
    %v3740 = vunpack.c.0.s8 %v3739
    %v3741 = vlaneseq
    %v3742 = vshrl.u32 %v3741, 7
    %v3743 = vsub.s32 %v3740, %v3742
    %v3744 = vrot.slane %v3730, %v3743
    %v3745 = vcombine.high %v3737, %v3737
    %v3746 = vcombine.high %v3744, %v3744
    %v3747 = vcombine.high %v2939, %v2939
    %v3749 = vunpack.c.l.s4 1983009808
    %v3750 = vunpack.c.0.s8 %v3749
    %v3751 = vlaneseq
    %v3752 = vshrl.u32 %v3751, 7
    %v3753 = vsub.s32 %v3750, %v3752
    %v3754 = vrot.slane %v2939, %v3753
    %v3756 = vunpack.c.l.s4 1983009808
    %v3757 = vunpack.c.0.s8 %v3756
    %v3758 = vlaneseq
    %v3759 = vshrl.u32 %v3758, 7
    %v3760 = vsub.s32 %v3757, %v3759
    %v3761 = vrot.slane %v3747, %v3760
    %v3762 = vcombine.high %v3754, %v3754
    %v3763 = vcombine.high %v3761, %v3761
    %v3764 = vcombine.high %v2944, %v2944
    %v3766 = vunpack.c.l.s4 1983009808
    %v3767 = vunpack.c.0.s8 %v3766
    %v3768 = vlaneseq
    %v3769 = vshrl.u32 %v3768, 7
    %v3770 = vsub.s32 %v3767, %v3769
    %v3771 = vrot.slane %v2944, %v3770
    %v3773 = vunpack.c.l.s4 1983009808
    %v3774 = vunpack.c.0.s8 %v3773
    %v3775 = vlaneseq
    %v3776 = vshrl.u32 %v3775, 7
    %v3777 = vsub.s32 %v3774, %v3776
    %v3778 = vrot.slane %v3764, %v3777
    %v3779 = vcombine.high %v3771, %v3771
    %v3780 = vcombine.high %v3778, %v3778
    %v3781 = vcombine.high %v2949, %v2949
    %v3783 = vunpack.c.l.s4 1983009808
    %v3784 = vunpack.c.0.s8 %v3783
    %v3785 = vlaneseq
    %v3786 = vshrl.u32 %v3785, 7
    %v3787 = vsub.s32 %v3784, %v3786
    %v3788 = vrot.slane %v2949, %v3787
    %v3790 = vunpack.c.l.s4 1983009808
    %v3791 = vunpack.c.0.s8 %v3790
    %v3792 = vlaneseq
    %v3793 = vshrl.u32 %v3792, 7
    %v3794 = vsub.s32 %v3791, %v3793
    %v3795 = vrot.slane %v3781, %v3794
    %v3796 = vcombine.high %v3788, %v3788
    %v3797 = vcombine.high %v3795, %v3795
    %v3798 = vcombine.high %v2954, %v2954
    %v3800 = vunpack.c.l.s4 1983009808
    %v3801 = vunpack.c.0.s8 %v3800
    %v3802 = vlaneseq
    %v3803 = vshrl.u32 %v3802, 7
    %v3804 = vsub.s32 %v3801, %v3803
    %v3805 = vrot.slane %v2954, %v3804
    %v3807 = vunpack.c.l.s4 1983009808
    %v3808 = vunpack.c.0.s8 %v3807
    %v3809 = vlaneseq
    %v3810 = vshrl.u32 %v3809, 7
    %v3811 = vsub.s32 %v3808, %v3810
    %v3812 = vrot.slane %v3798, %v3811
    %v3813 = vcombine.high %v3805, %v3805
    %v3814 = vcombine.high %v3812, %v3812
    %v3815 = vcombine.high %v2959, %v2959
    %v3817 = vunpack.c.l.s4 1983009808
    %v3818 = vunpack.c.0.s8 %v3817
    %v3819 = vlaneseq
    %v3820 = vshrl.u32 %v3819, 7
    %v3821 = vsub.s32 %v3818, %v3820
    %v3822 = vrot.slane %v2959, %v3821
    %v3824 = vunpack.c.l.s4 1983009808
    %v3825 = vunpack.c.0.s8 %v3824
    %v3826 = vlaneseq
    %v3827 = vshrl.u32 %v3826, 7
    %v3828 = vsub.s32 %v3825, %v3827
    %v3829 = vrot.slane %v3815, %v3828
    %v3830 = vcombine.high %v3822, %v3822
    %v3831 = vcombine.high %v3829, %v3829
    %v3832 = vcombine.high %v2964, %v2964
    %v3834 = vunpack.c.l.s4 1983009808
    %v3835 = vunpack.c.0.s8 %v3834
    %v3836 = vlaneseq
    %v3837 = vshrl.u32 %v3836, 7
    %v3838 = vsub.s32 %v3835, %v3837
    %v3839 = vrot.slane %v2964, %v3838
    %v3841 = vunpack.c.l.s4 1983009808
    %v3842 = vunpack.c.0.s8 %v3841
    %v3843 = vlaneseq
    %v3844 = vshrl.u32 %v3843, 7
    %v3845 = vsub.s32 %v3842, %v3844
    %v3846 = vrot.slane %v3832, %v3845
    %v3847 = vcombine.high %v3839, %v3839
    %v3848 = vcombine.high %v3846, %v3846
    %v3849 = vcombine.high %v2969, %v2969
    %v3851 = vunpack.c.l.s4 1983009808
    %v3852 = vunpack.c.0.s8 %v3851
    %v3853 = vlaneseq
    %v3854 = vshrl.u32 %v3853, 7
    %v3855 = vsub.s32 %v3852, %v3854
    %v3856 = vrot.slane %v2969, %v3855
    %v3858 = vunpack.c.l.s4 1983009808
    %v3859 = vunpack.c.0.s8 %v3858
    %v3860 = vlaneseq
    %v3861 = vshrl.u32 %v3860, 7
    %v3862 = vsub.s32 %v3859, %v3861
    %v3863 = vrot.slane %v3849, %v3862
    %v3864 = vcombine.high %v3856, %v3856
    %v3865 = vcombine.high %v3863, %v3863
    %v3866 = vcombine.high %v2974, %v2974
    %v3868 = vunpack.c.l.s4 1983009808
    %v3869 = vunpack.c.0.s8 %v3868
    %v3870 = vlaneseq
    %v3871 = vshrl.u32 %v3870, 7
    %v3872 = vsub.s32 %v3869, %v3871
    %v3873 = vrot.slane %v2974, %v3872
    %v3875 = vunpack.c.l.s4 1983009808
    %v3876 = vunpack.c.0.s8 %v3875
    %v3877 = vlaneseq
    %v3878 = vshrl.u32 %v3877, 7
    %v3879 = vsub.s32 %v3876, %v3878
    %v3880 = vrot.slane %v3866, %v3879
    %v3881 = vcombine.high %v3873, %v3873
    %v3882 = vcombine.high %v3880, %v3880
    %v3883 = vcombine.high %v2979, %v2979
    %v3885 = vunpack.c.l.s4 1983009808
    %v3886 = vunpack.c.0.s8 %v3885
    %v3887 = vlaneseq
    %v3888 = vshrl.u32 %v3887, 7
    %v3889 = vsub.s32 %v3886, %v3888
    %v3890 = vrot.slane %v2979, %v3889
    %v3892 = vunpack.c.l.s4 1983009808
    %v3893 = vunpack.c.0.s8 %v3892
    %v3894 = vlaneseq
    %v3895 = vshrl.u32 %v3894, 7
    %v3896 = vsub.s32 %v3893, %v3895
    %v3897 = vrot.slane %v3883, %v3896
    %v3898 = vcombine.high %v3890, %v3890
    %v3899 = vcombine.high %v3897, %v3897
    %v3900 = vcombine.high %v2984, %v2984
    %v3902 = vunpack.c.l.s4 1983009808
    %v3903 = vunpack.c.0.s8 %v3902
    %v3904 = vlaneseq
    %v3905 = vshrl.u32 %v3904, 7
    %v3906 = vsub.s32 %v3903, %v3905
    %v3907 = vrot.slane %v2984, %v3906
    %v3909 = vunpack.c.l.s4 1983009808
    %v3910 = vunpack.c.0.s8 %v3909
    %v3911 = vlaneseq
    %v3912 = vshrl.u32 %v3911, 7
    %v3913 = vsub.s32 %v3910, %v3912
    %v3914 = vrot.slane %v3900, %v3913
    %v3915 = vcombine.high %v3907, %v3907
    %v3916 = vcombine.high %v3914, %v3914
    %v3917 = vcombine.high %v2989, %v2989
    %v3919 = vunpack.c.l.s4 1983009808
    %v3920 = vunpack.c.0.s8 %v3919
    %v3921 = vlaneseq
    %v3922 = vshrl.u32 %v3921, 7
    %v3923 = vsub.s32 %v3920, %v3922
    %v3924 = vrot.slane %v2989, %v3923
    %v3926 = vunpack.c.l.s4 1983009808
    %v3927 = vunpack.c.0.s8 %v3926
    %v3928 = vlaneseq
    %v3929 = vshrl.u32 %v3928, 7
    %v3930 = vsub.s32 %v3927, %v3929
    %v3931 = vrot.slane %v3917, %v3930
    %v3932 = vcombine.high %v3924, %v3924
    %v3933 = vcombine.high %v3931, %v3931
    %v3934 = vcombine.high %v2994, %v2994
    %v3936 = vunpack.c.l.s4 1983009808
    %v3937 = vunpack.c.0.s8 %v3936
    %v3938 = vlaneseq
    %v3939 = vshrl.u32 %v3938, 7
    %v3940 = vsub.s32 %v3937, %v3939
    %v3941 = vrot.slane %v2994, %v3940
    %v3943 = vunpack.c.l.s4 1983009808
    %v3944 = vunpack.c.0.s8 %v3943
    %v3945 = vlaneseq
    %v3946 = vshrl.u32 %v3945, 7
    %v3947 = vsub.s32 %v3944, %v3946
    %v3948 = vrot.slane %v3934, %v3947
    %v3949 = vcombine.high %v3941, %v3941
    %v3950 = vcombine.high %v3948, %v3948
    %v3951 = vcombine.high %v2999, %v2999
    %v3953 = vunpack.c.l.s4 1983009808
    %v3954 = vunpack.c.0.s8 %v3953
    %v3955 = vlaneseq
    %v3956 = vshrl.u32 %v3955, 7
    %v3957 = vsub.s32 %v3954, %v3956
    %v3958 = vrot.slane %v2999, %v3957
    %v3960 = vunpack.c.l.s4 1983009808
    %v3961 = vunpack.c.0.s8 %v3960
    %v3962 = vlaneseq
    %v3963 = vshrl.u32 %v3962, 7
    %v3964 = vsub.s32 %v3961, %v3963
    %v3965 = vrot.slane %v3951, %v3964
    %v3966 = vcombine.high %v3958, %v3958
    %v3967 = vcombine.high %v3965, %v3965
    %v3968 = vcombine.high %v3004, %v3004
    %v3970 = vunpack.c.l.s4 1983009808
    %v3971 = vunpack.c.0.s8 %v3970
    %v3972 = vlaneseq
    %v3973 = vshrl.u32 %v3972, 7
    %v3974 = vsub.s32 %v3971, %v3973
    %v3975 = vrot.slane %v3004, %v3974
    %v3977 = vunpack.c.l.s4 1983009808
    %v3978 = vunpack.c.0.s8 %v3977
    %v3979 = vlaneseq
    %v3980 = vshrl.u32 %v3979, 7
    %v3981 = vsub.s32 %v3978, %v3980
    %v3982 = vrot.slane %v3968, %v3981
    %v3983 = vcombine.high %v3975, %v3975
    %v3984 = vcombine.high %v3982, %v3982
    %v3985 = vcombine.high %v3009, %v3009
    %v3987 = vunpack.c.l.s4 1983009808
    %v3988 = vunpack.c.0.s8 %v3987
    %v3989 = vlaneseq
    %v3990 = vshrl.u32 %v3989, 7
    %v3991 = vsub.s32 %v3988, %v3990
    %v3992 = vrot.slane %v3009, %v3991
    %v3994 = vunpack.c.l.s4 1983009808
    %v3995 = vunpack.c.0.s8 %v3994
    %v3996 = vlaneseq
    %v3997 = vshrl.u32 %v3996, 7
    %v3998 = vsub.s32 %v3995, %v3997
    %v3999 = vrot.slane %v3985, %v3998
    %v4000 = vcombine.high %v3992, %v3992
    %v4001 = vcombine.high %v3999, %v3999
    %v4002 = vcombine.high %v3014, %v3014
    %v4004 = vunpack.c.l.s4 1983009808
    %v4005 = vunpack.c.0.s8 %v4004
    %v4006 = vlaneseq
    %v4007 = vshrl.u32 %v4006, 7
    %v4008 = vsub.s32 %v4005, %v4007
    %v4009 = vrot.slane %v3014, %v4008
    %v4011 = vunpack.c.l.s4 1983009808
    %v4012 = vunpack.c.0.s8 %v4011
    %v4013 = vlaneseq
    %v4014 = vshrl.u32 %v4013, 7
    %v4015 = vsub.s32 %v4012, %v4014
    %v4016 = vrot.slane %v4002, %v4015
    %v4017 = vcombine.high %v4009, %v4009
    %v4018 = vcombine.high %v4016, %v4016
    %v4019 = vcombine.high %v3019, %v3019
    %v4021 = vunpack.c.l.s4 1983009808
    %v4022 = vunpack.c.0.s8 %v4021
    %v4023 = vlaneseq
    %v4024 = vshrl.u32 %v4023, 7
    %v4025 = vsub.s32 %v4022, %v4024
    %v4026 = vrot.slane %v3019, %v4025
    %v4028 = vunpack.c.l.s4 1983009808
    %v4029 = vunpack.c.0.s8 %v4028
    %v4030 = vlaneseq
    %v4031 = vshrl.u32 %v4030, 7
    %v4032 = vsub.s32 %v4029, %v4031
    %v4033 = vrot.slane %v4019, %v4032
    %v4034 = vcombine.high %v4026, %v4026
    %v4035 = vcombine.high %v4033, %v4033
    %v4036 = vcombine.high %v3024, %v3024
    %v4038 = vunpack.c.l.s4 1983009808
    %v4039 = vunpack.c.0.s8 %v4038
    %v4040 = vlaneseq
    %v4041 = vshrl.u32 %v4040, 7
    %v4042 = vsub.s32 %v4039, %v4041
    %v4043 = vrot.slane %v3024, %v4042
    %v4045 = vunpack.c.l.s4 1983009808
    %v4046 = vunpack.c.0.s8 %v4045
    %v4047 = vlaneseq
    %v4048 = vshrl.u32 %v4047, 7
    %v4049 = vsub.s32 %v4046, %v4048
    %v4050 = vrot.slane %v4036, %v4049
    %v4051 = vcombine.high %v4043, %v4043
    %v4052 = vcombine.high %v4050, %v4050
    %v4053 = vcombine.high %v3029, %v3029
    %v4055 = vunpack.c.l.s4 1983009808
    %v4056 = vunpack.c.0.s8 %v4055
    %v4057 = vlaneseq
    %v4058 = vshrl.u32 %v4057, 7
    %v4059 = vsub.s32 %v4056, %v4058
    %v4060 = vrot.slane %v3029, %v4059
    %v4062 = vunpack.c.l.s4 1983009808
    %v4063 = vunpack.c.0.s8 %v4062
    %v4064 = vlaneseq
    %v4065 = vshrl.u32 %v4064, 7
    %v4066 = vsub.s32 %v4063, %v4065
    %v4067 = vrot.slane %v4053, %v4066
    %v4068 = vcombine.high %v4060, %v4060
    %v4069 = vcombine.high %v4067, %v4067
    %v4070 = vcombine.high %v3034, %v3034
    %v4072 = vunpack.c.l.s4 1983009808
    %v4073 = vunpack.c.0.s8 %v4072
    %v4074 = vlaneseq
    %v4075 = vshrl.u32 %v4074, 7
    %v4076 = vsub.s32 %v4073, %v4075
    %v4077 = vrot.slane %v3034, %v4076
    %v4079 = vunpack.c.l.s4 1983009808
    %v4080 = vunpack.c.0.s8 %v4079
    %v4081 = vlaneseq
    %v4082 = vshrl.u32 %v4081, 7
    %v4083 = vsub.s32 %v4080, %v4082
    %v4084 = vrot.slane %v4070, %v4083
    %v4085 = vcombine.high %v4077, %v4077
    %v4086 = vcombine.high %v4084, %v4084
    %v4087 = vcombine.high %v3039, %v3039
    %v4089 = vunpack.c.l.s4 1983009808
    %v4090 = vunpack.c.0.s8 %v4089
    %v4091 = vlaneseq
    %v4092 = vshrl.u32 %v4091, 7
    %v4093 = vsub.s32 %v4090, %v4092
    %v4094 = vrot.slane %v3039, %v4093
    %v4096 = vunpack.c.l.s4 1983009808
    %v4097 = vunpack.c.0.s8 %v4096
    %v4098 = vlaneseq
    %v4099 = vshrl.u32 %v4098, 7
    %v4100 = vsub.s32 %v4097, %v4099
    %v4101 = vrot.slane %v4087, %v4100
    %v4102 = vcombine.high %v4094, %v4094
    %v4103 = vcombine.high %v4101, %v4101
    %v4104 = vcombine.high %v3044, %v3044
    %v4106 = vunpack.c.l.s4 1983009808
    %v4107 = vunpack.c.0.s8 %v4106
    %v4108 = vlaneseq
    %v4109 = vshrl.u32 %v4108, 7
    %v4110 = vsub.s32 %v4107, %v4109
    %v4111 = vrot.slane %v3044, %v4110
    %v4113 = vunpack.c.l.s4 1983009808
    %v4114 = vunpack.c.0.s8 %v4113
    %v4115 = vlaneseq
    %v4116 = vshrl.u32 %v4115, 7
    %v4117 = vsub.s32 %v4114, %v4116
    %v4118 = vrot.slane %v4104, %v4117
    %v4119 = vcombine.high %v4111, %v4111
    %v4120 = vcombine.high %v4118, %v4118
    %v4121 = vcombine.high %v3049, %v3049
    %v4123 = vunpack.c.l.s4 1983009808
    %v4124 = vunpack.c.0.s8 %v4123
    %v4125 = vlaneseq
    %v4126 = vshrl.u32 %v4125, 7
    %v4127 = vsub.s32 %v4124, %v4126
    %v4128 = vrot.slane %v3049, %v4127
    %v4130 = vunpack.c.l.s4 1983009808
    %v4131 = vunpack.c.0.s8 %v4130
    %v4132 = vlaneseq
    %v4133 = vshrl.u32 %v4132, 7
    %v4134 = vsub.s32 %v4131, %v4133
    %v4135 = vrot.slane %v4121, %v4134
    %v4136 = vcombine.high %v4128, %v4128
    %v4137 = vcombine.high %v4135, %v4135
    %v4138 = vcombine.high %v3054, %v3054
    %v4140 = vunpack.c.l.s4 1983009808
    %v4141 = vunpack.c.0.s8 %v4140
    %v4142 = vlaneseq
    %v4143 = vshrl.u32 %v4142, 7
    %v4144 = vsub.s32 %v4141, %v4143
    %v4145 = vrot.slane %v3054, %v4144
    %v4147 = vunpack.c.l.s4 1983009808
    %v4148 = vunpack.c.0.s8 %v4147
    %v4149 = vlaneseq
    %v4150 = vshrl.u32 %v4149, 7
    %v4151 = vsub.s32 %v4148, %v4150
    %v4152 = vrot.slane %v4138, %v4151
    %v4153 = vcombine.high %v4145, %v4145
    %v4154 = vcombine.high %v4152, %v4152
    %v4155 = vcombine.high %v3059, %v3059
    %v4157 = vunpack.c.l.s4 1983009808
    %v4158 = vunpack.c.0.s8 %v4157
    %v4159 = vlaneseq
    %v4160 = vshrl.u32 %v4159, 7
    %v4161 = vsub.s32 %v4158, %v4160
    %v4162 = vrot.slane %v3059, %v4161
    %v4164 = vunpack.c.l.s4 1983009808
    %v4165 = vunpack.c.0.s8 %v4164
    %v4166 = vlaneseq
    %v4167 = vshrl.u32 %v4166, 7
    %v4168 = vsub.s32 %v4165, %v4167
    %v4169 = vrot.slane %v4155, %v4168
    %v4170 = vcombine.high %v4162, %v4162
    %v4171 = vcombine.high %v4169, %v4169
    %v4172 = vcombine.high %v3064, %v3064
    %v4174 = vunpack.c.l.s4 1983009808
    %v4175 = vunpack.c.0.s8 %v4174
    %v4176 = vlaneseq
    %v4177 = vshrl.u32 %v4176, 7
    %v4178 = vsub.s32 %v4175, %v4177
    %v4179 = vrot.slane %v3064, %v4178
    %v4181 = vunpack.c.l.s4 1983009808
    %v4182 = vunpack.c.0.s8 %v4181
    %v4183 = vlaneseq
    %v4184 = vshrl.u32 %v4183, 7
    %v4185 = vsub.s32 %v4182, %v4184
    %v4186 = vrot.slane %v4172, %v4185
    %v4187 = vcombine.high %v4179, %v4179
    %v4188 = vcombine.high %v4186, %v4186
    %v4189 = vcombine.high %v3069, %v3069
    %v4191 = vunpack.c.l.s4 1983009808
    %v4192 = vunpack.c.0.s8 %v4191
    %v4193 = vlaneseq
    %v4194 = vshrl.u32 %v4193, 7
    %v4195 = vsub.s32 %v4192, %v4194
    %v4196 = vrot.slane %v3069, %v4195
    %v4198 = vunpack.c.l.s4 1983009808
    %v4199 = vunpack.c.0.s8 %v4198
    %v4200 = vlaneseq
    %v4201 = vshrl.u32 %v4200, 7
    %v4202 = vsub.s32 %v4199, %v4201
    %v4203 = vrot.slane %v4189, %v4202
    %v4204 = vcombine.high %v4196, %v4196
    %v4205 = vcombine.high %v4203, %v4203
    %v4206 = vcombine.high %v3074, %v3074
    %v4208 = vunpack.c.l.s4 1983009808
    %v4209 = vunpack.c.0.s8 %v4208
    %v4210 = vlaneseq
    %v4211 = vshrl.u32 %v4210, 7
    %v4212 = vsub.s32 %v4209, %v4211
    %v4213 = vrot.slane %v3074, %v4212
    %v4215 = vunpack.c.l.s4 1983009808
    %v4216 = vunpack.c.0.s8 %v4215
    %v4217 = vlaneseq
    %v4218 = vshrl.u32 %v4217, 7
    %v4219 = vsub.s32 %v4216, %v4218
    %v4220 = vrot.slane %v4206, %v4219
    %v4221 = vcombine.high %v4213, %v4213
    %v4222 = vcombine.high %v4220, %v4220
    %v4223 = vcombine.high %v3079, %v3079
    %v4225 = vunpack.c.l.s4 1983009808
    %v4226 = vunpack.c.0.s8 %v4225
    %v4227 = vlaneseq
    %v4228 = vshrl.u32 %v4227, 7
    %v4229 = vsub.s32 %v4226, %v4228
    %v4230 = vrot.slane %v3079, %v4229
    %v4232 = vunpack.c.l.s4 1983009808
    %v4233 = vunpack.c.0.s8 %v4232
    %v4234 = vlaneseq
    %v4235 = vshrl.u32 %v4234, 7
    %v4236 = vsub.s32 %v4233, %v4235
    %v4237 = vrot.slane %v4223, %v4236
    %v4238 = vcombine.high %v4230, %v4230
    %v4239 = vcombine.high %v4237, %v4237
    %v4240 = vcombine.high %v3084, %v3084
    %v4242 = vunpack.c.l.s4 1983009808
    %v4243 = vunpack.c.0.s8 %v4242
    %v4244 = vlaneseq
    %v4245 = vshrl.u32 %v4244, 7
    %v4246 = vsub.s32 %v4243, %v4245
    %v4247 = vrot.slane %v3084, %v4246
    %v4249 = vunpack.c.l.s4 1983009808
    %v4250 = vunpack.c.0.s8 %v4249
    %v4251 = vlaneseq
    %v4252 = vshrl.u32 %v4251, 7
    %v4253 = vsub.s32 %v4250, %v4252
    %v4254 = vrot.slane %v4240, %v4253
    %v4255 = vcombine.high %v4247, %v4247
    %v4256 = vcombine.high %v4254, %v4254
    %v4257 = vcombine.high %v3089, %v3089
    %v4259 = vunpack.c.l.s4 1983009808
    %v4260 = vunpack.c.0.s8 %v4259
    %v4261 = vlaneseq
    %v4262 = vshrl.u32 %v4261, 7
    %v4263 = vsub.s32 %v4260, %v4262
    %v4264 = vrot.slane %v3089, %v4263
    %v4266 = vunpack.c.l.s4 1983009808
    %v4267 = vunpack.c.0.s8 %v4266
    %v4268 = vlaneseq
    %v4269 = vshrl.u32 %v4268, 7
    %v4270 = vsub.s32 %v4267, %v4269
    %v4271 = vrot.slane %v4257, %v4270
    %v4272 = vcombine.high %v4264, %v4264
    %v4273 = vcombine.high %v4271, %v4271
    %v4274 = vcombine.high %v3094, %v3094
    %v4276 = vunpack.c.l.s4 1983009808
    %v4277 = vunpack.c.0.s8 %v4276
    %v4278 = vlaneseq
    %v4279 = vshrl.u32 %v4278, 7
    %v4280 = vsub.s32 %v4277, %v4279
    %v4281 = vrot.slane %v3094, %v4280
    %v4283 = vunpack.c.l.s4 1983009808
    %v4284 = vunpack.c.0.s8 %v4283
    %v4285 = vlaneseq
    %v4286 = vshrl.u32 %v4285, 7
    %v4287 = vsub.s32 %v4284, %v4286
    %v4288 = vrot.slane %v4274, %v4287
    %v4289 = vcombine.high %v4281, %v4281
    %v4290 = vcombine.high %v4288, %v4288
    %v4291 = vcombine.high %v3099, %v3099
    %v4293 = vunpack.c.l.s4 1983009808
    %v4294 = vunpack.c.0.s8 %v4293
    %v4295 = vlaneseq
    %v4296 = vshrl.u32 %v4295, 7
    %v4297 = vsub.s32 %v4294, %v4296
    %v4298 = vrot.slane %v3099, %v4297
    %v4300 = vunpack.c.l.s4 1983009808
    %v4301 = vunpack.c.0.s8 %v4300
    %v4302 = vlaneseq
    %v4303 = vshrl.u32 %v4302, 7
    %v4304 = vsub.s32 %v4301, %v4303
    %v4305 = vrot.slane %v4291, %v4304
    %v4306 = vcombine.high %v4298, %v4298
    %v4307 = vcombine.high %v4305, %v4305
    %v4308 = vcombine.high %v3104, %v3104
    %v4310 = vunpack.c.l.s4 1983009808
    %v4311 = vunpack.c.0.s8 %v4310
    %v4312 = vlaneseq
    %v4313 = vshrl.u32 %v4312, 7
    %v4314 = vsub.s32 %v4311, %v4313
    %v4315 = vrot.slane %v3104, %v4314
    %v4317 = vunpack.c.l.s4 1983009808
    %v4318 = vunpack.c.0.s8 %v4317
    %v4319 = vlaneseq
    %v4320 = vshrl.u32 %v4319, 7
    %v4321 = vsub.s32 %v4318, %v4320
    %v4322 = vrot.slane %v4308, %v4321
    %v4323 = vcombine.high %v4315, %v4315
    %v4324 = vcombine.high %v4322, %v4322
    %v4325 = vcombine.high %v3109, %v3109
    %v4327 = vunpack.c.l.s4 1983009808
    %v4328 = vunpack.c.0.s8 %v4327
    %v4329 = vlaneseq
    %v4330 = vshrl.u32 %v4329, 7
    %v4331 = vsub.s32 %v4328, %v4330
    %v4332 = vrot.slane %v3109, %v4331
    %v4334 = vunpack.c.l.s4 1983009808
    %v4335 = vunpack.c.0.s8 %v4334
    %v4336 = vlaneseq
    %v4337 = vshrl.u32 %v4336, 7
    %v4338 = vsub.s32 %v4335, %v4337
    %v4339 = vrot.slane %v4325, %v4338
    %v4340 = vcombine.high %v4332, %v4332
    %v4341 = vcombine.high %v4339, %v4339
    %v4342 = vcombine.high %v3114, %v3114
    %v4344 = vunpack.c.l.s4 1983009808
    %v4345 = vunpack.c.0.s8 %v4344
    %v4346 = vlaneseq
    %v4347 = vshrl.u32 %v4346, 7
    %v4348 = vsub.s32 %v4345, %v4347
    %v4349 = vrot.slane %v3114, %v4348
    %v4351 = vunpack.c.l.s4 1983009808
    %v4352 = vunpack.c.0.s8 %v4351
    %v4353 = vlaneseq
    %v4354 = vshrl.u32 %v4353, 7
    %v4355 = vsub.s32 %v4352, %v4354
    %v4356 = vrot.slane %v4342, %v4355
    %v4357 = vcombine.high %v4349, %v4349
    %v4358 = vcombine.high %v4356, %v4356
    %v4359 = vld [vmem:[%s2] sm:$0xff]
    %v4360 = vld [vmem:[%s2 + $0x8] sm:$0xff]
    %v4361 = vcombine.low %v3193, %v3201
    %v4362 = vcombine.low %v3200, %v3202
    %v4364 = vunpack.c.l.s4 1983009808
    %v4365 = vunpack.c.0.s8 %v4364
    %v4366 = vlaneseq
    %v4367 = vshrl.u32 %v4366, 7
    %v4368 = vsub.s32 %v4365, %v4367
    %v4369 = vrot.slane %v4361, %v4368
    %v4371 = vunpack.c.l.s4 1983009808
    %v4372 = vunpack.c.0.s8 %v4371
    %v4373 = vlaneseq
    %v4374 = vshrl.u32 %v4373, 7
    %v4375 = vsub.s32 %v4372, %v4374
    %v4376 = vrot.slane %v4362, %v4375
    %v4377 = vcombine.low %v4369, %v4376
    %v4378 = vcombine.low %v3210, %v3218
    %v4379 = vcombine.low %v3217, %v3219
    %v4381 = vunpack.c.l.s4 1983009808
    %v4382 = vunpack.c.0.s8 %v4381
    %v4383 = vlaneseq
    %v4384 = vshrl.u32 %v4383, 7
    %v4385 = vsub.s32 %v4382, %v4384
    %v4386 = vrot.slane %v4378, %v4385
    %v4388 = vunpack.c.l.s4 1983009808
    %v4389 = vunpack.c.0.s8 %v4388
    %v4390 = vlaneseq
    %v4391 = vshrl.u32 %v4390, 7
    %v4392 = vsub.s32 %v4389, %v4391
    %v4393 = vrot.slane %v4379, %v4392
    %v4394 = vcombine.low %v4386, %v4393
    %v4395 = vcombine.low %v3227, %v3235
    %v4396 = vcombine.low %v3234, %v3236
    %v4398 = vunpack.c.l.s4 1983009808
    %v4399 = vunpack.c.0.s8 %v4398
    %v4400 = vlaneseq
    %v4401 = vshrl.u32 %v4400, 7
    %v4402 = vsub.s32 %v4399, %v4401
    %v4403 = vrot.slane %v4395, %v4402
    %v4405 = vunpack.c.l.s4 1983009808
    %v4406 = vunpack.c.0.s8 %v4405
    %v4407 = vlaneseq
    %v4408 = vshrl.u32 %v4407, 7
    %v4409 = vsub.s32 %v4406, %v4408
    %v4410 = vrot.slane %v4396, %v4409
    %v4411 = vcombine.low %v4403, %v4410
    %v4412 = vcombine.low %v3244, %v3252
    %v4413 = vcombine.low %v3251, %v3253
    %v4415 = vunpack.c.l.s4 1983009808
    %v4416 = vunpack.c.0.s8 %v4415
    %v4417 = vlaneseq
    %v4418 = vshrl.u32 %v4417, 7
    %v4419 = vsub.s32 %v4416, %v4418
    %v4420 = vrot.slane %v4412, %v4419
    %v4422 = vunpack.c.l.s4 1983009808
    %v4423 = vunpack.c.0.s8 %v4422
    %v4424 = vlaneseq
    %v4425 = vshrl.u32 %v4424, 7
    %v4426 = vsub.s32 %v4423, %v4425
    %v4427 = vrot.slane %v4413, %v4426
    %v4428 = vcombine.low %v4420, %v4427
    %v4429 = vcombine.low %v3261, %v3269
    %v4430 = vcombine.low %v3268, %v3270
    %v4432 = vunpack.c.l.s4 1983009808
    %v4433 = vunpack.c.0.s8 %v4432
    %v4434 = vlaneseq
    %v4435 = vshrl.u32 %v4434, 7
    %v4436 = vsub.s32 %v4433, %v4435
    %v4437 = vrot.slane %v4429, %v4436
    %v4439 = vunpack.c.l.s4 1983009808
    %v4440 = vunpack.c.0.s8 %v4439
    %v4441 = vlaneseq
    %v4442 = vshrl.u32 %v4441, 7
    %v4443 = vsub.s32 %v4440, %v4442
    %v4444 = vrot.slane %v4430, %v4443
    %v4445 = vcombine.low %v4437, %v4444
    %v4446 = vcombine.low %v3278, %v3286
    %v4448 = vunpack.c.l.s4 1983009808
    %v4449 = vunpack.c.0.s8 %v4448
    %v4450 = vlaneseq
    %v4451 = vshrl.u32 %v4450, 7
    %v4452 = vsub.s32 %v4449, %v4451
    %v4453 = vrot.slane %v4446, %v4452
    %v4455 = vunpack.c.l.s4 1983009808
    %v4456 = vunpack.c.0.s8 %v4455
    %v4457 = vlaneseq
    %v4458 = vshrl.u32 %v4457, 7
    %v4459 = vsub.s32 %v4456, %v4458
    %v4460 = vrot.slane %v3285, %v4459
    %v4461 = vcombine.low %v4453, %v4460
    %v4468 = vsel %vm2564, %v4359, 0
    %v4471 = vsel %vm2564, %v4360, 0
    %v4473 = vsel %vm2703, %v4461, 0
    %4475 = vmatprep.subr.mxu0 0.0
    %4476 = vmatpush1.msra.mxu0 %v4377
    %4477 = vmatprep.subr.mxu0 0.0
    %4478 = vmatpush1.msra.mxu0 %v4394
    %4479 = vmatprep.subr.mxu0 0.0
    %4480 = vmatpush1.msra.mxu0 %v4411
    %4481 = vmatprep.subr.mxu0 0.0
    %4482 = vmatpush1.msra.mxu0 %v4428
    %4483 = vmatprep.subr.mxu0 0.0
    %4484 = vmatpush1.msra.mxu0 %v4445
    %4485 = vmatprep.subr.mxu0 0.0
    %4486 = vmatpush1.msra.mxu0 %v4473
    %4487 = vmatprep.subr.mxu0 0.0
    %4488 = vmatpush1.msra.mxu0 0.0
    %4489 = vmatprep.subr.mxu0 0.0
    %4490 = vmatpush1.msra.mxu0 0.0
    %4491 = vmatprep.subr.mxu0 0.0
    %4492 = vmatpush1.msra.mxu0 0.0
    %4493 = vmatprep.subr.mxu0 0.0
    %4494 = vmatpush1.msra.mxu0 0.0
    %4495 = vmatprep.subr.mxu0 0.0
    %4496 = vmatpush1.msra.mxu0 0.0
    %4497 = vmatprep.subr.mxu0 0.0
    %4498 = vmatpush1.msra.mxu0 0.0
    %4499 = vmatprep.subr.mxu0 0.0
    %4500 = vmatpush1.msra.mxu0 0.0
    %4501 = vmatprep.subr.mxu0 0.0
    %4502 = vmatpush1.msra.mxu0 0.0
    %4503 = vmatprep.subr.mxu0 0.0
    %4504 = vmatpush1.msra.mxu0 0.0
    %4505 = vmatprep.subr.mxu0 0.0
    %4506 = vmatpush1.msra.mxu0 0.0
    %4507 = vmatprep.subr.mxu0 0.0
    %4508 = vmatpush1.msra.mxu0 0.0
    %4509 = vmatprep.subr.mxu0 0.0
    %4510 = vmatpush1.msra.mxu0 0.0
    %4511 = vmatprep.subr.mxu0 0.0
    %4512 = vmatpush1.msra.mxu0 0.0
    %4513 = vmatprep.subr.mxu0 0.0
    %4514 = vmatpush1.msra.mxu0 0.0
    %4515 = vmatprep.subr.mxu0 0.0
    %4516 = vmatpush1.msra.mxu0 0.0
    %4517 = vmatprep.subr.mxu0 0.0
    %4518 = vmatpush1.msra.mxu0 0.0
    %4519 = vmatprep.subr.mxu0 0.0
    %4520 = vmatpush1.msra.mxu0 0.0
    %4521 = vmatprep.subr.mxu0 0.0
    %4522 = vmatpush1.msra.mxu0 0.0
    %4523 = vmatprep.subr.mxu0 0.0
    %4524 = vmatpush1.msra.mxu0 0.0
    %4525 = vmatprep.subr.mxu0 0.0
    %4526 = vmatpush1.msra.mxu0 0.0
    %4527 = vmatprep.subr.mxu0 0.0
    %4528 = vmatpush1.msra.mxu0 0.0
    %4529 = vmatprep.subr.mxu0 0.0
    %4530 = vmatpush1.msra.mxu0 0.0
    %4531 = vmatprep.subr.mxu0 0.0
    %4532 = vmatpush1.msra.mxu0 0.0
    %4533 = vmatprep.subr.mxu0 0.0
    %4534 = vmatpush1.msra.mxu0 0.0
    %4535 = vmatprep.subr.mxu0 0.0
    %4536 = vmatpush1.msra.mxu0 0.0
    %4537 = vmatprep.subr.mxu0 0.0
    %4538 = vmatpush1.msra.mxu0 0.0
    %4539 = vmatprep.mubr.f32.mxu0 0.0
    %4540 = vmatmul.mubr.f32.gmra.mrb[0].mxu0 %v4468
    %v4541 = vpop.f32.mrb[0].mxu0
    %v4542 = vadd.f32 0.0, %v4541
    %v4543 = vpop.f32.mrb[0].mxu0
    %4544 = vmatprep.mubr.f32.mxu0 0.0
    %4545 = vmatmul.mubr.f32.gmra.mrb[0].mxu0 %v4471
    %v4546 = vpop.f32.mrb[0].mxu0
    %v4547 = vadd.f32 0.0, %v4546
    %v4548 = vpop.f32.mrb[0].mxu0
    %4549 = vdwg.mxu0
    %vm4550 = vcmask 130048
    %4551 = vst.msk [vmem:[#allocation5] sm:$0xff] %vm4550, %v4542
    %4552 = vst.msk [vmem:[#allocation5 + $0x8] sm:$0xff] %vm4550, %v4547
    %v4553 = vld [vmem:[%s2] sm:$0xff]
    %v4554 = vld [vmem:[%s2 + $0x8] sm:$0xff]
    %v4555 = vcombine.low %v3287, %v3295
    %v4556 = vcombine.low %v3303, %v3302
    %v4558 = vunpack.c.l.s4 1983009808
    %v4559 = vunpack.c.0.s8 %v4558
    %v4560 = vlaneseq
    %v4561 = vshrl.u32 %v4560, 7
    %v4562 = vsub.s32 %v4559, %v4561
    %v4563 = vrot.slane %v4555, %v4562
    %v4565 = vunpack.c.l.s4 1983009808
    %v4566 = vunpack.c.0.s8 %v4565
    %v4567 = vlaneseq
    %v4568 = vshrl.u32 %v4567, 7
    %v4569 = vsub.s32 %v4566, %v4568
    %v4570 = vrot.slane %v4556, %v4569
    %v4571 = vcombine.low %v4563, %v4570
    %v4572 = vcombine.low %v3304, %v3312
    %v4573 = vcombine.low %v3320, %v3319
    %v4575 = vunpack.c.l.s4 1983009808
    %v4576 = vunpack.c.0.s8 %v4575
    %v4577 = vlaneseq
    %v4578 = vshrl.u32 %v4577, 7
    %v4579 = vsub.s32 %v4576, %v4578
    %v4580 = vrot.slane %v4572, %v4579
    %v4582 = vunpack.c.l.s4 1983009808
    %v4583 = vunpack.c.0.s8 %v4582
    %v4584 = vlaneseq
    %v4585 = vshrl.u32 %v4584, 7
    %v4586 = vsub.s32 %v4583, %v4585
    %v4587 = vrot.slane %v4573, %v4586
    %v4588 = vcombine.low %v4580, %v4587
    %v4589 = vcombine.low %v3321, %v3329
    %v4590 = vcombine.low %v3337, %v3336
    %v4592 = vunpack.c.l.s4 1983009808
    %v4593 = vunpack.c.0.s8 %v4592
    %v4594 = vlaneseq
    %v4595 = vshrl.u32 %v4594, 7
    %v4596 = vsub.s32 %v4593, %v4595
    %v4597 = vrot.slane %v4589, %v4596
    %v4599 = vunpack.c.l.s4 1983009808
    %v4600 = vunpack.c.0.s8 %v4599
    %v4601 = vlaneseq
    %v4602 = vshrl.u32 %v4601, 7
    %v4603 = vsub.s32 %v4600, %v4602
    %v4604 = vrot.slane %v4590, %v4603
    %v4605 = vcombine.low %v4597, %v4604
    %v4606 = vcombine.low %v3338, %v3346
    %v4607 = vcombine.low %v3354, %v3353
    %v4609 = vunpack.c.l.s4 1983009808
    %v4610 = vunpack.c.0.s8 %v4609
    %v4611 = vlaneseq
    %v4612 = vshrl.u32 %v4611, 7
    %v4613 = vsub.s32 %v4610, %v4612
    %v4614 = vrot.slane %v4606, %v4613
    %v4616 = vunpack.c.l.s4 1983009808
    %v4617 = vunpack.c.0.s8 %v4616
    %v4618 = vlaneseq
    %v4619 = vshrl.u32 %v4618, 7
    %v4620 = vsub.s32 %v4617, %v4619
    %v4621 = vrot.slane %v4607, %v4620
    %v4622 = vcombine.low %v4614, %v4621
    %v4623 = vcombine.low %v3355, %v3363
    %v4624 = vcombine.low %v3371, %v3370
    %v4626 = vunpack.c.l.s4 1983009808
    %v4627 = vunpack.c.0.s8 %v4626
    %v4628 = vlaneseq
    %v4629 = vshrl.u32 %v4628, 7
    %v4630 = vsub.s32 %v4627, %v4629
    %v4631 = vrot.slane %v4623, %v4630
    %v4633 = vunpack.c.l.s4 1983009808
    %v4634 = vunpack.c.0.s8 %v4633
    %v4635 = vlaneseq
    %v4636 = vshrl.u32 %v4635, 7
    %v4637 = vsub.s32 %v4634, %v4636
    %v4638 = vrot.slane %v4624, %v4637
    %v4639 = vcombine.low %v4631, %v4638
    %v4640 = vcombine.low %v3372, %v3380
    %v4642 = vunpack.c.l.s4 1983009808
    %v4643 = vunpack.c.0.s8 %v4642
    %v4644 = vlaneseq
    %v4645 = vshrl.u32 %v4644, 7
    %v4646 = vsub.s32 %v4643, %v4645
    %v4647 = vrot.slane %v4640, %v4646
    %v4649 = vunpack.c.l.s4 1983009808
    %v4650 = vunpack.c.0.s8 %v4649
    %v4651 = vlaneseq
    %v4652 = vshrl.u32 %v4651, 7
    %v4653 = vsub.s32 %v4650, %v4652
    %v4654 = vrot.slane %v3388, %v4653
    %v4655 = vcombine.low %v4647, %v4654
    %v4662 = vsel %vm2564, %v4553, 0
    %v4665 = vsel %vm2564, %v4554, 0
    %v4667 = vsel %vm2703, %v4655, 0
    %4669 = vmatprep.subr.mxu0 0.0
    %4670 = vmatpush1.msra.mxu0 %v4571
    %4671 = vmatprep.subr.mxu0 0.0
    %4672 = vmatpush1.msra.mxu0 %v4588
    %4673 = vmatprep.subr.mxu0 0.0
    %4674 = vmatpush1.msra.mxu0 %v4605
    %4675 = vmatprep.subr.mxu0 0.0
    %4676 = vmatpush1.msra.mxu0 %v4622
    %4677 = vmatprep.subr.mxu0 0.0
    %4678 = vmatpush1.msra.mxu0 %v4639
    %4679 = vmatprep.subr.mxu0 0.0
    %4680 = vmatpush1.msra.mxu0 %v4667
    %4681 = vmatprep.subr.mxu0 0.0
    %4682 = vmatpush1.msra.mxu0 0.0
    %4683 = vmatprep.subr.mxu0 0.0
    %4684 = vmatpush1.msra.mxu0 0.0
    %4685 = vmatprep.subr.mxu0 0.0
    %4686 = vmatpush1.msra.mxu0 0.0
    %4687 = vmatprep.subr.mxu0 0.0
    %4688 = vmatpush1.msra.mxu0 0.0
    %4689 = vmatprep.subr.mxu0 0.0
    %4690 = vmatpush1.msra.mxu0 0.0
    %4691 = vmatprep.subr.mxu0 0.0
    %4692 = vmatpush1.msra.mxu0 0.0
    %4693 = vmatprep.subr.mxu0 0.0
    %4694 = vmatpush1.msra.mxu0 0.0
    %4695 = vmatprep.subr.mxu0 0.0
    %4696 = vmatpush1.msra.mxu0 0.0
    %4697 = vmatprep.subr.mxu0 0.0
    %4698 = vmatpush1.msra.mxu0 0.0
    %4699 = vmatprep.subr.mxu0 0.0
    %4700 = vmatpush1.msra.mxu0 0.0
    %4701 = vmatprep.subr.mxu0 0.0
    %4702 = vmatpush1.msra.mxu0 0.0
    %4703 = vmatprep.subr.mxu0 0.0
    %4704 = vmatpush1.msra.mxu0 0.0
    %4705 = vmatprep.subr.mxu0 0.0
    %4706 = vmatpush1.msra.mxu0 0.0
    %4707 = vmatprep.subr.mxu0 0.0
    %4708 = vmatpush1.msra.mxu0 0.0
    %4709 = vmatprep.subr.mxu0 0.0
    %4710 = vmatpush1.msra.mxu0 0.0
    %4711 = vmatprep.subr.mxu0 0.0
    %4712 = vmatpush1.msra.mxu0 0.0
    %4713 = vmatprep.subr.mxu0 0.0
    %4714 = vmatpush1.msra.mxu0 0.0
    %4715 = vmatprep.subr.mxu0 0.0
    %4716 = vmatpush1.msra.mxu0 0.0
    %4717 = vmatprep.subr.mxu0 0.0
    %4718 = vmatpush1.msra.mxu0 0.0
    %4719 = vmatprep.subr.mxu0 0.0
    %4720 = vmatpush1.msra.mxu0 0.0
    %4721 = vmatprep.subr.mxu0 0.0
    %4722 = vmatpush1.msra.mxu0 0.0
    %4723 = vmatprep.subr.mxu0 0.0
    %4724 = vmatpush1.msra.mxu0 0.0
    %4725 = vmatprep.subr.mxu0 0.0
    %4726 = vmatpush1.msra.mxu0 0.0
    %4727 = vmatprep.subr.mxu0 0.0
    %4728 = vmatpush1.msra.mxu0 0.0
    %4729 = vmatprep.subr.mxu0 0.0
    %4730 = vmatpush1.msra.mxu0 0.0
    %4731 = vmatprep.subr.mxu0 0.0
    %4732 = vmatpush1.msra.mxu0 0.0
    %4733 = vmatprep.mubr.f32.mxu0 0.0
    %4734 = vmatmul.mubr.f32.gmra.mrb[0].mxu0 %v4662
    %v4735 = vpop.f32.mrb[0].mxu0
    %v4736 = vadd.f32 0.0, %v4735
    %v4737 = vpop.f32.mrb[0].mxu0
    %4738 = vmatprep.mubr.f32.mxu0 0.0
    %4739 = vmatmul.mubr.f32.gmra.mrb[0].mxu0 %v4665
    %v4740 = vpop.f32.mrb[0].mxu0
    %v4741 = vadd.f32 0.0, %v4740
    %v4742 = vpop.f32.mrb[0].mxu0
    %4743 = vdwg.mxu0
    %s4744 = scalar_lea.vmem [#allocation5], 16
    %4745 = vst.msk [vmem:[%s4744] sm:$0xff] %vm4550, %v4736
    %4746 = vst.msk [vmem:[%s4744 + $0x8] sm:$0xff] %vm4550, %v4741
    %v4747 = vld [vmem:[%s2] sm:$0xff]
    %v4748 = vld [vmem:[%s2 + $0x8] sm:$0xff]
    %v4749 = vcombine.low %v3387, %v3389
    %v4750 = vcombine.low %v3397, %v3405
    %v4752 = vunpack.c.l.s4 1983009808
    %v4753 = vunpack.c.0.s8 %v4752
    %v4754 = vlaneseq
    %v4755 = vshrl.u32 %v4754, 7
    %v4756 = vsub.s32 %v4753, %v4755
    %v4757 = vrot.slane %v4749, %v4756
    %v4759 = vunpack.c.l.s4 1983009808
    %v4760 = vunpack.c.0.s8 %v4759
    %v4761 = vlaneseq
    %v4762 = vshrl.u32 %v4761, 7
    %v4763 = vsub.s32 %v4760, %v4762
    %v4764 = vrot.slane %v4750, %v4763
    %v4765 = vcombine.low %v4757, %v4764
    %v4766 = vcombine.low %v3404, %v3406
    %v4767 = vcombine.low %v3414, %v3422
    %v4769 = vunpack.c.l.s4 1983009808
    %v4770 = vunpack.c.0.s8 %v4769
    %v4771 = vlaneseq
    %v4772 = vshrl.u32 %v4771, 7
    %v4773 = vsub.s32 %v4770, %v4772
    %v4774 = vrot.slane %v4766, %v4773
    %v4776 = vunpack.c.l.s4 1983009808
    %v4777 = vunpack.c.0.s8 %v4776
    %v4778 = vlaneseq
    %v4779 = vshrl.u32 %v4778, 7
    %v4780 = vsub.s32 %v4777, %v4779
    %v4781 = vrot.slane %v4767, %v4780
    %v4782 = vcombine.low %v4774, %v4781
    %v4783 = vcombine.low %v3421, %v3423
    %v4784 = vcombine.low %v3431, %v3439
    %v4786 = vunpack.c.l.s4 1983009808
    %v4787 = vunpack.c.0.s8 %v4786
    %v4788 = vlaneseq
    %v4789 = vshrl.u32 %v4788, 7
    %v4790 = vsub.s32 %v4787, %v4789
    %v4791 = vrot.slane %v4783, %v4790
    %v4793 = vunpack.c.l.s4 1983009808
    %v4794 = vunpack.c.0.s8 %v4793
    %v4795 = vlaneseq
    %v4796 = vshrl.u32 %v4795, 7
    %v4797 = vsub.s32 %v4794, %v4796
    %v4798 = vrot.slane %v4784, %v4797
    %v4799 = vcombine.low %v4791, %v4798
    %v4800 = vcombine.low %v3438, %v3440
    %v4801 = vcombine.low %v3448, %v3456
    %v4803 = vunpack.c.l.s4 1983009808
    %v4804 = vunpack.c.0.s8 %v4803
    %v4805 = vlaneseq
    %v4806 = vshrl.u32 %v4805, 7
    %v4807 = vsub.s32 %v4804, %v4806
    %v4808 = vrot.slane %v4800, %v4807
    %v4810 = vunpack.c.l.s4 1983009808
    %v4811 = vunpack.c.0.s8 %v4810
    %v4812 = vlaneseq
    %v4813 = vshrl.u32 %v4812, 7
    %v4814 = vsub.s32 %v4811, %v4813
    %v4815 = vrot.slane %v4801, %v4814
    %v4816 = vcombine.low %v4808, %v4815
    %v4817 = vcombine.low %v3455, %v3457
    %v4818 = vcombine.low %v3465, %v3473
    %v4820 = vunpack.c.l.s4 1983009808
    %v4821 = vunpack.c.0.s8 %v4820
    %v4822 = vlaneseq
    %v4823 = vshrl.u32 %v4822, 7
    %v4824 = vsub.s32 %v4821, %v4823
    %v4825 = vrot.slane %v4817, %v4824
    %v4827 = vunpack.c.l.s4 1983009808
    %v4828 = vunpack.c.0.s8 %v4827
    %v4829 = vlaneseq
    %v4830 = vshrl.u32 %v4829, 7
    %v4831 = vsub.s32 %v4828, %v4830
    %v4832 = vrot.slane %v4818, %v4831
    %v4833 = vcombine.low %v4825, %v4832
    %v4834 = vcombine.low %v3472, %v3474
    %v4836 = vunpack.c.l.s4 1983009808
    %v4837 = vunpack.c.0.s8 %v4836
    %v4838 = vlaneseq
    %v4839 = vshrl.u32 %v4838, 7
    %v4840 = vsub.s32 %v4837, %v4839
    %v4841 = vrot.slane %v4834, %v4840
    %v4843 = vunpack.c.l.s4 1983009808
    %v4844 = vunpack.c.0.s8 %v4843
    %v4845 = vlaneseq
    %v4846 = vshrl.u32 %v4845, 7
    %v4847 = vsub.s32 %v4844, %v4846
    %v4848 = vrot.slane %v3482, %v4847
    %v4849 = vcombine.low %v4841, %v4848
    %v4856 = vsel %vm2564, %v4747, 0
    %v4859 = vsel %vm2564, %v4748, 0
    %v4861 = vsel %vm2703, %v4849, 0
    %4863 = vmatprep.subr.mxu0 0.0
    %4864 = vmatpush1.msra.mxu0 %v4765
    %4865 = vmatprep.subr.mxu0 0.0
    %4866 = vmatpush1.msra.mxu0 %v4782
    %4867 = vmatprep.subr.mxu0 0.0
    %4868 = vmatpush1.msra.mxu0 %v4799
    %4869 = vmatprep.subr.mxu0 0.0
    %4870 = vmatpush1.msra.mxu0 %v4816
    %4871 = vmatprep.subr.mxu0 0.0
    %4872 = vmatpush1.msra.mxu0 %v4833
    %4873 = vmatprep.subr.mxu0 0.0
    %4874 = vmatpush1.msra.mxu0 %v4861
    %4875 = vmatprep.subr.mxu0 0.0
    %4876 = vmatpush1.msra.mxu0 0.0
    %4877 = vmatprep.subr.mxu0 0.0
    %4878 = vmatpush1.msra.mxu0 0.0
    %4879 = vmatprep.subr.mxu0 0.0
    %4880 = vmatpush1.msra.mxu0 0.0
    %4881 = vmatprep.subr.mxu0 0.0
    %4882 = vmatpush1.msra.mxu0 0.0
    %4883 = vmatprep.subr.mxu0 0.0
    %4884 = vmatpush1.msra.mxu0 0.0
    %4885 = vmatprep.subr.mxu0 0.0
    %4886 = vmatpush1.msra.mxu0 0.0
    %4887 = vmatprep.subr.mxu0 0.0
    %4888 = vmatpush1.msra.mxu0 0.0
    %4889 = vmatprep.subr.mxu0 0.0
    %4890 = vmatpush1.msra.mxu0 0.0
    %4891 = vmatprep.subr.mxu0 0.0
    %4892 = vmatpush1.msra.mxu0 0.0
    %4893 = vmatprep.subr.mxu0 0.0
    %4894 = vmatpush1.msra.mxu0 0.0
    %4895 = vmatprep.subr.mxu0 0.0
    %4896 = vmatpush1.msra.mxu0 0.0
    %4897 = vmatprep.subr.mxu0 0.0
    %4898 = vmatpush1.msra.mxu0 0.0
    %4899 = vmatprep.subr.mxu0 0.0
    %4900 = vmatpush1.msra.mxu0 0.0
    %4901 = vmatprep.subr.mxu0 0.0
    %4902 = vmatpush1.msra.mxu0 0.0
    %4903 = vmatprep.subr.mxu0 0.0
    %4904 = vmatpush1.msra.mxu0 0.0
    %4905 = vmatprep.subr.mxu0 0.0
    %4906 = vmatpush1.msra.mxu0 0.0
    %4907 = vmatprep.subr.mxu0 0.0
    %4908 = vmatpush1.msra.mxu0 0.0
    %4909 = vmatprep.subr.mxu0 0.0
    %4910 = vmatpush1.msra.mxu0 0.0
    %4911 = vmatprep.subr.mxu0 0.0
    %4912 = vmatpush1.msra.mxu0 0.0
    %4913 = vmatprep.subr.mxu0 0.0
    %4914 = vmatpush1.msra.mxu0 0.0
    %4915 = vmatprep.subr.mxu0 0.0
    %4916 = vmatpush1.msra.mxu0 0.0
    %4917 = vmatprep.subr.mxu0 0.0
    %4918 = vmatpush1.msra.mxu0 0.0
    %4919 = vmatprep.subr.mxu0 0.0
    %4920 = vmatpush1.msra.mxu0 0.0
    %4921 = vmatprep.subr.mxu0 0.0
    %4922 = vmatpush1.msra.mxu0 0.0
    %4923 = vmatprep.subr.mxu0 0.0
    %4924 = vmatpush1.msra.mxu0 0.0
    %4925 = vmatprep.subr.mxu0 0.0
    %4926 = vmatpush1.msra.mxu0 0.0
    %4927 = vmatprep.mubr.f32.mxu0 0.0
    %4928 = vmatmul.mubr.f32.gmra.mrb[0].mxu0 %v4856
    %v4929 = vpop.f32.mrb[0].mxu0
    %v4930 = vadd.f32 0.0, %v4929
    %v4931 = vpop.f32.mrb[0].mxu0
    %4932 = vmatprep.mubr.f32.mxu0 0.0
    %4933 = vmatmul.mubr.f32.gmra.mrb[0].mxu0 %v4859
    %v4934 = vpop.f32.mrb[0].mxu0
    %v4935 = vadd.f32 0.0, %v4934
    %v4936 = vpop.f32.mrb[0].mxu0
    %4937 = vdwg.mxu0
    %s4938 = scalar_lea.vmem [#allocation5], 32
    %4939 = vst.msk [vmem:[%s4938] sm:$0xff] %vm4550, %v4930
    %4940 = vst.msk [vmem:[%s4938 + $0x8] sm:$0xff] %vm4550, %v4935
    %v4941 = vld [vmem:[%s2] sm:$0xff]
    %v4942 = vld [vmem:[%s2 + $0x8] sm:$0xff]
    %v4943 = vcombine.low %v3490, %v3489
    %v4944 = vcombine.low %v3491, %v3499
    %v4946 = vunpack.c.l.s4 1983009808
    %v4947 = vunpack.c.0.s8 %v4946
    %v4948 = vlaneseq
    %v4949 = vshrl.u32 %v4948, 7
    %v4950 = vsub.s32 %v4947, %v4949
    %v4951 = vrot.slane %v4943, %v4950
    %v4953 = vunpack.c.l.s4 1983009808
    %v4954 = vunpack.c.0.s8 %v4953
    %v4955 = vlaneseq
    %v4956 = vshrl.u32 %v4955, 7
    %v4957 = vsub.s32 %v4954, %v4956
    %v4958 = vrot.slane %v4944, %v4957
    %v4959 = vcombine.low %v4951, %v4958
    %v4960 = vcombine.low %v3507, %v3506
    %v4961 = vcombine.low %v3508, %v3516
    %v4963 = vunpack.c.l.s4 1983009808
    %v4964 = vunpack.c.0.s8 %v4963
    %v4965 = vlaneseq
    %v4966 = vshrl.u32 %v4965, 7
    %v4967 = vsub.s32 %v4964, %v4966
    %v4968 = vrot.slane %v4960, %v4967
    %v4970 = vunpack.c.l.s4 1983009808
    %v4971 = vunpack.c.0.s8 %v4970
    %v4972 = vlaneseq
    %v4973 = vshrl.u32 %v4972, 7
    %v4974 = vsub.s32 %v4971, %v4973
    %v4975 = vrot.slane %v4961, %v4974
    %v4976 = vcombine.low %v4968, %v4975
    %v4977 = vcombine.low %v3524, %v3523
    %v4978 = vcombine.low %v3525, %v3533
    %v4980 = vunpack.c.l.s4 1983009808
    %v4981 = vunpack.c.0.s8 %v4980
    %v4982 = vlaneseq
    %v4983 = vshrl.u32 %v4982, 7
    %v4984 = vsub.s32 %v4981, %v4983
    %v4985 = vrot.slane %v4977, %v4984
    %v4987 = vunpack.c.l.s4 1983009808
    %v4988 = vunpack.c.0.s8 %v4987
    %v4989 = vlaneseq
    %v4990 = vshrl.u32 %v4989, 7
    %v4991 = vsub.s32 %v4988, %v4990
    %v4992 = vrot.slane %v4978, %v4991
    %v4993 = vcombine.low %v4985, %v4992
    %v4994 = vcombine.low %v3541, %v3540
    %v4995 = vcombine.low %v3542, %v3550
    %v4997 = vunpack.c.l.s4 1983009808
    %v4998 = vunpack.c.0.s8 %v4997
    %v4999 = vlaneseq
    %v5000 = vshrl.u32 %v4999, 7
    %v5001 = vsub.s32 %v4998, %v5000
    %v5002 = vrot.slane %v4994, %v5001
    %v5004 = vunpack.c.l.s4 1983009808
    %v5005 = vunpack.c.0.s8 %v5004
    %v5006 = vlaneseq
    %v5007 = vshrl.u32 %v5006, 7
    %v5008 = vsub.s32 %v5005, %v5007
    %v5009 = vrot.slane %v4995, %v5008
    %v5010 = vcombine.low %v5002, %v5009
    %v5011 = vcombine.low %v3558, %v3557
    %v5012 = vcombine.low %v3559, %v3567
    %v5014 = vunpack.c.l.s4 1983009808
    %v5015 = vunpack.c.0.s8 %v5014
    %v5016 = vlaneseq
    %v5017 = vshrl.u32 %v5016, 7
    %v5018 = vsub.s32 %v5015, %v5017
    %v5019 = vrot.slane %v5011, %v5018
    %v5021 = vunpack.c.l.s4 1983009808
    %v5022 = vunpack.c.0.s8 %v5021
    %v5023 = vlaneseq
    %v5024 = vshrl.u32 %v5023, 7
    %v5025 = vsub.s32 %v5022, %v5024
    %v5026 = vrot.slane %v5012, %v5025
    %v5027 = vcombine.low %v5019, %v5026
    %v5028 = vcombine.low %v3575, %v3574
    %v5030 = vunpack.c.l.s4 1983009808
    %v5031 = vunpack.c.0.s8 %v5030
    %v5032 = vlaneseq
    %v5033 = vshrl.u32 %v5032, 7
    %v5034 = vsub.s32 %v5031, %v5033
    %v5035 = vrot.slane %v5028, %v5034
    %v5037 = vunpack.c.l.s4 1983009808
    %v5038 = vunpack.c.0.s8 %v5037
    %v5039 = vlaneseq
    %v5040 = vshrl.u32 %v5039, 7
    %v5041 = vsub.s32 %v5038, %v5040
    %v5042 = vrot.slane %v3576, %v5041
    %v5043 = vcombine.low %v5035, %v5042
    %v5050 = vsel %vm2564, %v4941, 0
    %v5053 = vsel %vm2564, %v4942, 0
    %v5055 = vsel %vm2703, %v5043, 0
    %5057 = vmatprep.subr.mxu0 0.0
    %5058 = vmatpush1.msra.mxu0 %v4959
    %5059 = vmatprep.subr.mxu0 0.0
    %5060 = vmatpush1.msra.mxu0 %v4976
    %5061 = vmatprep.subr.mxu0 0.0
    %5062 = vmatpush1.msra.mxu0 %v4993
    %5063 = vmatprep.subr.mxu0 0.0
    %5064 = vmatpush1.msra.mxu0 %v5010
    %5065 = vmatprep.subr.mxu0 0.0
    %5066 = vmatpush1.msra.mxu0 %v5027
    %5067 = vmatprep.subr.mxu0 0.0
    %5068 = vmatpush1.msra.mxu0 %v5055
    %5069 = vmatprep.subr.mxu0 0.0
    %5070 = vmatpush1.msra.mxu0 0.0
    %5071 = vmatprep.subr.mxu0 0.0
    %5072 = vmatpush1.msra.mxu0 0.0
    %5073 = vmatprep.subr.mxu0 0.0
    %5074 = vmatpush1.msra.mxu0 0.0
    %5075 = vmatprep.subr.mxu0 0.0
    %5076 = vmatpush1.msra.mxu0 0.0
    %5077 = vmatprep.subr.mxu0 0.0
    %5078 = vmatpush1.msra.mxu0 0.0
    %5079 = vmatprep.subr.mxu0 0.0
    %5080 = vmatpush1.msra.mxu0 0.0
    %5081 = vmatprep.subr.mxu0 0.0
    %5082 = vmatpush1.msra.mxu0 0.0
    %5083 = vmatprep.subr.mxu0 0.0
    %5084 = vmatpush1.msra.mxu0 0.0
    %5085 = vmatprep.subr.mxu0 0.0
    %5086 = vmatpush1.msra.mxu0 0.0
    %5087 = vmatprep.subr.mxu0 0.0
    %5088 = vmatpush1.msra.mxu0 0.0
    %5089 = vmatprep.subr.mxu0 0.0
    %5090 = vmatpush1.msra.mxu0 0.0
    %5091 = vmatprep.subr.mxu0 0.0
    %5092 = vmatpush1.msra.mxu0 0.0
    %5093 = vmatprep.subr.mxu0 0.0
    %5094 = vmatpush1.msra.mxu0 0.0
    %5095 = vmatprep.subr.mxu0 0.0
    %5096 = vmatpush1.msra.mxu0 0.0
    %5097 = vmatprep.subr.mxu0 0.0
    %5098 = vmatpush1.msra.mxu0 0.0
    %5099 = vmatprep.subr.mxu0 0.0
    %5100 = vmatpush1.msra.mxu0 0.0
    %5101 = vmatprep.subr.mxu0 0.0
    %5102 = vmatpush1.msra.mxu0 0.0
    %5103 = vmatprep.subr.mxu0 0.0
    %5104 = vmatpush1.msra.mxu0 0.0
    %5105 = vmatprep.subr.mxu0 0.0
    %5106 = vmatpush1.msra.mxu0 0.0
    %5107 = vmatprep.subr.mxu0 0.0
    %5108 = vmatpush1.msra.mxu0 0.0
    %5109 = vmatprep.subr.mxu0 0.0
    %5110 = vmatpush1.msra.mxu0 0.0
    %5111 = vmatprep.subr.mxu0 0.0
    %5112 = vmatpush1.msra.mxu0 0.0
    %5113 = vmatprep.subr.mxu0 0.0
    %5114 = vmatpush1.msra.mxu0 0.0
    %5115 = vmatprep.subr.mxu0 0.0
    %5116 = vmatpush1.msra.mxu0 0.0
    %5117 = vmatprep.subr.mxu0 0.0
    %5118 = vmatpush1.msra.mxu0 0.0
    %5119 = vmatprep.subr.mxu0 0.0
    %5120 = vmatpush1.msra.mxu0 0.0
    %5121 = vmatprep.mubr.f32.mxu0 0.0
    %5122 = vmatmul.mubr.f32.gmra.mrb[0].mxu0 %v5050
    %v5123 = vpop.f32.mrb[0].mxu0
    %v5124 = vadd.f32 0.0, %v5123
    %v5125 = vpop.f32.mrb[0].mxu0
    %5126 = vmatprep.mubr.f32.mxu0 0.0
    %5127 = vmatmul.mubr.f32.gmra.mrb[0].mxu0 %v5053
    %v5128 = vpop.f32.mrb[0].mxu0
    %v5129 = vadd.f32 0.0, %v5128
    %v5130 = vpop.f32.mrb[0].mxu0
    %5131 = vdwg.mxu0
    %s5132 = scalar_lea.vmem [#allocation5], 48
    %5133 = vst.msk [vmem:[%s5132] sm:$0xff] %vm4550, %v5124
    %5134 = vst.msk [vmem:[%s5132 + $0x8] sm:$0xff] %vm4550, %v5129
    %v5135 = vld [vmem:[%s2] sm:$0xff]
    %v5136 = vld [vmem:[%s2 + $0x8] sm:$0xff]
    %v5137 = vcombine.low %v3584, %v3592
    %v5138 = vcombine.low %v3591, %v3593
    %v5140 = vunpack.c.l.s4 1983009808
    %v5141 = vunpack.c.0.s8 %v5140
    %v5142 = vlaneseq
    %v5143 = vshrl.u32 %v5142, 7
    %v5144 = vsub.s32 %v5141, %v5143
    %v5145 = vrot.slane %v5137, %v5144
    %v5147 = vunpack.c.l.s4 1983009808
    %v5148 = vunpack.c.0.s8 %v5147
    %v5149 = vlaneseq
    %v5150 = vshrl.u32 %v5149, 7
    %v5151 = vsub.s32 %v5148, %v5150
    %v5152 = vrot.slane %v5138, %v5151
    %v5153 = vcombine.low %v5145, %v5152
    %v5154 = vcombine.low %v3601, %v3609
    %v5155 = vcombine.low %v3608, %v3610
    %v5157 = vunpack.c.l.s4 1983009808
    %v5158 = vunpack.c.0.s8 %v5157
    %v5159 = vlaneseq
    %v5160 = vshrl.u32 %v5159, 7
    %v5161 = vsub.s32 %v5158, %v5160
    %v5162 = vrot.slane %v5154, %v5161
    %v5164 = vunpack.c.l.s4 1983009808
    %v5165 = vunpack.c.0.s8 %v5164
    %v5166 = vlaneseq
    %v5167 = vshrl.u32 %v5166, 7
    %v5168 = vsub.s32 %v5165, %v5167
    %v5169 = vrot.slane %v5155, %v5168
    %v5170 = vcombine.low %v5162, %v5169
    %v5171 = vcombine.low %v3618, %v3626
    %v5172 = vcombine.low %v3625, %v3627
    %v5174 = vunpack.c.l.s4 1983009808
    %v5175 = vunpack.c.0.s8 %v5174
    %v5176 = vlaneseq
    %v5177 = vshrl.u32 %v5176, 7
    %v5178 = vsub.s32 %v5175, %v5177
    %v5179 = vrot.slane %v5171, %v5178
    %v5181 = vunpack.c.l.s4 1983009808
    %v5182 = vunpack.c.0.s8 %v5181
    %v5183 = vlaneseq
    %v5184 = vshrl.u32 %v5183, 7
    %v5185 = vsub.s32 %v5182, %v5184
    %v5186 = vrot.slane %v5172, %v5185
    %v5187 = vcombine.low %v5179, %v5186
    %v5188 = vcombine.low %v3635, %v3643
    %v5189 = vcombine.low %v3642, %v3644
    %v5191 = vunpack.c.l.s4 1983009808
    %v5192 = vunpack.c.0.s8 %v5191
    %v5193 = vlaneseq
    %v5194 = vshrl.u32 %v5193, 7
    %v5195 = vsub.s32 %v5192, %v5194
    %v5196 = vrot.slane %v5188, %v5195
    %v5198 = vunpack.c.l.s4 1983009808
    %v5199 = vunpack.c.0.s8 %v5198
    %v5200 = vlaneseq
    %v5201 = vshrl.u32 %v5200, 7
    %v5202 = vsub.s32 %v5199, %v5201
    %v5203 = vrot.slane %v5189, %v5202
    %v5204 = vcombine.low %v5196, %v5203
    %v5205 = vcombine.low %v3652, %v3660
    %v5206 = vcombine.low %v3659, %v3661
    %v5208 = vunpack.c.l.s4 1983009808
    %v5209 = vunpack.c.0.s8 %v5208
    %v5210 = vlaneseq
    %v5211 = vshrl.u32 %v5210, 7
    %v5212 = vsub.s32 %v5209, %v5211
    %v5213 = vrot.slane %v5205, %v5212
    %v5215 = vunpack.c.l.s4 1983009808
    %v5216 = vunpack.c.0.s8 %v5215
    %v5217 = vlaneseq
    %v5218 = vshrl.u32 %v5217, 7
    %v5219 = vsub.s32 %v5216, %v5218
    %v5220 = vrot.slane %v5206, %v5219
    %v5221 = vcombine.low %v5213, %v5220
    %v5222 = vcombine.low %v3669, %v3677
    %v5224 = vunpack.c.l.s4 1983009808
    %v5225 = vunpack.c.0.s8 %v5224
    %v5226 = vlaneseq
    %v5227 = vshrl.u32 %v5226, 7
    %v5228 = vsub.s32 %v5225, %v5227
    %v5229 = vrot.slane %v5222, %v5228
    %v5231 = vunpack.c.l.s4 1983009808
    %v5232 = vunpack.c.0.s8 %v5231
    %v5233 = vlaneseq
    %v5234 = vshrl.u32 %v5233, 7
    %v5235 = vsub.s32 %v5232, %v5234
    %v5236 = vrot.slane %v3676, %v5235
    %v5237 = vcombine.low %v5229, %v5236
    %v5244 = vsel %vm2564, %v5135, 0
    %v5247 = vsel %vm2564, %v5136, 0
    %v5249 = vsel %vm2703, %v5237, 0
    %5251 = vmatprep.subr.mxu0 0.0
    %5252 = vmatpush1.msra.mxu0 %v5153
    %5253 = vmatprep.subr.mxu0 0.0
    %5254 = vmatpush1.msra.mxu0 %v5170
    %5255 = vmatprep.subr.mxu0 0.0
    %5256 = vmatpush1.msra.mxu0 %v5187
    %5257 = vmatprep.subr.mxu0 0.0
    %5258 = vmatpush1.msra.mxu0 %v5204
    %5259 = vmatprep.subr.mxu0 0.0
    %5260 = vmatpush1.msra.mxu0 %v5221
    %5261 = vmatprep.subr.mxu0 0.0
    %5262 = vmatpush1.msra.mxu0 %v5249
    %5263 = vmatprep.subr.mxu0 0.0
    %5264 = vmatpush1.msra.mxu0 0.0
    %5265 = vmatprep.subr.mxu0 0.0
    %5266 = vmatpush1.msra.mxu0 0.0
    %5267 = vmatprep.subr.mxu0 0.0
    %5268 = vmatpush1.msra.mxu0 0.0
    %5269 = vmatprep.subr.mxu0 0.0
    %5270 = vmatpush1.msra.mxu0 0.0
    %5271 = vmatprep.subr.mxu0 0.0
    %5272 = vmatpush1.msra.mxu0 0.0
    %5273 = vmatprep.subr.mxu0 0.0
    %5274 = vmatpush1.msra.mxu0 0.0
    %5275 = vmatprep.subr.mxu0 0.0
    %5276 = vmatpush1.msra.mxu0 0.0
    %5277 = vmatprep.subr.mxu0 0.0
    %5278 = vmatpush1.msra.mxu0 0.0
    %5279 = vmatprep.subr.mxu0 0.0
    %5280 = vmatpush1.msra.mxu0 0.0
    %5281 = vmatprep.subr.mxu0 0.0
    %5282 = vmatpush1.msra.mxu0 0.0
    %5283 = vmatprep.subr.mxu0 0.0
    %5284 = vmatpush1.msra.mxu0 0.0
    %5285 = vmatprep.subr.mxu0 0.0
    %5286 = vmatpush1.msra.mxu0 0.0
    %5287 = vmatprep.subr.mxu0 0.0
    %5288 = vmatpush1.msra.mxu0 0.0
    %5289 = vmatprep.subr.mxu0 0.0
    %5290 = vmatpush1.msra.mxu0 0.0
    %5291 = vmatprep.subr.mxu0 0.0
    %5292 = vmatpush1.msra.mxu0 0.0
    %5293 = vmatprep.subr.mxu0 0.0
    %5294 = vmatpush1.msra.mxu0 0.0
    %5295 = vmatprep.subr.mxu0 0.0
    %5296 = vmatpush1.msra.mxu0 0.0
    %5297 = vmatprep.subr.mxu0 0.0
    %5298 = vmatpush1.msra.mxu0 0.0
    %5299 = vmatprep.subr.mxu0 0.0
    %5300 = vmatpush1.msra.mxu0 0.0
    %5301 = vmatprep.subr.mxu0 0.0
    %5302 = vmatpush1.msra.mxu0 0.0
    %5303 = vmatprep.subr.mxu0 0.0
    %5304 = vmatpush1.msra.mxu0 0.0
    %5305 = vmatprep.subr.mxu0 0.0
    %5306 = vmatpush1.msra.mxu0 0.0
    %5307 = vmatprep.subr.mxu0 0.0
    %5308 = vmatpush1.msra.mxu0 0.0
    %5309 = vmatprep.subr.mxu0 0.0
    %5310 = vmatpush1.msra.mxu0 0.0
    %5311 = vmatprep.subr.mxu0 0.0
    %5312 = vmatpush1.msra.mxu0 0.0
    %5313 = vmatprep.subr.mxu0 0.0
    %5314 = vmatpush1.msra.mxu0 0.0
    %5315 = vmatprep.mubr.f32.mxu0 0.0
    %5316 = vmatmul.mubr.f32.gmra.mrb[0].mxu0 %v5244
    %v5317 = vpop.f32.mrb[0].mxu0
    %v5318 = vadd.f32 0.0, %v5317
    %v5319 = vpop.f32.mrb[0].mxu0
    %5320 = vmatprep.mubr.f32.mxu0 0.0
    %5321 = vmatmul.mubr.f32.gmra.mrb[0].mxu0 %v5247
    %v5322 = vpop.f32.mrb[0].mxu0
    %v5323 = vadd.f32 0.0, %v5322
    %v5324 = vpop.f32.mrb[0].mxu0
    %5325 = vdwg.mxu0
    %s5326 = scalar_lea.vmem [#allocation5], 64
    %5327 = vst.msk [vmem:[%s5326] sm:$0xff] %vm4550, %v5318
    %5328 = vst.msk [vmem:[%s5326 + $0x8] sm:$0xff] %vm4550, %v5323
    %v5329 = vld [vmem:[%s2] sm:$0xff]
    %v5330 = vld [vmem:[%s2 + $0x8] sm:$0xff]
    %v5331 = vcombine.low %v3678, %v3686
    %v5332 = vcombine.low %v3694, %v3693
    %v5334 = vunpack.c.l.s4 1983009808
    %v5335 = vunpack.c.0.s8 %v5334
    %v5336 = vlaneseq
    %v5337 = vshrl.u32 %v5336, 7
    %v5338 = vsub.s32 %v5335, %v5337
    %v5339 = vrot.slane %v5331, %v5338
    %v5341 = vunpack.c.l.s4 1983009808
    %v5342 = vunpack.c.0.s8 %v5341
    %v5343 = vlaneseq
    %v5344 = vshrl.u32 %v5343, 7
    %v5345 = vsub.s32 %v5342, %v5344
    %v5346 = vrot.slane %v5332, %v5345
    %v5347 = vcombine.low %v5339, %v5346
    %v5348 = vcombine.low %v3695, %v3703
    %v5349 = vcombine.low %v3711, %v3710
    %v5351 = vunpack.c.l.s4 1983009808
    %v5352 = vunpack.c.0.s8 %v5351
    %v5353 = vlaneseq
    %v5354 = vshrl.u32 %v5353, 7
    %v5355 = vsub.s32 %v5352, %v5354
    %v5356 = vrot.slane %v5348, %v5355
    %v5358 = vunpack.c.l.s4 1983009808
    %v5359 = vunpack.c.0.s8 %v5358
    %v5360 = vlaneseq
    %v5361 = vshrl.u32 %v5360, 7
    %v5362 = vsub.s32 %v5359, %v5361
    %v5363 = vrot.slane %v5349, %v5362
    %v5364 = vcombine.low %v5356, %v5363
    %v5365 = vcombine.low %v3712, %v3720
    %v5366 = vcombine.low %v3728, %v3727
    %v5368 = vunpack.c.l.s4 1983009808
    %v5369 = vunpack.c.0.s8 %v5368
    %v5370 = vlaneseq
    %v5371 = vshrl.u32 %v5370, 7
    %v5372 = vsub.s32 %v5369, %v5371
    %v5373 = vrot.slane %v5365, %v5372
    %v5375 = vunpack.c.l.s4 1983009808
    %v5376 = vunpack.c.0.s8 %v5375
    %v5377 = vlaneseq
    %v5378 = vshrl.u32 %v5377, 7
    %v5379 = vsub.s32 %v5376, %v5378
    %v5380 = vrot.slane %v5366, %v5379
    %v5381 = vcombine.low %v5373, %v5380
    %v5382 = vcombine.low %v3729, %v3737
    %v5383 = vcombine.low %v3745, %v3744
    %v5385 = vunpack.c.l.s4 1983009808
    %v5386 = vunpack.c.0.s8 %v5385
    %v5387 = vlaneseq
    %v5388 = vshrl.u32 %v5387, 7
    %v5389 = vsub.s32 %v5386, %v5388
    %v5390 = vrot.slane %v5382, %v5389
    %v5392 = vunpack.c.l.s4 1983009808
    %v5393 = vunpack.c.0.s8 %v5392
    %v5394 = vlaneseq
    %v5395 = vshrl.u32 %v5394, 7
    %v5396 = vsub.s32 %v5393, %v5395
    %v5397 = vrot.slane %v5383, %v5396
    %v5398 = vcombine.low %v5390, %v5397
    %v5399 = vcombine.low %v3746, %v3754
    %v5400 = vcombine.low %v3762, %v3761
    %v5402 = vunpack.c.l.s4 1983009808
    %v5403 = vunpack.c.0.s8 %v5402
    %v5404 = vlaneseq
    %v5405 = vshrl.u32 %v5404, 7
    %v5406 = vsub.s32 %v5403, %v5405
    %v5407 = vrot.slane %v5399, %v5406
    %v5409 = vunpack.c.l.s4 1983009808
    %v5410 = vunpack.c.0.s8 %v5409
    %v5411 = vlaneseq
    %v5412 = vshrl.u32 %v5411, 7
    %v5413 = vsub.s32 %v5410, %v5412
    %v5414 = vrot.slane %v5400, %v5413
    %v5415 = vcombine.low %v5407, %v5414
    %v5416 = vcombine.low %v3763, %v3771
    %v5418 = vunpack.c.l.s4 1983009808
    %v5419 = vunpack.c.0.s8 %v5418
    %v5420 = vlaneseq
    %v5421 = vshrl.u32 %v5420, 7
    %v5422 = vsub.s32 %v5419, %v5421
    %v5423 = vrot.slane %v5416, %v5422
    %v5425 = vunpack.c.l.s4 1983009808
    %v5426 = vunpack.c.0.s8 %v5425
    %v5427 = vlaneseq
    %v5428 = vshrl.u32 %v5427, 7
    %v5429 = vsub.s32 %v5426, %v5428
    %v5430 = vrot.slane %v3779, %v5429
    %v5431 = vcombine.low %v5423, %v5430
    %v5438 = vsel %vm2564, %v5329, 0
    %v5441 = vsel %vm2564, %v5330, 0
    %v5443 = vsel %vm2703, %v5431, 0
    %5445 = vmatprep.subr.mxu0 0.0
    %5446 = vmatpush1.msra.mxu0 %v5347
    %5447 = vmatprep.subr.mxu0 0.0
    %5448 = vmatpush1.msra.mxu0 %v5364
    %5449 = vmatprep.subr.mxu0 0.0
    %5450 = vmatpush1.msra.mxu0 %v5381
    %5451 = vmatprep.subr.mxu0 0.0
    %5452 = vmatpush1.msra.mxu0 %v5398
    %5453 = vmatprep.subr.mxu0 0.0
    %5454 = vmatpush1.msra.mxu0 %v5415
    %5455 = vmatprep.subr.mxu0 0.0
    %5456 = vmatpush1.msra.mxu0 %v5443
    %5457 = vmatprep.subr.mxu0 0.0
    %5458 = vmatpush1.msra.mxu0 0.0
    %5459 = vmatprep.subr.mxu0 0.0
    %5460 = vmatpush1.msra.mxu0 0.0
    %5461 = vmatprep.subr.mxu0 0.0
    %5462 = vmatpush1.msra.mxu0 0.0
    %5463 = vmatprep.subr.mxu0 0.0
    %5464 = vmatpush1.msra.mxu0 0.0
    %5465 = vmatprep.subr.mxu0 0.0
    %5466 = vmatpush1.msra.mxu0 0.0
    %5467 = vmatprep.subr.mxu0 0.0
    %5468 = vmatpush1.msra.mxu0 0.0
    %5469 = vmatprep.subr.mxu0 0.0
    %5470 = vmatpush1.msra.mxu0 0.0
    %5471 = vmatprep.subr.mxu0 0.0
    %5472 = vmatpush1.msra.mxu0 0.0
    %5473 = vmatprep.subr.mxu0 0.0
    %5474 = vmatpush1.msra.mxu0 0.0
    %5475 = vmatprep.subr.mxu0 0.0
    %5476 = vmatpush1.msra.mxu0 0.0
    %5477 = vmatprep.subr.mxu0 0.0
    %5478 = vmatpush1.msra.mxu0 0.0
    %5479 = vmatprep.subr.mxu0 0.0
    %5480 = vmatpush1.msra.mxu0 0.0
    %5481 = vmatprep.subr.mxu0 0.0
    %5482 = vmatpush1.msra.mxu0 0.0
    %5483 = vmatprep.subr.mxu0 0.0
    %5484 = vmatpush1.msra.mxu0 0.0
    %5485 = vmatprep.subr.mxu0 0.0
    %5486 = vmatpush1.msra.mxu0 0.0
    %5487 = vmatprep.subr.mxu0 0.0
    %5488 = vmatpush1.msra.mxu0 0.0
    %5489 = vmatprep.subr.mxu0 0.0
    %5490 = vmatpush1.msra.mxu0 0.0
    %5491 = vmatprep.subr.mxu0 0.0
    %5492 = vmatpush1.msra.mxu0 0.0
    %5493 = vmatprep.subr.mxu0 0.0
    %5494 = vmatpush1.msra.mxu0 0.0
    %5495 = vmatprep.subr.mxu0 0.0
    %5496 = vmatpush1.msra.mxu0 0.0
    %5497 = vmatprep.subr.mxu0 0.0
    %5498 = vmatpush1.msra.mxu0 0.0
    %5499 = vmatprep.subr.mxu0 0.0
    %5500 = vmatpush1.msra.mxu0 0.0
    %5501 = vmatprep.subr.mxu0 0.0
    %5502 = vmatpush1.msra.mxu0 0.0
    %5503 = vmatprep.subr.mxu0 0.0
    %5504 = vmatpush1.msra.mxu0 0.0
    %5505 = vmatprep.subr.mxu0 0.0
    %5506 = vmatpush1.msra.mxu0 0.0
    %5507 = vmatprep.subr.mxu0 0.0
    %5508 = vmatpush1.msra.mxu0 0.0
    %5509 = vmatprep.mubr.f32.mxu0 0.0
    %5510 = vmatmul.mubr.f32.gmra.mrb[0].mxu0 %v5438
    %v5511 = vpop.f32.mrb[0].mxu0
    %v5512 = vadd.f32 0.0, %v5511
    %v5513 = vpop.f32.mrb[0].mxu0
    %5514 = vmatprep.mubr.f32.mxu0 0.0
    %5515 = vmatmul.mubr.f32.gmra.mrb[0].mxu0 %v5441
    %v5516 = vpop.f32.mrb[0].mxu0
    %v5517 = vadd.f32 0.0, %v5516
    %v5518 = vpop.f32.mrb[0].mxu0
    %5519 = vdwg.mxu0
    %s5520 = scalar_lea.vmem [#allocation5], 80
    %5521 = vst.msk [vmem:[%s5520] sm:$0xff] %vm4550, %v5512
    %5522 = vst.msk [vmem:[%s5520 + $0x8] sm:$0xff] %vm4550, %v5517
    %v5523 = vld [vmem:[%s2] sm:$0xff]
    %v5524 = vld [vmem:[%s2 + $0x8] sm:$0xff]
    %v5525 = vcombine.low %v3778, %v3780
    %v5526 = vcombine.low %v3788, %v3796
    %v5528 = vunpack.c.l.s4 1983009808
    %v5529 = vunpack.c.0.s8 %v5528
    %v5530 = vlaneseq
    %v5531 = vshrl.u32 %v5530, 7
    %v5532 = vsub.s32 %v5529, %v5531
    %v5533 = vrot.slane %v5525, %v5532
    %v5535 = vunpack.c.l.s4 1983009808
    %v5536 = vunpack.c.0.s8 %v5535
    %v5537 = vlaneseq
    %v5538 = vshrl.u32 %v5537, 7
    %v5539 = vsub.s32 %v5536, %v5538
    %v5540 = vrot.slane %v5526, %v5539
    %v5541 = vcombine.low %v5533, %v5540
    %v5542 = vcombine.low %v3795, %v3797
    %v5543 = vcombine.low %v3805, %v3813
    %v5545 = vunpack.c.l.s4 1983009808
    %v5546 = vunpack.c.0.s8 %v5545
    %v5547 = vlaneseq
    %v5548 = vshrl.u32 %v5547, 7
    %v5549 = vsub.s32 %v5546, %v5548
    %v5550 = vrot.slane %v5542, %v5549
    %v5552 = vunpack.c.l.s4 1983009808
    %v5553 = vunpack.c.0.s8 %v5552
    %v5554 = vlaneseq
    %v5555 = vshrl.u32 %v5554, 7
    %v5556 = vsub.s32 %v5553, %v5555
    %v5557 = vrot.slane %v5543, %v5556
    %v5558 = vcombine.low %v5550, %v5557
    %v5559 = vcombine.low %v3812, %v3814
    %v5560 = vcombine.low %v3822, %v3830
    %v5562 = vunpack.c.l.s4 1983009808
    %v5563 = vunpack.c.0.s8 %v5562
    %v5564 = vlaneseq
    %v5565 = vshrl.u32 %v5564, 7
    %v5566 = vsub.s32 %v5563, %v5565
    %v5567 = vrot.slane %v5559, %v5566
    %v5569 = vunpack.c.l.s4 1983009808
    %v5570 = vunpack.c.0.s8 %v5569
    %v5571 = vlaneseq
    %v5572 = vshrl.u32 %v5571, 7
    %v5573 = vsub.s32 %v5570, %v5572
    %v5574 = vrot.slane %v5560, %v5573
    %v5575 = vcombine.low %v5567, %v5574
    %v5576 = vcombine.low %v3829, %v3831
    %v5577 = vcombine.low %v3839, %v3847
    %v5579 = vunpack.c.l.s4 1983009808
    %v5580 = vunpack.c.0.s8 %v5579
    %v5581 = vlaneseq
    %v5582 = vshrl.u32 %v5581, 7
    %v5583 = vsub.s32 %v5580, %v5582
    %v5584 = vrot.slane %v5576, %v5583
    %v5586 = vunpack.c.l.s4 1983009808
    %v5587 = vunpack.c.0.s8 %v5586
    %v5588 = vlaneseq
    %v5589 = vshrl.u32 %v5588, 7
    %v5590 = vsub.s32 %v5587, %v5589
    %v5591 = vrot.slane %v5577, %v5590
    %v5592 = vcombine.low %v5584, %v5591
    %v5593 = vcombine.low %v3846, %v3848
    %v5594 = vcombine.low %v3856, %v3864
    %v5596 = vunpack.c.l.s4 1983009808
    %v5597 = vunpack.c.0.s8 %v5596
    %v5598 = vlaneseq
    %v5599 = vshrl.u32 %v5598, 7
    %v5600 = vsub.s32 %v5597, %v5599
    %v5601 = vrot.slane %v5593, %v5600
    %v5603 = vunpack.c.l.s4 1983009808
    %v5604 = vunpack.c.0.s8 %v5603
    %v5605 = vlaneseq
    %v5606 = vshrl.u32 %v5605, 7
    %v5607 = vsub.s32 %v5604, %v5606
    %v5608 = vrot.slane %v5594, %v5607
    %v5609 = vcombine.low %v5601, %v5608
    %v5610 = vcombine.low %v3863, %v3865
    %v5612 = vunpack.c.l.s4 1983009808
    %v5613 = vunpack.c.0.s8 %v5612
    %v5614 = vlaneseq
    %v5615 = vshrl.u32 %v5614, 7
    %v5616 = vsub.s32 %v5613, %v5615
    %v5617 = vrot.slane %v5610, %v5616
    %v5619 = vunpack.c.l.s4 1983009808
    %v5620 = vunpack.c.0.s8 %v5619
    %v5621 = vlaneseq
    %v5622 = vshrl.u32 %v5621, 7
    %v5623 = vsub.s32 %v5620, %v5622
    %v5624 = vrot.slane %v3873, %v5623
    %v5625 = vcombine.low %v5617, %v5624
    %v5632 = vsel %vm2564, %v5523, 0
    %v5635 = vsel %vm2564, %v5524, 0
    %v5637 = vsel %vm2703, %v5625, 0
    %5639 = vmatprep.subr.mxu0 0.0
    %5640 = vmatpush1.msra.mxu0 %v5541
    %5641 = vmatprep.subr.mxu0 0.0
    %5642 = vmatpush1.msra.mxu0 %v5558
    %5643 = vmatprep.subr.mxu0 0.0
    %5644 = vmatpush1.msra.mxu0 %v5575
    %5645 = vmatprep.subr.mxu0 0.0
    %5646 = vmatpush1.msra.mxu0 %v5592
    %5647 = vmatprep.subr.mxu0 0.0
    %5648 = vmatpush1.msra.mxu0 %v5609
    %5649 = vmatprep.subr.mxu0 0.0
    %5650 = vmatpush1.msra.mxu0 %v5637
    %5651 = vmatprep.subr.mxu0 0.0
    %5652 = vmatpush1.msra.mxu0 0.0
    %5653 = vmatprep.subr.mxu0 0.0
    %5654 = vmatpush1.msra.mxu0 0.0
    %5655 = vmatprep.subr.mxu0 0.0
    %5656 = vmatpush1.msra.mxu0 0.0
    %5657 = vmatprep.subr.mxu0 0.0
    %5658 = vmatpush1.msra.mxu0 0.0
    %5659 = vmatprep.subr.mxu0 0.0
    %5660 = vmatpush1.msra.mxu0 0.0
    %5661 = vmatprep.subr.mxu0 0.0
    %5662 = vmatpush1.msra.mxu0 0.0
    %5663 = vmatprep.subr.mxu0 0.0
    %5664 = vmatpush1.msra.mxu0 0.0
    %5665 = vmatprep.subr.mxu0 0.0
    %5666 = vmatpush1.msra.mxu0 0.0
    %5667 = vmatprep.subr.mxu0 0.0
    %5668 = vmatpush1.msra.mxu0 0.0
    %5669 = vmatprep.subr.mxu0 0.0
    %5670 = vmatpush1.msra.mxu0 0.0
    %5671 = vmatprep.subr.mxu0 0.0
    %5672 = vmatpush1.msra.mxu0 0.0
    %5673 = vmatprep.subr.mxu0 0.0
    %5674 = vmatpush1.msra.mxu0 0.0
    %5675 = vmatprep.subr.mxu0 0.0
    %5676 = vmatpush1.msra.mxu0 0.0
    %5677 = vmatprep.subr.mxu0 0.0
    %5678 = vmatpush1.msra.mxu0 0.0
    %5679 = vmatprep.subr.mxu0 0.0
    %5680 = vmatpush1.msra.mxu0 0.0
    %5681 = vmatprep.subr.mxu0 0.0
    %5682 = vmatpush1.msra.mxu0 0.0
    %5683 = vmatprep.subr.mxu0 0.0
    %5684 = vmatpush1.msra.mxu0 0.0
    %5685 = vmatprep.subr.mxu0 0.0
    %5686 = vmatpush1.msra.mxu0 0.0
    %5687 = vmatprep.subr.mxu0 0.0
    %5688 = vmatpush1.msra.mxu0 0.0
    %5689 = vmatprep.subr.mxu0 0.0
    %5690 = vmatpush1.msra.mxu0 0.0
    %5691 = vmatprep.subr.mxu0 0.0
    %5692 = vmatpush1.msra.mxu0 0.0
    %5693 = vmatprep.subr.mxu0 0.0
    %5694 = vmatpush1.msra.mxu0 0.0
    %5695 = vmatprep.subr.mxu0 0.0
    %5696 = vmatpush1.msra.mxu0 0.0
    %5697 = vmatprep.subr.mxu0 0.0
    %5698 = vmatpush1.msra.mxu0 0.0
    %5699 = vmatprep.subr.mxu0 0.0
    %5700 = vmatpush1.msra.mxu0 0.0
    %5701 = vmatprep.subr.mxu0 0.0
    %5702 = vmatpush1.msra.mxu0 0.0
    %5703 = vmatprep.mubr.f32.mxu0 0.0
    %5704 = vmatmul.mubr.f32.gmra.mrb[0].mxu0 %v5632
    %v5705 = vpop.f32.mrb[0].mxu0
    %v5706 = vadd.f32 0.0, %v5705
    %v5707 = vpop.f32.mrb[0].mxu0
    %5708 = vmatprep.mubr.f32.mxu0 0.0
    %5709 = vmatmul.mubr.f32.gmra.mrb[0].mxu0 %v5635
    %v5710 = vpop.f32.mrb[0].mxu0
    %v5711 = vadd.f32 0.0, %v5710
    %v5712 = vpop.f32.mrb[0].mxu0
    %5713 = vdwg.mxu0
    %s5714 = scalar_lea.vmem [#allocation5], 96
    %5715 = vst.msk [vmem:[%s5714] sm:$0xff] %vm4550, %v5706
    %5716 = vst.msk [vmem:[%s5714 + $0x8] sm:$0xff] %vm4550, %v5711
    %v5717 = vld [vmem:[%s2] sm:$0xff]
    %v5718 = vld [vmem:[%s2 + $0x8] sm:$0xff]
    %v5719 = vcombine.low %v3881, %v3880
    %v5720 = vcombine.low %v3882, %v3890
    %v5722 = vunpack.c.l.s4 1983009808
    %v5723 = vunpack.c.0.s8 %v5722
    %v5724 = vlaneseq
    %v5725 = vshrl.u32 %v5724, 7
    %v5726 = vsub.s32 %v5723, %v5725
    %v5727 = vrot.slane %v5719, %v5726
    %v5729 = vunpack.c.l.s4 1983009808
    %v5730 = vunpack.c.0.s8 %v5729
    %v5731 = vlaneseq
    %v5732 = vshrl.u32 %v5731, 7
    %v5733 = vsub.s32 %v5730, %v5732
    %v5734 = vrot.slane %v5720, %v5733
    %v5735 = vcombine.low %v5727, %v5734
    %v5736 = vcombine.low %v3898, %v3897
    %v5737 = vcombine.low %v3899, %v3907
    %v5739 = vunpack.c.l.s4 1983009808
    %v5740 = vunpack.c.0.s8 %v5739
    %v5741 = vlaneseq
    %v5742 = vshrl.u32 %v5741, 7
    %v5743 = vsub.s32 %v5740, %v5742
    %v5744 = vrot.slane %v5736, %v5743
    %v5746 = vunpack.c.l.s4 1983009808
    %v5747 = vunpack.c.0.s8 %v5746
    %v5748 = vlaneseq
    %v5749 = vshrl.u32 %v5748, 7
    %v5750 = vsub.s32 %v5747, %v5749
    %v5751 = vrot.slane %v5737, %v5750
    %v5752 = vcombine.low %v5744, %v5751
    %v5753 = vcombine.low %v3915, %v3914
    %v5754 = vcombine.low %v3916, %v3924
    %v5756 = vunpack.c.l.s4 1983009808
    %v5757 = vunpack.c.0.s8 %v5756
    %v5758 = vlaneseq
    %v5759 = vshrl.u32 %v5758, 7
    %v5760 = vsub.s32 %v5757, %v5759
    %v5761 = vrot.slane %v5753, %v5760
    %v5763 = vunpack.c.l.s4 1983009808
    %v5764 = vunpack.c.0.s8 %v5763
    %v5765 = vlaneseq
    %v5766 = vshrl.u32 %v5765, 7
    %v5767 = vsub.s32 %v5764, %v5766
    %v5768 = vrot.slane %v5754, %v5767
    %v5769 = vcombine.low %v5761, %v5768
    %v5770 = vcombine.low %v3932, %v3931
    %v5771 = vcombine.low %v3933, %v3941
    %v5773 = vunpack.c.l.s4 1983009808
    %v5774 = vunpack.c.0.s8 %v5773
    %v5775 = vlaneseq
    %v5776 = vshrl.u32 %v5775, 7
    %v5777 = vsub.s32 %v5774, %v5776
    %v5778 = vrot.slane %v5770, %v5777
    %v5780 = vunpack.c.l.s4 1983009808
    %v5781 = vunpack.c.0.s8 %v5780
    %v5782 = vlaneseq
    %v5783 = vshrl.u32 %v5782, 7
    %v5784 = vsub.s32 %v5781, %v5783
    %v5785 = vrot.slane %v5771, %v5784
    %v5786 = vcombine.low %v5778, %v5785
    %v5787 = vcombine.low %v3949, %v3948
    %v5788 = vcombine.low %v3950, %v3958
    %v5790 = vunpack.c.l.s4 1983009808
    %v5791 = vunpack.c.0.s8 %v5790
    %v5792 = vlaneseq
    %v5793 = vshrl.u32 %v5792, 7
    %v5794 = vsub.s32 %v5791, %v5793
    %v5795 = vrot.slane %v5787, %v5794
    %v5797 = vunpack.c.l.s4 1983009808
    %v5798 = vunpack.c.0.s8 %v5797
    %v5799 = vlaneseq
    %v5800 = vshrl.u32 %v5799, 7
    %v5801 = vsub.s32 %v5798, %v5800
    %v5802 = vrot.slane %v5788, %v5801
    %v5803 = vcombine.low %v5795, %v5802
    %v5804 = vcombine.low %v3966, %v3965
    %v5806 = vunpack.c.l.s4 1983009808
    %v5807 = vunpack.c.0.s8 %v5806
    %v5808 = vlaneseq
    %v5809 = vshrl.u32 %v5808, 7
    %v5810 = vsub.s32 %v5807, %v5809
    %v5811 = vrot.slane %v5804, %v5810
    %v5813 = vunpack.c.l.s4 1983009808
    %v5814 = vunpack.c.0.s8 %v5813
    %v5815 = vlaneseq
    %v5816 = vshrl.u32 %v5815, 7
    %v5817 = vsub.s32 %v5814, %v5816
    %v5818 = vrot.slane %v3967, %v5817
    %v5819 = vcombine.low %v5811, %v5818
    %v5826 = vsel %vm2564, %v5717, 0
    %v5829 = vsel %vm2564, %v5718, 0
    %v5831 = vsel %vm2703, %v5819, 0
    %5833 = vmatprep.subr.mxu0 0.0
    %5834 = vmatpush1.msra.mxu0 %v5735
    %5835 = vmatprep.subr.mxu0 0.0
    %5836 = vmatpush1.msra.mxu0 %v5752
    %5837 = vmatprep.subr.mxu0 0.0
    %5838 = vmatpush1.msra.mxu0 %v5769
    %5839 = vmatprep.subr.mxu0 0.0
    %5840 = vmatpush1.msra.mxu0 %v5786
    %5841 = vmatprep.subr.mxu0 0.0
    %5842 = vmatpush1.msra.mxu0 %v5803
    %5843 = vmatprep.subr.mxu0 0.0
    %5844 = vmatpush1.msra.mxu0 %v5831
    %5845 = vmatprep.subr.mxu0 0.0
    %5846 = vmatpush1.msra.mxu0 0.0
    %5847 = vmatprep.subr.mxu0 0.0
    %5848 = vmatpush1.msra.mxu0 0.0
    %5849 = vmatprep.subr.mxu0 0.0
    %5850 = vmatpush1.msra.mxu0 0.0
    %5851 = vmatprep.subr.mxu0 0.0
    %5852 = vmatpush1.msra.mxu0 0.0
    %5853 = vmatprep.subr.mxu0 0.0
    %5854 = vmatpush1.msra.mxu0 0.0
    %5855 = vmatprep.subr.mxu0 0.0
    %5856 = vmatpush1.msra.mxu0 0.0
    %5857 = vmatprep.subr.mxu0 0.0
    %5858 = vmatpush1.msra.mxu0 0.0
    %5859 = vmatprep.subr.mxu0 0.0
    %5860 = vmatpush1.msra.mxu0 0.0
    %5861 = vmatprep.subr.mxu0 0.0
    %5862 = vmatpush1.msra.mxu0 0.0
    %5863 = vmatprep.subr.mxu0 0.0
    %5864 = vmatpush1.msra.mxu0 0.0
    %5865 = vmatprep.subr.mxu0 0.0
    %5866 = vmatpush1.msra.mxu0 0.0
    %5867 = vmatprep.subr.mxu0 0.0
    %5868 = vmatpush1.msra.mxu0 0.0
    %5869 = vmatprep.subr.mxu0 0.0
    %5870 = vmatpush1.msra.mxu0 0.0
    %5871 = vmatprep.subr.mxu0 0.0
    %5872 = vmatpush1.msra.mxu0 0.0
    %5873 = vmatprep.subr.mxu0 0.0
    %5874 = vmatpush1.msra.mxu0 0.0
    %5875 = vmatprep.subr.mxu0 0.0
    %5876 = vmatpush1.msra.mxu0 0.0
    %5877 = vmatprep.subr.mxu0 0.0
    %5878 = vmatpush1.msra.mxu0 0.0
    %5879 = vmatprep.subr.mxu0 0.0
    %5880 = vmatpush1.msra.mxu0 0.0
    %5881 = vmatprep.subr.mxu0 0.0
    %5882 = vmatpush1.msra.mxu0 0.0
    %5883 = vmatprep.subr.mxu0 0.0
    %5884 = vmatpush1.msra.mxu0 0.0
    %5885 = vmatprep.subr.mxu0 0.0
    %5886 = vmatpush1.msra.mxu0 0.0
    %5887 = vmatprep.subr.mxu0 0.0
    %5888 = vmatpush1.msra.mxu0 0.0
    %5889 = vmatprep.subr.mxu0 0.0
    %5890 = vmatpush1.msra.mxu0 0.0
    %5891 = vmatprep.subr.mxu0 0.0
    %5892 = vmatpush1.msra.mxu0 0.0
    %5893 = vmatprep.subr.mxu0 0.0
    %5894 = vmatpush1.msra.mxu0 0.0
    %5895 = vmatprep.subr.mxu0 0.0
    %5896 = vmatpush1.msra.mxu0 0.0
    %5897 = vmatprep.mubr.f32.mxu0 0.0
    %5898 = vmatmul.mubr.f32.gmra.mrb[0].mxu0 %v5826
    %v5899 = vpop.f32.mrb[0].mxu0
    %v5900 = vadd.f32 0.0, %v5899
    %v5901 = vpop.f32.mrb[0].mxu0
    %5902 = vmatprep.mubr.f32.mxu0 0.0
    %5903 = vmatmul.mubr.f32.gmra.mrb[0].mxu0 %v5829
    %v5904 = vpop.f32.mrb[0].mxu0
    %v5905 = vadd.f32 0.0, %v5904
    %v5906 = vpop.f32.mrb[0].mxu0
    %5907 = vdwg.mxu0
    %s5908 = scalar_lea.vmem [#allocation5], 112
    %5909 = vst.msk [vmem:[%s5908] sm:$0xff] %vm4550, %v5900
    %5910 = vst.msk [vmem:[%s5908 + $0x8] sm:$0xff] %vm4550, %v5905
    %v5911 = vld [vmem:[%s2] sm:$0xff]
    %v5912 = vld [vmem:[%s2 + $0x8] sm:$0xff]
    %v5913 = vcombine.low %v3975, %v3983
    %v5914 = vcombine.low %v3982, %v3984
    %v5916 = vunpack.c.l.s4 1983009808
    %v5917 = vunpack.c.0.s8 %v5916
    %v5918 = vlaneseq
    %v5919 = vshrl.u32 %v5918, 7
    %v5920 = vsub.s32 %v5917, %v5919
    %v5921 = vrot.slane %v5913, %v5920
    %v5923 = vunpack.c.l.s4 1983009808
    %v5924 = vunpack.c.0.s8 %v5923
    %v5925 = vlaneseq
    %v5926 = vshrl.u32 %v5925, 7
    %v5927 = vsub.s32 %v5924, %v5926
    %v5928 = vrot.slane %v5914, %v5927
    %v5929 = vcombine.low %v5921, %v5928
    %v5930 = vcombine.low %v3992, %v4000
    %v5931 = vcombine.low %v3999, %v4001
    %v5933 = vunpack.c.l.s4 1983009808
    %v5934 = vunpack.c.0.s8 %v5933
    %v5935 = vlaneseq
    %v5936 = vshrl.u32 %v5935, 7
    %v5937 = vsub.s32 %v5934, %v5936
    %v5938 = vrot.slane %v5930, %v5937
    %v5940 = vunpack.c.l.s4 1983009808
    %v5941 = vunpack.c.0.s8 %v5940
    %v5942 = vlaneseq
    %v5943 = vshrl.u32 %v5942, 7
    %v5944 = vsub.s32 %v5941, %v5943
    %v5945 = vrot.slane %v5931, %v5944
    %v5946 = vcombine.low %v5938, %v5945
    %v5947 = vcombine.low %v4009, %v4017
    %v5948 = vcombine.low %v4016, %v4018
    %v5950 = vunpack.c.l.s4 1983009808
    %v5951 = vunpack.c.0.s8 %v5950
    %v5952 = vlaneseq
    %v5953 = vshrl.u32 %v5952, 7
    %v5954 = vsub.s32 %v5951, %v5953
    %v5955 = vrot.slane %v5947, %v5954
    %v5957 = vunpack.c.l.s4 1983009808
    %v5958 = vunpack.c.0.s8 %v5957
    %v5959 = vlaneseq
    %v5960 = vshrl.u32 %v5959, 7
    %v5961 = vsub.s32 %v5958, %v5960
    %v5962 = vrot.slane %v5948, %v5961
    %v5963 = vcombine.low %v5955, %v5962
    %v5964 = vcombine.low %v4026, %v4034
    %v5965 = vcombine.low %v4033, %v4035
    %v5967 = vunpack.c.l.s4 1983009808
    %v5968 = vunpack.c.0.s8 %v5967
    %v5969 = vlaneseq
    %v5970 = vshrl.u32 %v5969, 7
    %v5971 = vsub.s32 %v5968, %v5970
    %v5972 = vrot.slane %v5964, %v5971
    %v5974 = vunpack.c.l.s4 1983009808
    %v5975 = vunpack.c.0.s8 %v5974
    %v5976 = vlaneseq
    %v5977 = vshrl.u32 %v5976, 7
    %v5978 = vsub.s32 %v5975, %v5977
    %v5979 = vrot.slane %v5965, %v5978
    %v5980 = vcombine.low %v5972, %v5979
    %v5981 = vcombine.low %v4043, %v4051
    %v5982 = vcombine.low %v4050, %v4052
    %v5984 = vunpack.c.l.s4 1983009808
    %v5985 = vunpack.c.0.s8 %v5984
    %v5986 = vlaneseq
    %v5987 = vshrl.u32 %v5986, 7
    %v5988 = vsub.s32 %v5985, %v5987
    %v5989 = vrot.slane %v5981, %v5988
    %v5991 = vunpack.c.l.s4 1983009808
    %v5992 = vunpack.c.0.s8 %v5991
    %v5993 = vlaneseq
    %v5994 = vshrl.u32 %v5993, 7
    %v5995 = vsub.s32 %v5992, %v5994
    %v5996 = vrot.slane %v5982, %v5995
    %v5997 = vcombine.low %v5989, %v5996
    %v5998 = vcombine.low %v4060, %v4068
    %v6000 = vunpack.c.l.s4 1983009808
    %v6001 = vunpack.c.0.s8 %v6000
    %v6002 = vlaneseq
    %v6003 = vshrl.u32 %v6002, 7
    %v6004 = vsub.s32 %v6001, %v6003
    %v6005 = vrot.slane %v5998, %v6004
    %v6007 = vunpack.c.l.s4 1983009808
    %v6008 = vunpack.c.0.s8 %v6007
    %v6009 = vlaneseq
    %v6010 = vshrl.u32 %v6009, 7
    %v6011 = vsub.s32 %v6008, %v6010
    %v6012 = vrot.slane %v4067, %v6011
    %v6013 = vcombine.low %v6005, %v6012
    %v6020 = vsel %vm2564, %v5911, 0
    %v6023 = vsel %vm2564, %v5912, 0
    %v6025 = vsel %vm2703, %v6013, 0
    %6027 = vmatprep.subr.mxu0 0.0
    %6028 = vmatpush1.msra.mxu0 %v5929
    %6029 = vmatprep.subr.mxu0 0.0
    %6030 = vmatpush1.msra.mxu0 %v5946
    %6031 = vmatprep.subr.mxu0 0.0
    %6032 = vmatpush1.msra.mxu0 %v5963
    %6033 = vmatprep.subr.mxu0 0.0
    %6034 = vmatpush1.msra.mxu0 %v5980
    %6035 = vmatprep.subr.mxu0 0.0
    %6036 = vmatpush1.msra.mxu0 %v5997
    %6037 = vmatprep.subr.mxu0 0.0
    %6038 = vmatpush1.msra.mxu0 %v6025
    %6039 = vmatprep.subr.mxu0 0.0
    %6040 = vmatpush1.msra.mxu0 0.0
    %6041 = vmatprep.subr.mxu0 0.0
    %6042 = vmatpush1.msra.mxu0 0.0
    %6043 = vmatprep.subr.mxu0 0.0
    %6044 = vmatpush1.msra.mxu0 0.0
    %6045 = vmatprep.subr.mxu0 0.0
    %6046 = vmatpush1.msra.mxu0 0.0
    %6047 = vmatprep.subr.mxu0 0.0
    %6048 = vmatpush1.msra.mxu0 0.0
    %6049 = vmatprep.subr.mxu0 0.0
    %6050 = vmatpush1.msra.mxu0 0.0
    %6051 = vmatprep.subr.mxu0 0.0
    %6052 = vmatpush1.msra.mxu0 0.0
    %6053 = vmatprep.subr.mxu0 0.0
    %6054 = vmatpush1.msra.mxu0 0.0
    %6055 = vmatprep.subr.mxu0 0.0
    %6056 = vmatpush1.msra.mxu0 0.0
    %6057 = vmatprep.subr.mxu0 0.0
    %6058 = vmatpush1.msra.mxu0 0.0
    %6059 = vmatprep.subr.mxu0 0.0
    %6060 = vmatpush1.msra.mxu0 0.0
    %6061 = vmatprep.subr.mxu0 0.0
    %6062 = vmatpush1.msra.mxu0 0.0
    %6063 = vmatprep.subr.mxu0 0.0
    %6064 = vmatpush1.msra.mxu0 0.0
    %6065 = vmatprep.subr.mxu0 0.0
    %6066 = vmatpush1.msra.mxu0 0.0
    %6067 = vmatprep.subr.mxu0 0.0
    %6068 = vmatpush1.msra.mxu0 0.0
    %6069 = vmatprep.subr.mxu0 0.0
    %6070 = vmatpush1.msra.mxu0 0.0
    %6071 = vmatprep.subr.mxu0 0.0
    %6072 = vmatpush1.msra.mxu0 0.0
    %6073 = vmatprep.subr.mxu0 0.0
    %6074 = vmatpush1.msra.mxu0 0.0
    %6075 = vmatprep.subr.mxu0 0.0
    %6076 = vmatpush1.msra.mxu0 0.0
    %6077 = vmatprep.subr.mxu0 0.0
    %6078 = vmatpush1.msra.mxu0 0.0
    %6079 = vmatprep.subr.mxu0 0.0
    %6080 = vmatpush1.msra.mxu0 0.0
    %6081 = vmatprep.subr.mxu0 0.0
    %6082 = vmatpush1.msra.mxu0 0.0
    %6083 = vmatprep.subr.mxu0 0.0
    %6084 = vmatpush1.msra.mxu0 0.0
    %6085 = vmatprep.subr.mxu0 0.0
    %6086 = vmatpush1.msra.mxu0 0.0
    %6087 = vmatprep.subr.mxu0 0.0
    %6088 = vmatpush1.msra.mxu0 0.0
    %6089 = vmatprep.subr.mxu0 0.0
    %6090 = vmatpush1.msra.mxu0 0.0
    %6091 = vmatprep.mubr.f32.mxu0 0.0
    %6092 = vmatmul.mubr.f32.gmra.mrb[0].mxu0 %v6020
    %v6093 = vpop.f32.mrb[0].mxu0
    %v6094 = vadd.f32 0.0, %v6093
    %v6095 = vpop.f32.mrb[0].mxu0
    %6096 = vmatprep.mubr.f32.mxu0 0.0
    %6097 = vmatmul.mubr.f32.gmra.mrb[0].mxu0 %v6023
    %v6098 = vpop.f32.mrb[0].mxu0
    %v6099 = vadd.f32 0.0, %v6098
    %v6100 = vpop.f32.mrb[0].mxu0
    %6101 = vdwg.mxu0
    %s6102 = scalar_lea.vmem [#allocation5], 128
    %6103 = vst.msk [vmem:[%s6102] sm:$0xff] %vm4550, %v6094
    %6104 = vst.msk [vmem:[%s6102 + $0x8] sm:$0xff] %vm4550, %v6099
    %v6105 = vld [vmem:[%s2] sm:$0xff]
    %v6106 = vld [vmem:[%s2 + $0x8] sm:$0xff]
    %v6107 = vcombine.low %v4069, %v4077
    %v6108 = vcombine.low %v4085, %v4084
    %v6110 = vunpack.c.l.s4 1983009808
    %v6111 = vunpack.c.0.s8 %v6110
    %v6112 = vlaneseq
    %v6113 = vshrl.u32 %v6112, 7
    %v6114 = vsub.s32 %v6111, %v6113
    %v6115 = vrot.slane %v6107, %v6114
    %v6117 = vunpack.c.l.s4 1983009808
    %v6118 = vunpack.c.0.s8 %v6117
    %v6119 = vlaneseq
    %v6120 = vshrl.u32 %v6119, 7
    %v6121 = vsub.s32 %v6118, %v6120
    %v6122 = vrot.slane %v6108, %v6121
    %v6123 = vcombine.low %v6115, %v6122
    %v6124 = vcombine.low %v4086, %v4094
    %v6125 = vcombine.low %v4102, %v4101
    %v6127 = vunpack.c.l.s4 1983009808
    %v6128 = vunpack.c.0.s8 %v6127
    %v6129 = vlaneseq
    %v6130 = vshrl.u32 %v6129, 7
    %v6131 = vsub.s32 %v6128, %v6130
    %v6132 = vrot.slane %v6124, %v6131
    %v6134 = vunpack.c.l.s4 1983009808
    %v6135 = vunpack.c.0.s8 %v6134
    %v6136 = vlaneseq
    %v6137 = vshrl.u32 %v6136, 7
    %v6138 = vsub.s32 %v6135, %v6137
    %v6139 = vrot.slane %v6125, %v6138
    %v6140 = vcombine.low %v6132, %v6139
    %v6141 = vcombine.low %v4103, %v4111
    %v6142 = vcombine.low %v4119, %v4118
    %v6144 = vunpack.c.l.s4 1983009808
    %v6145 = vunpack.c.0.s8 %v6144
    %v6146 = vlaneseq
    %v6147 = vshrl.u32 %v6146, 7
    %v6148 = vsub.s32 %v6145, %v6147
    %v6149 = vrot.slane %v6141, %v6148
    %v6151 = vunpack.c.l.s4 1983009808
    %v6152 = vunpack.c.0.s8 %v6151
    %v6153 = vlaneseq
    %v6154 = vshrl.u32 %v6153, 7
    %v6155 = vsub.s32 %v6152, %v6154
    %v6156 = vrot.slane %v6142, %v6155
    %v6157 = vcombine.low %v6149, %v6156
    %v6158 = vcombine.low %v4120, %v4128
    %v6159 = vcombine.low %v4136, %v4135
    %v6161 = vunpack.c.l.s4 1983009808
    %v6162 = vunpack.c.0.s8 %v6161
    %v6163 = vlaneseq
    %v6164 = vshrl.u32 %v6163, 7
    %v6165 = vsub.s32 %v6162, %v6164
    %v6166 = vrot.slane %v6158, %v6165
    %v6168 = vunpack.c.l.s4 1983009808
    %v6169 = vunpack.c.0.s8 %v6168
    %v6170 = vlaneseq
    %v6171 = vshrl.u32 %v6170, 7
    %v6172 = vsub.s32 %v6169, %v6171
    %v6173 = vrot.slane %v6159, %v6172
    %v6174 = vcombine.low %v6166, %v6173
    %v6175 = vcombine.low %v4137, %v4145
    %v6176 = vcombine.low %v4153, %v4152
    %v6178 = vunpack.c.l.s4 1983009808
    %v6179 = vunpack.c.0.s8 %v6178
    %v6180 = vlaneseq
    %v6181 = vshrl.u32 %v6180, 7
    %v6182 = vsub.s32 %v6179, %v6181
    %v6183 = vrot.slane %v6175, %v6182
    %v6185 = vunpack.c.l.s4 1983009808
    %v6186 = vunpack.c.0.s8 %v6185
    %v6187 = vlaneseq
    %v6188 = vshrl.u32 %v6187, 7
    %v6189 = vsub.s32 %v6186, %v6188
    %v6190 = vrot.slane %v6176, %v6189
    %v6191 = vcombine.low %v6183, %v6190
    %v6192 = vcombine.low %v4154, %v4162
    %v6194 = vunpack.c.l.s4 1983009808
    %v6195 = vunpack.c.0.s8 %v6194
    %v6196 = vlaneseq
    %v6197 = vshrl.u32 %v6196, 7
    %v6198 = vsub.s32 %v6195, %v6197
    %v6199 = vrot.slane %v6192, %v6198
    %v6201 = vunpack.c.l.s4 1983009808
    %v6202 = vunpack.c.0.s8 %v6201
    %v6203 = vlaneseq
    %v6204 = vshrl.u32 %v6203, 7
    %v6205 = vsub.s32 %v6202, %v6204
    %v6206 = vrot.slane %v4170, %v6205
    %v6207 = vcombine.low %v6199, %v6206
    %v6214 = vsel %vm2564, %v6105, 0
    %v6217 = vsel %vm2564, %v6106, 0
    %v6219 = vsel %vm2703, %v6207, 0
    %6221 = vmatprep.subr.mxu0 0.0
    %6222 = vmatpush1.msra.mxu0 %v6123
    %6223 = vmatprep.subr.mxu0 0.0
    %6224 = vmatpush1.msra.mxu0 %v6140
    %6225 = vmatprep.subr.mxu0 0.0
    %6226 = vmatpush1.msra.mxu0 %v6157
    %6227 = vmatprep.subr.mxu0 0.0
    %6228 = vmatpush1.msra.mxu0 %v6174
    %6229 = vmatprep.subr.mxu0 0.0
    %6230 = vmatpush1.msra.mxu0 %v6191
    %6231 = vmatprep.subr.mxu0 0.0
    %6232 = vmatpush1.msra.mxu0 %v6219
    %6233 = vmatprep.subr.mxu0 0.0
    %6234 = vmatpush1.msra.mxu0 0.0
    %6235 = vmatprep.subr.mxu0 0.0
    %6236 = vmatpush1.msra.mxu0 0.0
    %6237 = vmatprep.subr.mxu0 0.0
    %6238 = vmatpush1.msra.mxu0 0.0
    %6239 = vmatprep.subr.mxu0 0.0
    %6240 = vmatpush1.msra.mxu0 0.0
    %6241 = vmatprep.subr.mxu0 0.0
    %6242 = vmatpush1.msra.mxu0 0.0
    %6243 = vmatprep.subr.mxu0 0.0
    %6244 = vmatpush1.msra.mxu0 0.0
    %6245 = vmatprep.subr.mxu0 0.0
    %6246 = vmatpush1.msra.mxu0 0.0
    %6247 = vmatprep.subr.mxu0 0.0
    %6248 = vmatpush1.msra.mxu0 0.0
    %6249 = vmatprep.subr.mxu0 0.0
    %6250 = vmatpush1.msra.mxu0 0.0
    %6251 = vmatprep.subr.mxu0 0.0
    %6252 = vmatpush1.msra.mxu0 0.0
    %6253 = vmatprep.subr.mxu0 0.0
    %6254 = vmatpush1.msra.mxu0 0.0
    %6255 = vmatprep.subr.mxu0 0.0
    %6256 = vmatpush1.msra.mxu0 0.0
    %6257 = vmatprep.subr.mxu0 0.0
    %6258 = vmatpush1.msra.mxu0 0.0
    %6259 = vmatprep.subr.mxu0 0.0
    %6260 = vmatpush1.msra.mxu0 0.0
    %6261 = vmatprep.subr.mxu0 0.0
    %6262 = vmatpush1.msra.mxu0 0.0
    %6263 = vmatprep.subr.mxu0 0.0
    %6264 = vmatpush1.msra.mxu0 0.0
    %6265 = vmatprep.subr.mxu0 0.0
    %6266 = vmatpush1.msra.mxu0 0.0
    %6267 = vmatprep.subr.mxu0 0.0
    %6268 = vmatpush1.msra.mxu0 0.0
    %6269 = vmatprep.subr.mxu0 0.0
    %6270 = vmatpush1.msra.mxu0 0.0
    %6271 = vmatprep.subr.mxu0 0.0
    %6272 = vmatpush1.msra.mxu0 0.0
    %6273 = vmatprep.subr.mxu0 0.0
    %6274 = vmatpush1.msra.mxu0 0.0
    %6275 = vmatprep.subr.mxu0 0.0
    %6276 = vmatpush1.msra.mxu0 0.0
    %6277 = vmatprep.subr.mxu0 0.0
    %6278 = vmatpush1.msra.mxu0 0.0
    %6279 = vmatprep.subr.mxu0 0.0
    %6280 = vmatpush1.msra.mxu0 0.0
    %6281 = vmatprep.subr.mxu0 0.0
    %6282 = vmatpush1.msra.mxu0 0.0
    %6283 = vmatprep.subr.mxu0 0.0
    %6284 = vmatpush1.msra.mxu0 0.0
    %6285 = vmatprep.mubr.f32.mxu0 0.0
    %6286 = vmatmul.mubr.f32.gmra.mrb[0].mxu0 %v6214
    %v6287 = vpop.f32.mrb[0].mxu0
    %v6288 = vadd.f32 0.0, %v6287
    %v6289 = vpop.f32.mrb[0].mxu0
    %6290 = vmatprep.mubr.f32.mxu0 0.0
    %6291 = vmatmul.mubr.f32.gmra.mrb[0].mxu0 %v6217
    %v6292 = vpop.f32.mrb[0].mxu0
    %v6293 = vadd.f32 0.0, %v6292
    %v6294 = vpop.f32.mrb[0].mxu0
    %6295 = vdwg.mxu0
    %s6296 = scalar_lea.vmem [#allocation5], 144
    %6297 = vst.msk [vmem:[%s6296] sm:$0xff] %vm4550, %v6288
    %6298 = vst.msk [vmem:[%s6296 + $0x8] sm:$0xff] %vm4550, %v6293
    %v6299 = vld [vmem:[%s2] sm:$0xff]
    %v6300 = vld [vmem:[%s2 + $0x8] sm:$0xff]
    %v6301 = vcombine.low %v4169, %v4171
    %v6302 = vcombine.low %v4179, %v4187
    %v6304 = vunpack.c.l.s4 1983009808
    %v6305 = vunpack.c.0.s8 %v6304
    %v6306 = vlaneseq
    %v6307 = vshrl.u32 %v6306, 7
    %v6308 = vsub.s32 %v6305, %v6307
    %v6309 = vrot.slane %v6301, %v6308
    %v6311 = vunpack.c.l.s4 1983009808
    %v6312 = vunpack.c.0.s8 %v6311
    %v6313 = vlaneseq
    %v6314 = vshrl.u32 %v6313, 7
    %v6315 = vsub.s32 %v6312, %v6314
    %v6316 = vrot.slane %v6302, %v6315
    %v6317 = vcombine.low %v6309, %v6316
    %v6318 = vcombine.low %v4186, %v4188
    %v6319 = vcombine.low %v4196, %v4204
    %v6321 = vunpack.c.l.s4 1983009808
    %v6322 = vunpack.c.0.s8 %v6321
    %v6323 = vlaneseq
    %v6324 = vshrl.u32 %v6323, 7
    %v6325 = vsub.s32 %v6322, %v6324
    %v6326 = vrot.slane %v6318, %v6325
    %v6328 = vunpack.c.l.s4 1983009808
    %v6329 = vunpack.c.0.s8 %v6328
    %v6330 = vlaneseq
    %v6331 = vshrl.u32 %v6330, 7
    %v6332 = vsub.s32 %v6329, %v6331
    %v6333 = vrot.slane %v6319, %v6332
    %v6334 = vcombine.low %v6326, %v6333
    %v6335 = vcombine.low %v4203, %v4205
    %v6336 = vcombine.low %v4213, %v4221
    %v6338 = vunpack.c.l.s4 1983009808
    %v6339 = vunpack.c.0.s8 %v6338
    %v6340 = vlaneseq
    %v6341 = vshrl.u32 %v6340, 7
    %v6342 = vsub.s32 %v6339, %v6341
    %v6343 = vrot.slane %v6335, %v6342
    %v6345 = vunpack.c.l.s4 1983009808
    %v6346 = vunpack.c.0.s8 %v6345
    %v6347 = vlaneseq
    %v6348 = vshrl.u32 %v6347, 7
    %v6349 = vsub.s32 %v6346, %v6348
    %v6350 = vrot.slane %v6336, %v6349
    %v6351 = vcombine.low %v6343, %v6350
    %v6352 = vcombine.low %v4220, %v4222
    %v6353 = vcombine.low %v4230, %v4238
    %v6355 = vunpack.c.l.s4 1983009808
    %v6356 = vunpack.c.0.s8 %v6355
    %v6357 = vlaneseq
    %v6358 = vshrl.u32 %v6357, 7
    %v6359 = vsub.s32 %v6356, %v6358
    %v6360 = vrot.slane %v6352, %v6359
    %v6362 = vunpack.c.l.s4 1983009808
    %v6363 = vunpack.c.0.s8 %v6362
    %v6364 = vlaneseq
    %v6365 = vshrl.u32 %v6364, 7
    %v6366 = vsub.s32 %v6363, %v6365
    %v6367 = vrot.slane %v6353, %v6366
    %v6368 = vcombine.low %v6360, %v6367
    %v6369 = vcombine.low %v4237, %v4239
    %v6370 = vcombine.low %v4247, %v4255
    %v6372 = vunpack.c.l.s4 1983009808
    %v6373 = vunpack.c.0.s8 %v6372
    %v6374 = vlaneseq
    %v6375 = vshrl.u32 %v6374, 7
    %v6376 = vsub.s32 %v6373, %v6375
    %v6377 = vrot.slane %v6369, %v6376
    %v6379 = vunpack.c.l.s4 1983009808
    %v6380 = vunpack.c.0.s8 %v6379
    %v6381 = vlaneseq
    %v6382 = vshrl.u32 %v6381, 7
    %v6383 = vsub.s32 %v6380, %v6382
    %v6384 = vrot.slane %v6370, %v6383
    %v6385 = vcombine.low %v6377, %v6384
    %v6386 = vcombine.low %v4254, %v4256
    %v6388 = vunpack.c.l.s4 1983009808
    %v6389 = vunpack.c.0.s8 %v6388
    %v6390 = vlaneseq
    %v6391 = vshrl.u32 %v6390, 7
    %v6392 = vsub.s32 %v6389, %v6391
    %v6393 = vrot.slane %v6386, %v6392
    %v6395 = vunpack.c.l.s4 1983009808
    %v6396 = vunpack.c.0.s8 %v6395
    %v6397 = vlaneseq
    %v6398 = vshrl.u32 %v6397, 7
    %v6399 = vsub.s32 %v6396, %v6398
    %v6400 = vrot.slane %v4264, %v6399
    %v6401 = vcombine.low %v6393, %v6400
    %v6408 = vsel %vm2564, %v6299, 0
    %v6411 = vsel %vm2564, %v6300, 0
    %v6413 = vsel %vm2703, %v6401, 0
    %6415 = vmatprep.subr.mxu0 0.0
    %6416 = vmatpush1.msra.mxu0 %v6317
    %6417 = vmatprep.subr.mxu0 0.0
    %6418 = vmatpush1.msra.mxu0 %v6334
    %6419 = vmatprep.subr.mxu0 0.0
    %6420 = vmatpush1.msra.mxu0 %v6351
    %6421 = vmatprep.subr.mxu0 0.0
    %6422 = vmatpush1.msra.mxu0 %v6368
    %6423 = vmatprep.subr.mxu0 0.0
    %6424 = vmatpush1.msra.mxu0 %v6385
    %6425 = vmatprep.subr.mxu0 0.0
    %6426 = vmatpush1.msra.mxu0 %v6413
    %6427 = vmatprep.subr.mxu0 0.0
    %6428 = vmatpush1.msra.mxu0 0.0
    %6429 = vmatprep.subr.mxu0 0.0
    %6430 = vmatpush1.msra.mxu0 0.0
    %6431 = vmatprep.subr.mxu0 0.0
    %6432 = vmatpush1.msra.mxu0 0.0
    %6433 = vmatprep.subr.mxu0 0.0
    %6434 = vmatpush1.msra.mxu0 0.0
    %6435 = vmatprep.subr.mxu0 0.0
    %6436 = vmatpush1.msra.mxu0 0.0
    %6437 = vmatprep.subr.mxu0 0.0
    %6438 = vmatpush1.msra.mxu0 0.0
    %6439 = vmatprep.subr.mxu0 0.0
    %6440 = vmatpush1.msra.mxu0 0.0
    %6441 = vmatprep.subr.mxu0 0.0
    %6442 = vmatpush1.msra.mxu0 0.0
    %6443 = vmatprep.subr.mxu0 0.0
    %6444 = vmatpush1.msra.mxu0 0.0
    %6445 = vmatprep.subr.mxu0 0.0
    %6446 = vmatpush1.msra.mxu0 0.0
    %6447 = vmatprep.subr.mxu0 0.0
    %6448 = vmatpush1.msra.mxu0 0.0
    %6449 = vmatprep.subr.mxu0 0.0
    %6450 = vmatpush1.msra.mxu0 0.0
    %6451 = vmatprep.subr.mxu0 0.0
    %6452 = vmatpush1.msra.mxu0 0.0
    %6453 = vmatprep.subr.mxu0 0.0
    %6454 = vmatpush1.msra.mxu0 0.0
    %6455 = vmatprep.subr.mxu0 0.0
    %6456 = vmatpush1.msra.mxu0 0.0
    %6457 = vmatprep.subr.mxu0 0.0
    %6458 = vmatpush1.msra.mxu0 0.0
    %6459 = vmatprep.subr.mxu0 0.0
    %6460 = vmatpush1.msra.mxu0 0.0
    %6461 = vmatprep.subr.mxu0 0.0
    %6462 = vmatpush1.msra.mxu0 0.0
    %6463 = vmatprep.subr.mxu0 0.0
    %6464 = vmatpush1.msra.mxu0 0.0
    %6465 = vmatprep.subr.mxu0 0.0
    %6466 = vmatpush1.msra.mxu0 0.0
    %6467 = vmatprep.subr.mxu0 0.0
    %6468 = vmatpush1.msra.mxu0 0.0
    %6469 = vmatprep.subr.mxu0 0.0
    %6470 = vmatpush1.msra.mxu0 0.0
    %6471 = vmatprep.subr.mxu0 0.0
    %6472 = vmatpush1.msra.mxu0 0.0
    %6473 = vmatprep.subr.mxu0 0.0
    %6474 = vmatpush1.msra.mxu0 0.0
    %6475 = vmatprep.subr.mxu0 0.0
    %6476 = vmatpush1.msra.mxu0 0.0
    %6477 = vmatprep.subr.mxu0 0.0
    %6478 = vmatpush1.msra.mxu0 0.0
    %6479 = vmatprep.mubr.f32.mxu0 0.0
    %6480 = vmatmul.mubr.f32.gmra.mrb[0].mxu0 %v6408
    %v6481 = vpop.f32.mrb[0].mxu0
    %v6482 = vadd.f32 0.0, %v6481
    %v6483 = vpop.f32.mrb[0].mxu0
    %6484 = vmatprep.mubr.f32.mxu0 0.0
    %6485 = vmatmul.mubr.f32.gmra.mrb[0].mxu0 %v6411
    %v6486 = vpop.f32.mrb[0].mxu0
    %v6487 = vadd.f32 0.0, %v6486
    %v6488 = vpop.f32.mrb[0].mxu0
    %6489 = vdwg.mxu0
    %s6490 = scalar_lea.vmem [#allocation5], 160
    %6491 = vst.msk [vmem:[%s6490] sm:$0xff] %vm4550, %v6482
    %6492 = vst.msk [vmem:[%s6490 + $0x8] sm:$0xff] %vm4550, %v6487
    %v6493 = vld [vmem:[%s2] sm:$0xff]
    %v6494 = vld [vmem:[%s2 + $0x8] sm:$0xff]
    %v6495 = vcombine.low %v4272, %v4271
    %v6496 = vcombine.low %v4273, %v4281
    %v6498 = vunpack.c.l.s4 1983009808
    %v6499 = vunpack.c.0.s8 %v6498
    %v6500 = vlaneseq
    %v6501 = vshrl.u32 %v6500, 7
    %v6502 = vsub.s32 %v6499, %v6501
    %v6503 = vrot.slane %v6495, %v6502
    %v6505 = vunpack.c.l.s4 1983009808
    %v6506 = vunpack.c.0.s8 %v6505
    %v6507 = vlaneseq
    %v6508 = vshrl.u32 %v6507, 7
    %v6509 = vsub.s32 %v6506, %v6508
    %v6510 = vrot.slane %v6496, %v6509
    %v6511 = vcombine.low %v6503, %v6510
    %v6512 = vcombine.low %v4289, %v4288
    %v6513 = vcombine.low %v4290, %v4298
    %v6515 = vunpack.c.l.s4 1983009808
    %v6516 = vunpack.c.0.s8 %v6515
    %v6517 = vlaneseq
    %v6518 = vshrl.u32 %v6517, 7
    %v6519 = vsub.s32 %v6516, %v6518
    %v6520 = vrot.slane %v6512, %v6519
    %v6522 = vunpack.c.l.s4 1983009808
    %v6523 = vunpack.c.0.s8 %v6522
    %v6524 = vlaneseq
    %v6525 = vshrl.u32 %v6524, 7
    %v6526 = vsub.s32 %v6523, %v6525
    %v6527 = vrot.slane %v6513, %v6526
    %v6528 = vcombine.low %v6520, %v6527
    %v6529 = vcombine.low %v4306, %v4305
    %v6530 = vcombine.low %v4307, %v4315
    %v6532 = vunpack.c.l.s4 1983009808
    %v6533 = vunpack.c.0.s8 %v6532
    %v6534 = vlaneseq
    %v6535 = vshrl.u32 %v6534, 7
    %v6536 = vsub.s32 %v6533, %v6535
    %v6537 = vrot.slane %v6529, %v6536
    %v6539 = vunpack.c.l.s4 1983009808
    %v6540 = vunpack.c.0.s8 %v6539
    %v6541 = vlaneseq
    %v6542 = vshrl.u32 %v6541, 7
    %v6543 = vsub.s32 %v6540, %v6542
    %v6544 = vrot.slane %v6530, %v6543
    %v6545 = vcombine.low %v6537, %v6544
    %v6546 = vcombine.low %v4323, %v4322
    %v6547 = vcombine.low %v4324, %v4332
    %v6549 = vunpack.c.l.s4 1983009808
    %v6550 = vunpack.c.0.s8 %v6549
    %v6551 = vlaneseq
    %v6552 = vshrl.u32 %v6551, 7
    %v6553 = vsub.s32 %v6550, %v6552
    %v6554 = vrot.slane %v6546, %v6553
    %v6556 = vunpack.c.l.s4 1983009808
    %v6557 = vunpack.c.0.s8 %v6556
    %v6558 = vlaneseq
    %v6559 = vshrl.u32 %v6558, 7
    %v6560 = vsub.s32 %v6557, %v6559
    %v6561 = vrot.slane %v6547, %v6560
    %v6562 = vcombine.low %v6554, %v6561
    %v6563 = vcombine.low %v4340, %v4339
    %v6564 = vcombine.low %v4341, %v4349
    %v6566 = vunpack.c.l.s4 1983009808
    %v6567 = vunpack.c.0.s8 %v6566
    %v6568 = vlaneseq
    %v6569 = vshrl.u32 %v6568, 7
    %v6570 = vsub.s32 %v6567, %v6569
    %v6571 = vrot.slane %v6563, %v6570
    %v6573 = vunpack.c.l.s4 1983009808
    %v6574 = vunpack.c.0.s8 %v6573
    %v6575 = vlaneseq
    %v6576 = vshrl.u32 %v6575, 7
    %v6577 = vsub.s32 %v6574, %v6576
    %v6578 = vrot.slane %v6564, %v6577
    %v6579 = vcombine.low %v6571, %v6578
    %v6580 = vcombine.low %v4357, %v4356
    %v6582 = vunpack.c.l.s4 1983009808
    %v6583 = vunpack.c.0.s8 %v6582
    %v6584 = vlaneseq
    %v6585 = vshrl.u32 %v6584, 7
    %v6586 = vsub.s32 %v6583, %v6585
    %v6587 = vrot.slane %v6580, %v6586
    %v6589 = vunpack.c.l.s4 1983009808
    %v6590 = vunpack.c.0.s8 %v6589
    %v6591 = vlaneseq
    %v6592 = vshrl.u32 %v6591, 7
    %v6593 = vsub.s32 %v6590, %v6592
    %v6594 = vrot.slane %v4358, %v6593
    %v6595 = vcombine.low %v6587, %v6594
    %v6602 = vsel %vm2564, %v6493, 0
    %v6605 = vsel %vm2564, %v6494, 0
    %v6607 = vsel %vm2703, %v6595, 0
    %6609 = vmatprep.subr.mxu0 0.0
    %6610 = vmatpush1.msra.mxu0 %v6511
    %6611 = vmatprep.subr.mxu0 0.0
    %6612 = vmatpush1.msra.mxu0 %v6528
    %6613 = vmatprep.subr.mxu0 0.0
    %6614 = vmatpush1.msra.mxu0 %v6545
    %6615 = vmatprep.subr.mxu0 0.0
    %6616 = vmatpush1.msra.mxu0 %v6562
    %6617 = vmatprep.subr.mxu0 0.0
    %6618 = vmatpush1.msra.mxu0 %v6579
    %6619 = vmatprep.subr.mxu0 0.0
    %6620 = vmatpush1.msra.mxu0 %v6607
    %6621 = vmatprep.subr.mxu0 0.0
    %6622 = vmatpush1.msra.mxu0 0.0
    %6623 = vmatprep.subr.mxu0 0.0
    %6624 = vmatpush1.msra.mxu0 0.0
    %6625 = vmatprep.subr.mxu0 0.0
    %6626 = vmatpush1.msra.mxu0 0.0
    %6627 = vmatprep.subr.mxu0 0.0
    %6628 = vmatpush1.msra.mxu0 0.0
    %6629 = vmatprep.subr.mxu0 0.0
    %6630 = vmatpush1.msra.mxu0 0.0
    %6631 = vmatprep.subr.mxu0 0.0
    %6632 = vmatpush1.msra.mxu0 0.0
    %6633 = vmatprep.subr.mxu0 0.0
    %6634 = vmatpush1.msra.mxu0 0.0
    %6635 = vmatprep.subr.mxu0 0.0
    %6636 = vmatpush1.msra.mxu0 0.0
    %6637 = vmatprep.subr.mxu0 0.0
    %6638 = vmatpush1.msra.mxu0 0.0
    %6639 = vmatprep.subr.mxu0 0.0
    %6640 = vmatpush1.msra.mxu0 0.0
    %6641 = vmatprep.subr.mxu0 0.0
    %6642 = vmatpush1.msra.mxu0 0.0
    %6643 = vmatprep.subr.mxu0 0.0
    %6644 = vmatpush1.msra.mxu0 0.0
    %6645 = vmatprep.subr.mxu0 0.0
    %6646 = vmatpush1.msra.mxu0 0.0
    %6647 = vmatprep.subr.mxu0 0.0
    %6648 = vmatpush1.msra.mxu0 0.0
    %6649 = vmatprep.subr.mxu0 0.0
    %6650 = vmatpush1.msra.mxu0 0.0
    %6651 = vmatprep.subr.mxu0 0.0
    %6652 = vmatpush1.msra.mxu0 0.0
    %6653 = vmatprep.subr.mxu0 0.0
    %6654 = vmatpush1.msra.mxu0 0.0
    %6655 = vmatprep.subr.mxu0 0.0
    %6656 = vmatpush1.msra.mxu0 0.0
    %6657 = vmatprep.subr.mxu0 0.0
    %6658 = vmatpush1.msra.mxu0 0.0
    %6659 = vmatprep.subr.mxu0 0.0
    %6660 = vmatpush1.msra.mxu0 0.0
    %6661 = vmatprep.subr.mxu0 0.0
    %6662 = vmatpush1.msra.mxu0 0.0
    %6663 = vmatprep.subr.mxu0 0.0
    %6664 = vmatpush1.msra.mxu0 0.0
    %6665 = vmatprep.subr.mxu0 0.0
    %6666 = vmatpush1.msra.mxu0 0.0
    %6667 = vmatprep.subr.mxu0 0.0
    %6668 = vmatpush1.msra.mxu0 0.0
    %6669 = vmatprep.subr.mxu0 0.0
    %6670 = vmatpush1.msra.mxu0 0.0
    %6671 = vmatprep.subr.mxu0 0.0
    %6672 = vmatpush1.msra.mxu0 0.0
    %6673 = vmatprep.mubr.f32.mxu0 0.0
    %6674 = vmatmul.mubr.f32.gmra.mrb[0].mxu0 %v6602
    %v6675 = vpop.f32.mrb[0].mxu0
    %v6676 = vadd.f32 0.0, %v6675
    %v6677 = vpop.f32.mrb[0].mxu0
    %6678 = vmatprep.mubr.f32.mxu0 0.0
    %6679 = vmatmul.mubr.f32.gmra.mrb[0].mxu0 %v6605
    %v6680 = vpop.f32.mrb[0].mxu0
    %v6681 = vadd.f32 0.0, %v6680
    %v6682 = vpop.f32.mrb[0].mxu0
    %6683 = vdwg.mxu0
    %s6684 = scalar_lea.vmem [#allocation5], 176
    %6685 = vst.msk [vmem:[%s6684] sm:$0xff] %vm4550, %v6676
    %6686 = vst.msk [vmem:[%s6684 + $0x8] sm:$0xff] %vm4550, %v6681
    // Predicated region
    $region18: #{tpu_custom_call.1} parent=1 // pred_check
      _
    $region19: #{tpu_custom_call.1} parent=1 // pred_check_branch
      %6688 = sbr.rel (0) target = $region21
    $region20: #{tpu_custom_call.1} parent=1 // pred_region
      %s6690 = ssub.s32 3072, 3072
      %6691 = vsyncadd [#allocation4], %s6690
      %s6692 = sshll.u32 [#allocation5], 4
      %s6693 = int_to_ptr.vmem [resolvable:$true] %s6692
      %6698 = dma.vmem_to_hbm [thread:$0]  %s6693, 3072, %s3, [#allocation4], 128, 128, 8
    $region21: #{tpu_custom_call.1} parent=1 // pred_fallthru
      _
    // Predicated region
    $region22: #{tpu_custom_call.1} parent=1 // pred_check
      _
    $region23: #{tpu_custom_call.1} parent=1 // pred_check_branch
      %6700 = sbr.rel (0) target = $region25
    $region24: #{tpu_custom_call.1} parent=1 // pred_region
      %6701 = dma.done [#allocation4], 3072
    $region25: #{tpu_custom_call.1} parent=1 // pred_fallthru
      _
    %6702 = vsyncpa [#allocation3], 1
    %6703 = vsyncpa [#allocation4], 1

</llo_original>
